<compile_context>
chip_gen: v7x
topology: tpu7x:2x2x1
jax: 0.10.0
libtpu: 0.0.40
codegen_flags: <defaults>
</compile_context>

<pallas_src>
import jax
import jax.numpy as jnp
import numpy as np
from jax.experimental import pallas as pl
from jax.experimental.pallas import tpu as pltpu


# ----------------------------- small helpers --------------------------------

def _scale_dimension(dim: int, scale: float) -> int:
    # Mirror of ReLUConv5BN.scale_dimension
    return int((float(dim) - 1.0) * scale + 1.0) if dim % 2 == 1 else int(float(dim) * scale)


def _round_up(x: int, m: int) -> int:
    return ((x + m - 1) // m) * m


def _resize_bilinear_align_corners_nchw(x, out_h, out_w):
    """Bilinear resize (align_corners=True), matching F.interpolate. NCHW, f32."""
    n, c, h, w = x.shape
    if out_h == h and out_w == w:
        return x  # align_corners=True resize to the same size is the identity

    def src(out_dim, in_dim):
        if out_dim > 1:
            return jnp.arange(out_dim, dtype=jnp.float32) * ((in_dim - 1) / (out_dim - 1))
        return jnp.zeros((out_dim,), jnp.float32)

    ys = src(out_h, h)
    xs = src(out_w, w)
    y0 = jnp.clip(jnp.floor(ys).astype(jnp.int32), 0, h - 1)
    x0 = jnp.clip(jnp.floor(xs).astype(jnp.int32), 0, w - 1)
    y1 = jnp.minimum(y0 + 1, h - 1)
    x1 = jnp.minimum(x0 + 1, w - 1)
    wy = (ys - y0.astype(jnp.float32)).reshape(1, 1, out_h, 1)
    wx = (xs - x0.astype(jnp.float32)).reshape(1, 1, 1, out_w)

    r0 = x[:, :, y0, :]
    r1 = x[:, :, y1, :]
    a = r0[:, :, :, x0]
    b = r0[:, :, :, x1]
    cc = r1[:, :, :, x0]
    d = r1[:, :, :, x1]

    top = a * (1.0 - wx) + b * wx
    bot = cc * (1.0 - wx) + d * wx
    return top * (1.0 - wy) + bot * wy


def _step_vmem_bytes(th, wp, cin_p, cout_p):
    """Per-grid-step VMEM working set of kernel 1 (with its pipelining buffers)."""
    lo = _round_up(th * wp, 128)
    lx = _round_up(4 * wp + 4 + lo, 128)
    return (2 * cin_p * lx * 2          # input row-tile (bf16), double-buffered
            + 25 * cout_p * cin_p * 2   # weight (bf16), single-buffered
            + 2 * cout_p * lo * 2       # conv output tile (bf16), double-buffered
            + cout_p * lo * 4           # f32 accumulator scratch
            + 2 * lo * 4                # column-validity mask
            + 4 * cout_p * 4)           # per-tile BN partial sums


def _pick_row_tile(oh, wp, cin_p, cout_p, budget=6 << 20):
    """Biggest row-tile whose per-step working set stays under a cross-gen budget."""
    th = oh
    while th > 1 and _step_vmem_bytes(th, wp, cin_p, cout_p) > budget:
        th = (th + 1) // 2
    n_rt = -(-oh // th)
    th = -(-oh // n_rt)          # rebalance
    return th, n_rt


def _vmem_limit_bytes(step_bytes):
    try:
        cap = int(pltpu.get_tpu_info().vmem_capacity_bytes)
    except Exception:            # pragma: no cover
        cap = 64 << 20           # conservative (v7x per-core VMEM)
    return int(min(int(0.9 * cap), max(4 * step_bytes, 32 << 20)))


# --------------------------------- wrapper -----------------------------------

def relu_conv5_bn(x_nchw, w_oihw, eps=1e-5):
    """ReLUConv5BN forward. x_nchw: (N, C_in, H, W); w_oihw: (C_out, C_in, 5, 5)."""
    n, cin, h, w = x_nchw.shape
    cout = w_oihw.shape[0]

    scale = cin / cout
    oh = _scale_dimension(h, scale)
    ow = _scale_dimension(w, scale)

    # ---- plain-JAX glue: bilinear resize (f32), cast to bf16 MXU operands ----
    x = _resize_bilinear_align_corners_nchw(x_nchw.astype(jnp.float32), oh, ow)
    x = x.astype(jnp.bfloat16)                     # bf16 operands, f32 accumulation

    cin_p = _round_up(cin, 8)                      # sublane-aligned channels
    cout_p = _round_up(cout, 8)
    wp = ow + 4                                    # conv padding = 2 per side

    th, n_rt = _pick_row_tile(oh, wp, cin_p, cout_p)
    lo = _round_up(th * wp, 128)                   # lane-dense output width / tile
    lx = _round_up(4 * wp + 4 + lo, 128)           # flat input window incl. halo

    # Zero-pad: channels -> cin_p, spatial +2 each side (+ extra bottom rows so
    # every row-tile has a full 4-row halo), then flatten rows*cols row-major.
    hp = n_rt * th + 4
    xp = jnp.pad(x, ((0, 0), (0, cin_p - cin), (2, hp - oh - 2), (2, 2)))
    x_flat = xp.reshape(n, cin_p, hp * wp)
    win = (th + 4) * wp
    # Overlapping per-row-tile windows (4-row halo): ~(th+4)/th read duplication
    # only, instead of the previous 25x im2col blow-up.
    x_tiles = jnp.stack(
        [x_flat[:, :, rt * th * wp: rt * th * wp + win] for rt in range(n_rt)], axis=1)
    x_tiles = jnp.pad(x_tiles, ((0, 0), (0, 0), (0, 0), (0, lx - win)))  # (n,n_rt,cin_p,lx)

    # Weight OIHW -> (25, cout_p, cin_p) bf16, tap index = 5*dy + dx.
    w_mat = jnp.transpose(w_oihw, (2, 3, 0, 1)).reshape(25, cout, cin)
    w_mat = jnp.pad(w_mat, ((0, 0), (0, cout_p - cout), (0, cin_p - cin)))
    w_mat = w_mat.astype(jnp.bfloat16)

    # Lane-validity mask for BN stats (junk columns between rows / lane padding).
    ii = np.arange(lo)
    colmask = jnp.asarray(((ii % wp) < ow) & (ii < th * wp), jnp.float32).reshape(1, lo)

    vmem_limit = _vmem_limit_bytes(_step_vmem_bytes(th, wp, cin_p, cout_p))

    # ---------------- kernel 1: ReLU + 25-tap conv + BN partial stats ---------
    def conv_stats_kernel(x_ref, w_ref, cmask_ref, o_ref, s1_ref, s2_ref, acc_ref):
        # Fused ReLU on the zero-padded bf16 row-tile (ReLU commutes with 0-pad).
        xv = jnp.maximum(x_ref[...], 0).reshape(cin_p, lx)
        acc_ref[...] = jnp.zeros_like(acc_ref)
        # 5x5 taps as static lane-shifted slices of the row-major flat window:
        #   acc[:, r*wp + c] += W[:, :, dy, dx] @ x_pad[:, r+dy, c+dx]
        # Columns with (i % wp) >= ow are junk and are dropped in the wrapper.
        for dy in range(5):
            for dx in range(5):
                off = dy * wp + dx
                acc_ref[...] += jnp.dot(w_ref[5 * dy + dx], xv[:, off:off + lo],
                                        preferred_element_type=jnp.float32)
        acc = acc_ref[...]
        # bf16 intermediate (halves conv<->BN HBM traffic); stats stay in f32.
        o_ref[...] = acc.astype(o_ref.dtype).reshape(o_ref.shape)
        rows_valid = jnp.minimum(th, oh - pl.program_id(1) * th)
        col = jax.lax.broadcasted_iota(jnp.int32, (1, lo), 1)
        live = jnp.where(col < rows_valid * wp, cmask_ref[...], 0.0)
        av = acc * live
        s1_ref[...] = jnp.sum(av, axis=1, keepdims=True).reshape(s1_ref.shape)
        s2_ref[...] = jnp.sum(av * acc, axis=1, keepdims=True).reshape(s2_ref.shape)

    x_spec = pl.BlockSpec((1, 1, cin_p, lx), lambda b, rt: (b, rt, 0, 0))
    m_spec = pl.BlockSpec((1, lo), lambda b, rt: (0, 0))
    flops1 = 2 * n * n_rt * 25 * cout_p * cin_p * lo
    bytes1 = (n * n_rt * cin_p * lx * 2 + 25 * cout_p * cin_p * 2 + lo * 4
              + n * n_rt * cout_p * lo * 2 + 2 * n * n_rt * cout_p * 4)

    def run_conv(w_spec):
        return pl.pallas_call(
            conv_stats_kernel,
            out_shape=(
                jax.ShapeDtypeStruct((n, n_rt, cout_p, lo), jnp.bfloat16),
                jax.ShapeDtypeStruct((n, n_rt, cout_p, 1), jnp.float32),
                jax.ShapeDtypeStruct((n, n_rt, cout_p, 1), jnp.float32),
            ),
            grid=(n, n_rt),
            in_specs=[x_spec, w_spec, m_spec],
            out_specs=(
                pl.BlockSpec((1, 1, cout_p, lo), lambda b, rt: (b, rt, 0, 0)),
                pl.BlockSpec((1, 1, cout_p, 1), lambda b, rt: (b, rt, 0, 0)),
                pl.BlockSpec((1, 1, cout_p, 1), lambda b, rt: (b, rt, 0, 0)),
            ),
            scratch_shapes=[pltpu.VMEM((cout_p, lo), jnp.float32)],
            compiler_params=pltpu.CompilerParams(
                dimension_semantics=("parallel", "parallel"),
                vmem_limit_bytes=vmem_limit),
            cost_estimate=pl.CostEstimate(flops=flops1, transcendentals=0,
                                          bytes_accessed=bytes1),
        )(x_tiles, w_mat, colmask)

    try:
        # Grid-invariant weight: request single buffering (halves its VMEM cost).
        conv, s1, s2 = run_conv(
            pl.BlockSpec((25, cout_p, cin_p), lambda b, rt: (0, 0, 0),
                         pipeline_mode=pl.Buffered(1)))
    except Exception:
        # Fallback: default double-buffered spec (pipeline_mode unsupported here).
        conv, s1, s2 = run_conv(
            pl.BlockSpec((25, cout_p, cin_p), lambda b, rt: (0, 0, 0)))

    # ---- tiny cross-tile moment merge + BN coefficients (training-mode stats) ----
    m_count = n * oh * ow
    tot = jnp.sum(s1, axis=(0, 1), dtype=jnp.float32)[:, 0]
    tot_sq = jnp.sum(s2, axis=(0, 1), dtype=jnp.float32)[:, 0]
    mean = tot / m_count
    var = jnp.maximum(tot_sq / m_count - mean * mean, 0.0)  # biased (BN training)
    # TODO(synk): one-pass E[x^2]-E[x]^2 can cancel when |mean| >> std; use a
    # compensated / two-pass reduction for production-scale activations.
    inv = jax.lax.rsqrt(var + eps)
    bn_scale = inv.reshape(1, 1, cout_p, 1)
    bn_shift = (-mean * inv).reshape(1, 1, cout_p, 1)

    # ---------------- kernel 2: apply BN (weight=1, bias=0 folded in) ---------
    def bn_apply_kernel(c_ref, sc_ref, sh_ref, o_ref):
        o_ref[...] = (c_ref[...].astype(jnp.float32) * sc_ref[...]
                      + sh_ref[...]).astype(o_ref.dtype)

    out_flat = pl.pallas_call(
        bn_apply_kernel,
        out_shape=jax.ShapeDtypeStruct((n, n_rt, cout_p, lo), x_nchw.dtype),
        grid=(n, n_rt),
        in_specs=[
            pl.BlockSpec((1, 1, cout_p, lo), lambda b, rt: (b, rt, 0, 0)),
            pl.BlockSpec((1, 1, cout_p, 1), lambda b, rt: (0, 0, 0, 0)),
            pl.BlockSpec((1, 1, cout_p, 1), lambda b, rt: (0, 0, 0, 0)),
        ],
        out_specs=pl.BlockSpec((1, 1, cout_p, lo), lambda b, rt: (b, rt, 0, 0)),
        compiler_params=pltpu.CompilerParams(
            dimension_semantics=("parallel", "parallel"),
            vmem_limit_bytes=vmem_limit),
        cost_estimate=pl.CostEstimate(
            flops=2 * n * n_rt * cout_p * lo, transcendentals=0,
            bytes_accessed=n * n_rt * cout_p * lo * 6 + 2 * cout_p * 4),
    )(conv, bn_scale, bn_shift)

    # ---- strip lane/channel padding, reassemble row tiles, back to NCHW ----
    out = out_flat[:, :, :cout, :th * wp].reshape(n, n_rt, cout, th, wp)[..., :ow]
    out = jnp.transpose(out, (0, 2, 1, 3, 4)).reshape(n, cout, n_rt * th, ow)
    return out[:, :, :oh, :]


# ----------------------------- reference (JAX) ------------------------------

def _reference(x_nchw, w_oihw, eps=1e-5):
    """Same math with XLA conv; bf16 operands / f32 accumulation like the kernel."""
    n, cin, h, w = x_nchw.shape
    cout = w_oihw.shape[0]
    scale = cin / cout
    oh = _scale_dimension(h, scale)
    ow = _scale_dimension(w, scale)
    x = _resize_bilinear_align_corners_nchw(x_nchw.astype(jnp.float32), oh, ow)
    x = jnp.maximum(x.astype(jnp.bfloat16), 0)
    conv = jax.lax.conv_general_dilated(
        x, w_oihw.astype(jnp.bfloat16),
        window_strides=(1, 1), padding=((2, 2), (2, 2)),
        dimension_numbers=("NCHW", "OIHW", "NCHW"),
        preferred_element_type=jnp.float32)
    mean = jnp.mean(conv, axis=(0, 2, 3), keepdims=True)
    var = jnp.mean((conv - mean) ** 2, axis=(0, 2, 3), keepdims=True)
    return (conv - mean) * jax.lax.rsqrt(var + eps)


# ---------------------------------- main -------------------------------------

if __name__ == "__main__":
    N, C_IN, H, W = 2, 4, 16, 16
    C_OUT = 8  # scale = C_in / C_out = 0.5 -> 16x16 resized to 8x8

    key = jax.random.PRNGKey(0)
    kx, kw = jax.random.split(key)

    x = jax.random.normal(kx, (N, C_IN, H, W), dtype=jnp.float32)

    # Conv2d weight (C_out, C_in, 5, 5), kaiming_normal_ (fan_in, gain=sqrt(2)).
    fan_in = C_IN * 5 * 5
    std = (2.0 / fan_in) ** 0.5
    w = jax.random.normal(kw, (C_OUT, C_IN, 5, 5), dtype=jnp.float32) * std
    # BatchNorm2d: weight=1, bias=0 (identity affine) -- folded into the kernels.

    out = jax.block_until_ready(relu_conv5_bn(x, w))
    ref = jax.block_until_ready(_reference(x, w))

    assert out.shape == (N, C_OUT, 8, 8), out.shape
    err = float(jnp.max(jnp.abs(out - ref)))
    # bf16 operands + bf16 conv intermediate => compare at bf16-level tolerance.
    assert jnp.allclose(out, ref, atol=2e-2, rtol=2e-2), err

    print("KERNEL_OK")
</pallas_src>

<mosaic_0001>
module attributes {stable_mosaic.version = 11 : i64} {
  func.func @conv_stats_kernel(%arg0: i32, %arg1: i32, %arg2: memref<1x1x8x256xbf16, #tpu.memory_space<vmem>>, %arg3: memref<25x8x8xbf16, #tpu.memory_space<vmem>>, %arg4: memref<1x128xf32, #tpu.memory_space<vmem>>, %arg5: memref<1x1x8x128xbf16, #tpu.memory_space<vmem>>, %arg6: memref<1x1x8x1xf32, #tpu.memory_space<vmem>>, %arg7: memref<1x1x8x1xf32, #tpu.memory_space<vmem>>, %arg8: memref<8x128xf32, #tpu.memory_space<vmem>>) attributes {dimension_semantics = [#tpu.dimension_semantics<parallel>, #tpu.dimension_semantics<parallel>], iteration_bounds = array<i64: 2, 1>, scalar_prefetch = 0 : i64, scratch_operands = 1 : i64, tpu.core_type = #tpu.core_type<tc>, window_params = [{transform_indices = @transform_0, window_bounds = array<i64: 1, 1, 8, 256>}, {pipeline_mode = #tpu.pipeline_mode<synchronous>, transform_indices = @transform_1, window_bounds = array<i64: 25, 8, 8>}, {pipeline_mode = #tpu.pipeline_mode<synchronous>, transform_indices = @transform_2, window_bounds = array<i64: 1, 128>}, {transform_indices = @transform_3, window_bounds = array<i64: 1, 1, 8, 128>}, {transform_indices = @transform_4, window_bounds = array<i64: 1, 1, 8, 1>}, {transform_indices = @transform_5, window_bounds = array<i64: 1, 1, 8, 1>}]} {
    %c0 = arith.constant 0 : index
    %c0_0 = arith.constant 0 : index
    %c0_1 = arith.constant 0 : index
    %c0_2 = arith.constant 0 : index
    %0 = vector.load %arg2[%c0, %c0_0, %c0_1, %c0_2] : memref<1x1x8x256xbf16, #tpu.memory_space<vmem>>, vector<1x1x8x256xbf16>
    %cst = arith.constant 0.000000e+00 : bf16
    %1 = vector.broadcast %cst : bf16 to vector<1x1x8x256xbf16>
    %2 = arith.maximumf %0, %1 : vector<1x1x8x256xbf16>
    %3 = vector.shape_cast %2 : vector<1x1x8x256xbf16> to vector<8x256xbf16>
    %cst_3 = arith.constant 0.000000e+00 : f32
    %4 = vector.broadcast %cst_3 : f32 to vector<8x128xf32>
    %c0_4 = arith.constant 0 : index
    %c0_5 = arith.constant 0 : index
    %5 = vector.load %arg8[%c0_4, %c0_5] : memref<8x128xf32, #tpu.memory_space<vmem>>, vector<8x128xf32>
    tpu.vector_store %arg8[%c0_4, %c0_5], %4 {strides = array<i32>} : memref<8x128xf32, #tpu.memory_space<vmem>>, vector<8x128xf32>,
    %c0_6 = arith.constant 0 : index
    %c0_7 = arith.constant 0 : index
    %6 = vector.load %arg8[%c0_6, %c0_7] : memref<8x128xf32, #tpu.memory_space<vmem>>, vector<8x128xf32>
    %c0_8 = arith.constant 0 : index
    %c0_9 = arith.constant 0 : index
    %c0_10 = arith.constant 0 : index
    %7 = vector.load %arg3[%c0_8, %c0_9, %c0_10] : memref<25x8x8xbf16, #tpu.memory_space<vmem>>, vector<1x8x8xbf16>
    %8 = vector.shape_cast %7 : vector<1x8x8xbf16> to vector<8x8xbf16>
    %9 = vector.extract_strided_slice %3 {offsets = [0, 0], sizes = [8, 128], strides = [1, 1]} : vector<8x256xbf16> to vector<8x128xbf16>
    %cst_11 = arith.constant dense<0.000000e+00> : vector<8x128xf32>
    %10 = tpu.matmul %8, %9, %cst_11 {dimension_numbers = #tpu.dot_dimension_numbers<[1], [0], [0], [1], [0, 0, 1, 1], [], []>} : vector<8x8xbf16>, vector<8x128xbf16>, vector<8x128xf32> -> vector<8x128xf32>
    %11 = arith.addf %6, %10 : vector<8x128xf32>
    %c0_12 = arith.constant 0 : index
    %c0_13 = arith.constant 0 : index
    %12 = vector.load %arg8[%c0_12, %c0_13] : memref<8x128xf32, #tpu.memory_space<vmem>>, vector<8x128xf32>
    tpu.vector_store %arg8[%c0_12, %c0_13], %11 {strides = array<i32>} : memref<8x128xf32, #tpu.memory_space<vmem>>, vector<8x128xf32>,
    %c0_14 = arith.constant 0 : index
    %c0_15 = arith.constant 0 : index
    %13 = vector.load %arg8[%c0_14, %c0_15] : memref<8x128xf32, #tpu.memory_space<vmem>>, vector<8x128xf32>
    %c1 = arith.constant 1 : index
    %c0_16 = arith.constant 0 : index
    %c0_17 = arith.constant 0 : index
    %14 = vector.load %arg3[%c1, %c0_16, %c0_17] : memref<25x8x8xbf16, #tpu.memory_space<vmem>>, vector<1x8x8xbf16>
    %15 = vector.shape_cast %14 : vector<1x8x8xbf16> to vector<8x8xbf16>
    %16 = vector.extract_strided_slice %3 {offsets = [0, 1], sizes = [8, 128], strides = [1, 1]} : vector<8x256xbf16> to vector<8x128xbf16>
    %cst_18 = arith.constant dense<0.000000e+00> : vector<8x128xf32>
    %17 = tpu.matmul %15, %16, %cst_18 {dimension_numbers = #tpu.dot_dimension_numbers<[1], [0], [0], [1], [0, 0, 1, 1], [], []>} : vector<8x8xbf16>, vector<8x128xbf16>, vector<8x128xf32> -> vector<8x128xf32>
    %18 = arith.addf %13, %17 : vector<8x128xf32>
    %c0_19 = arith.constant 0 : index
    %c0_20 = arith.constant 0 : index
    %19 = vector.load %arg8[%c0_19, %c0_20] : memref<8x128xf32, #tpu.memory_space<vmem>>, vector<8x128xf32>
    tpu.vector_store %arg8[%c0_19, %c0_20], %18 {strides = array<i32>} : memref<8x128xf32, #tpu.memory_space<vmem>>, vector<8x128xf32>,
    %c0_21 = arith.constant 0 : index
    %c0_22 = arith.constant 0 : index
    %20 = vector.load %arg8[%c0_21, %c0_22] : memref<8x128xf32, #tpu.memory_space<vmem>>, vector<8x128xf32>
    %c2 = arith.constant 2 : index
    %c0_23 = arith.constant 0 : index
    %c0_24 = arith.constant 0 : index
    %21 = vector.load %arg3[%c2, %c0_23, %c0_24] : memref<25x8x8xbf16, #tpu.memory_space<vmem>>, vector<1x8x8xbf16>
    %22 = vector.shape_cast %21 : vector<1x8x8xbf16> to vector<8x8xbf16>
    %23 = vector.extract_strided_slice %3 {offsets = [0, 2], sizes = [8, 128], strides = [1, 1]} : vector<8x256xbf16> to vector<8x128xbf16>
    %cst_25 = arith.constant dense<0.000000e+00> : vector<8x128xf32>
    %24 = tpu.matmul %22, %23, %cst_25 {dimension_numbers = #tpu.dot_dimension_numbers<[1], [0], [0], [1], [0, 0, 1, 1], [], []>} : vector<8x8xbf16>, vector<8x128xbf16>, vector<8x128xf32> -> vector<8x128xf32>
    %25 = arith.addf %20, %24 : vector<8x128xf32>
    %c0_26 = arith.constant 0 : index
    %c0_27 = arith.constant 0 : index
    %26 = vector.load %arg8[%c0_26, %c0_27] : memref<8x128xf32, #tpu.memory_space<vmem>>, vector<8x128xf32>
    tpu.vector_store %arg8[%c0_26, %c0_27], %25 {strides = array<i32>} : memref<8x128xf32, #tpu.memory_space<vmem>>, vector<8x128xf32>,
    %c0_28 = arith.constant 0 : index
    %c0_29 = arith.constant 0 : index
    %27 = vector.load %arg8[%c0_28, %c0_29] : memref<8x128xf32, #tpu.memory_space<vmem>>, vector<8x128xf32>
    %c3 = arith.constant 3 : index
    %c0_30 = arith.constant 0 : index
    %c0_31 = arith.constant 0 : index
    %28 = vector.load %arg3[%c3, %c0_30, %c0_31] : memref<25x8x8xbf16, #tpu.memory_space<vmem>>, vector<1x8x8xbf16>
    %29 = vector.shape_cast %28 : vector<1x8x8xbf16> to vector<8x8xbf16>
    %30 = vector.extract_strided_slice %3 {offsets = [0, 3], sizes = [8, 128], strides = [1, 1]} : vector<8x256xbf16> to vector<8x128xbf16>
    %cst_32 = arith.constant dense<0.000000e+00> : vector<8x128xf32>
    %31 = tpu.matmul %29, %30, %cst_32 {dimension_numbers = #tpu.dot_dimension_numbers<[1], [0], [0], [1], [0, 0, 1, 1], [], []>} : vector<8x8xbf16>, vector<8x128xbf16>, vector<8x128xf32> -> vector<8x128xf32>
    %32 = arith.addf %27, %31 : vector<8x128xf32>
    %c0_33 = arith.constant 0 : index
    %c0_34 = arith.constant 0 : index
    %33 = vector.load %arg8[%c0_33, %c0_34] : memref<8x128xf32, #tpu.memory_space<vmem>>, vector<8x128xf32>
    tpu.vector_store %arg8[%c0_33, %c0_34], %32 {strides = array<i32>} : memref<8x128xf32, #tpu.memory_space<vmem>>, vector<8x128xf32>,
    %c0_35 = arith.constant 0 : index
    %c0_36 = arith.constant 0 : index
    %34 = vector.load %arg8[%c0_35, %c0_36] : memref<8x128xf32, #tpu.memory_space<vmem>>, vector<8x128xf32>
    %c4 = arith.constant 4 : index
    %c0_37 = arith.constant 0 : index
    %c0_38 = arith.constant 0 : index
    %35 = vector.load %arg3[%c4, %c0_37, %c0_38] : memref<25x8x8xbf16, #tpu.memory_space<vmem>>, vector<1x8x8xbf16>
    %36 = vector.shape_cast %35 : vector<1x8x8xbf16> to vector<8x8xbf16>
    %37 = vector.extract_strided_slice %3 {offsets = [0, 4], sizes = [8, 128], strides = [1, 1]} : vector<8x256xbf16> to vector<8x128xbf16>
    %cst_39 = arith.constant dense<0.000000e+00> : vector<8x128xf32>
    %38 = tpu.matmul %36, %37, %cst_39 {dimension_numbers = #tpu.dot_dimension_numbers<[1], [0], [0], [1], [0, 0, 1, 1], [], []>} : vector<8x8xbf16>, vector<8x128xbf16>, vector<8x128xf32> -> vector<8x128xf32>
    %39 = arith.addf %34, %38 : vector<8x128xf32>
    %c0_40 = arith.constant 0 : index
    %c0_41 = arith.constant 0 : index
    %40 = vector.load %arg8[%c0_40, %c0_41] : memref<8x128xf32, #tpu.memory_space<vmem>>, vector<8x128xf32>
    tpu.vector_store %arg8[%c0_40, %c0_41], %39 {strides = array<i32>} : memref<8x128xf32, #tpu.memory_space<vmem>>, vector<8x128xf32>,
    %c0_42 = arith.constant 0 : index
    %c0_43 = arith.constant 0 : index
    %41 = vector.load %arg8[%c0_42, %c0_43] : memref<8x128xf32, #tpu.memory_space<vmem>>, vector<8x128xf32>
    %c5 = arith.constant 5 : index
    %c0_44 = arith.constant 0 : index
    %c0_45 = arith.constant 0 : index
    %42 = vector.load %arg3[%c5, %c0_44, %c0_45] : memref<25x8x8xbf16, #tpu.memory_space<vmem>>, vector<1x8x8xbf16>
    %43 = vector.shape_cast %42 : vector<1x8x8xbf16> to vector<8x8xbf16>
    %44 = vector.extract_strided_slice %3 {offsets = [0, 12], sizes = [8, 128], strides = [1, 1]} : vector<8x256xbf16> to vector<8x128xbf16>
    %cst_46 = arith.constant dense<0.000000e+00> : vector<8x128xf32>
    %45 = tpu.matmul %43, %44, %cst_46 {dimension_numbers = #tpu.dot_dimension_numbers<[1], [0], [0], [1], [0, 0, 1, 1], [], []>} : vector<8x8xbf16>, vector<8x128xbf16>, vector<8x128xf32> -> vector<8x128xf32>
    %46 = arith.addf %41, %45 : vector<8x128xf32>
    %c0_47 = arith.constant 0 : index
    %c0_48 = arith.constant 0 : index
    %47 = vector.load %arg8[%c0_47, %c0_48] : memref<8x128xf32, #tpu.memory_space<vmem>>, vector<8x128xf32>
    tpu.vector_store %arg8[%c0_47, %c0_48], %46 {strides = array<i32>} : memref<8x128xf32, #tpu.memory_space<vmem>>, vector<8x128xf32>,
    %c0_49 = arith.constant 0 : index
    %c0_50 = arith.constant 0 : index
    %48 = vector.load %arg8[%c0_49, %c0_50] : memref<8x128xf32, #tpu.memory_space<vmem>>, vector<8x128xf32>
    %c6 = arith.constant 6 : index
    %c0_51 = arith.constant 0 : index
    %c0_52 = arith.constant 0 : index
    %49 = vector.load %arg3[%c6, %c0_51, %c0_52] : memref<25x8x8xbf16, #tpu.memory_space<vmem>>, vector<1x8x8xbf16>
    %50 = vector.shape_cast %49 : vector<1x8x8xbf16> to vector<8x8xbf16>
    %51 = vector.extract_strided_slice %3 {offsets = [0, 13], sizes = [8, 128], strides = [1, 1]} : vector<8x256xbf16> to vector<8x128xbf16>
    %cst_53 = arith.constant dense<0.000000e+00> : vector<8x128xf32>
    %52 = tpu.matmul %50, %51, %cst_53 {dimension_numbers = #tpu.dot_dimension_numbers<[1], [0], [0], [1], [0, 0, 1, 1], [], []>} : vector<8x8xbf16>, vector<8x128xbf16>, vector<8x128xf32> -> vector<8x128xf32>
    %53 = arith.addf %48, %52 : vector<8x128xf32>
    %c0_54 = arith.constant 0 : index
    %c0_55 = arith.constant 0 : index
    %54 = vector.load %arg8[%c0_54, %c0_55] : memref<8x128xf32, #tpu.memory_space<vmem>>, vector<8x128xf32>
    tpu.vector_store %arg8[%c0_54, %c0_55], %53 {strides = array<i32>} : memref<8x128xf32, #tpu.memory_space<vmem>>, vector<8x128xf32>,
    %c0_56 = arith.constant 0 : index
    %c0_57 = arith.constant 0 : index
    %55 = vector.load %arg8[%c0_56, %c0_57] : memref<8x128xf32, #tpu.memory_space<vmem>>, vector<8x128xf32>
    %c7 = arith.constant 7 : index
    %c0_58 = arith.constant 0 : index
    %c0_59 = arith.constant 0 : index
    %56 = vector.load %arg3[%c7, %c0_58, %c0_59] : memref<25x8x8xbf16, #tpu.memory_space<vmem>>, vector<1x8x8xbf16>
    %57 = vector.shape_cast %56 : vector<1x8x8xbf16> to vector<8x8xbf16>
    %58 = vector.extract_strided_slice %3 {offsets = [0, 14], sizes = [8, 128], strides = [1, 1]} : vector<8x256xbf16> to vector<8x128xbf16>
    %cst_60 = arith.constant dense<0.000000e+00> : vector<8x128xf32>
    %59 = tpu.matmul %57, %58, %cst_60 {dimension_numbers = #tpu.dot_dimension_numbers<[1], [0], [0], [1], [0, 0, 1, 1], [], []>} : vector<8x8xbf16>, vector<8x128xbf16>, vector<8x128xf32> -> vector<8x128xf32>
    %60 = arith.addf %55, %59 : vector<8x128xf32>
    %c0_61 = arith.constant 0 : index
    %c0_62 = arith.constant 0 : index
    %61 = vector.load %arg8[%c0_61, %c0_62] : memref<8x128xf32, #tpu.memory_space<vmem>>, vector<8x128xf32>
    tpu.vector_store %arg8[%c0_61, %c0_62], %60 {strides = array<i32>} : memref<8x128xf32, #tpu.memory_space<vmem>>, vector<8x128xf32>,
    %c0_63 = arith.constant 0 : index
    %c0_64 = arith.constant 0 : index
    %62 = vector.load %arg8[%c0_63, %c0_64] : memref<8x128xf32, #tpu.memory_space<vmem>>, vector<8x128xf32>
    %c8 = arith.constant 8 : index
    %c0_65 = arith.constant 0 : index
    %c0_66 = arith.constant 0 : index
    %63 = vector.load %arg3[%c8, %c0_65, %c0_66] : memref<25x8x8xbf16, #tpu.memory_space<vmem>>, vector<1x8x8xbf16>
    %64 = vector.shape_cast %63 : vector<1x8x8xbf16> to vector<8x8xbf16>
    %65 = vector.extract_strided_slice %3 {offsets = [0, 15], sizes = [8, 128], strides = [1, 1]} : vector<8x256xbf16> to vector<8x128xbf16>
    %cst_67 = arith.constant dense<0.000000e+00> : vector<8x128xf32>
    %66 = tpu.matmul %64, %65, %cst_67 {dimension_numbers = #tpu.dot_dimension_numbers<[1], [0], [0], [1], [0, 0, 1, 1], [], []>} : vector<8x8xbf16>, vector<8x128xbf16>, vector<8x128xf32> -> vector<8x128xf32>
    %67 = arith.addf %62, %66 : vector<8x128xf32>
    %c0_68 = arith.constant 0 : index
    %c0_69 = arith.constant 0 : index
    %68 = vector.load %arg8[%c0_68, %c0_69] : memref<8x128xf32, #tpu.memory_space<vmem>>, vector<8x128xf32>
    tpu.vector_store %arg8[%c0_68, %c0_69], %67 {strides = array<i32>} : memref<8x128xf32, #tpu.memory_space<vmem>>, vector<8x128xf32>,
    %c0_70 = arith.constant 0 : index
    %c0_71 = arith.constant 0 : index
    %69 = vector.load %arg8[%c0_70, %c0_71] : memref<8x128xf32, #tpu.memory_space<vmem>>, vector<8x128xf32>
    %c9 = arith.constant 9 : index
    %c0_72 = arith.constant 0 : index
    %c0_73 = arith.constant 0 : index
    %70 = vector.load %arg3[%c9, %c0_72, %c0_73] : memref<25x8x8xbf16, #tpu.memory_space<vmem>>, vector<1x8x8xbf16>
    %71 = vector.shape_cast %70 : vector<1x8x8xbf16> to vector<8x8xbf16>
    %72 = vector.extract_strided_slice %3 {offsets = [0, 16], sizes = [8, 128], strides = [1, 1]} : vector<8x256xbf16> to vector<8x128xbf16>
    %cst_74 = arith.constant dense<0.000000e+00> : vector<8x128xf32>
    %73 = tpu.matmul %71, %72, %cst_74 {dimension_numbers = #tpu.dot_dimension_numbers<[1], [0], [0], [1], [0, 0, 1, 1], [], []>} : vector<8x8xbf16>, vector<8x128xbf16>, vector<8x128xf32> -> vector<8x128xf32>
    %74 = arith.addf %69, %73 : vector<8x128xf32>
    %c0_75 = arith.constant 0 : index
    %c0_76 = arith.constant 0 : index
    %75 = vector.load %arg8[%c0_75, %c0_76] : memref<8x128xf32, #tpu.memory_space<vmem>>, vector<8x128xf32>
    tpu.vector_store %arg8[%c0_75, %c0_76], %74 {strides = array<i32>} : memref<8x128xf32, #tpu.memory_space<vmem>>, vector<8x128xf32>,
    %c0_77 = arith.constant 0 : index
    %c0_78 = arith.constant 0 : index
    %76 = vector.load %arg8[%c0_77, %c0_78] : memref<8x128xf32, #tpu.memory_space<vmem>>, vector<8x128xf32>
    %c10 = arith.constant 10 : index
    %c0_79 = arith.constant 0 : index
    %c0_80 = arith.constant 0 : index
    %77 = vector.load %arg3[%c10, %c0_79, %c0_80] : memref<25x8x8xbf16, #tpu.memory_space<vmem>>, vector<1x8x8xbf16>
    %78 = vector.shape_cast %77 : vector<1x8x8xbf16> to vector<8x8xbf16>
    %79 = vector.extract_strided_slice %3 {offsets = [0, 24], sizes = [8, 128], strides = [1, 1]} : vector<8x256xbf16> to vector<8x128xbf16>
    %cst_81 = arith.constant dense<0.000000e+00> : vector<8x128xf32>
    %80 = tpu.matmul %78, %79, %cst_81 {dimension_numbers = #tpu.dot_dimension_numbers<[1], [0], [0], [1], [0, 0, 1, 1], [], []>} : vector<8x8xbf16>, vector<8x128xbf16>, vector<8x128xf32> -> vector<8x128xf32>
    %81 = arith.addf %76, %80 : vector<8x128xf32>
    %c0_82 = arith.constant 0 : index
    %c0_83 = arith.constant 0 : index
    %82 = vector.load %arg8[%c0_82, %c0_83] : memref<8x128xf32, #tpu.memory_space<vmem>>, vector<8x128xf32>
    tpu.vector_store %arg8[%c0_82, %c0_83], %81 {strides = array<i32>} : memref<8x128xf32, #tpu.memory_space<vmem>>, vector<8x128xf32>,
    %c0_84 = arith.constant 0 : index
    %c0_85 = arith.constant 0 : index
    %83 = vector.load %arg8[%c0_84, %c0_85] : memref<8x128xf32, #tpu.memory_space<vmem>>, vector<8x128xf32>
    %c11 = arith.constant 11 : index
    %c0_86 = arith.constant 0 : index
    %c0_87 = arith.constant 0 : index
    %84 = vector.load %arg3[%c11, %c0_86, %c0_87] : memref<25x8x8xbf16, #tpu.memory_space<vmem>>, vector<1x8x8xbf16>
    %85 = vector.shape_cast %84 : vector<1x8x8xbf16> to vector<8x8xbf16>
    %86 = vector.extract_strided_slice %3 {offsets = [0, 25], sizes = [8, 128], strides = [1, 1]} : vector<8x256xbf16> to vector<8x128xbf16>
    %cst_88 = arith.constant dense<0.000000e+00> : vector<8x128xf32>
    %87 = tpu.matmul %85, %86, %cst_88 {dimension_numbers = #tpu.dot_dimension_numbers<[1], [0], [0], [1], [0, 0, 1, 1], [], []>} : vector<8x8xbf16>, vector<8x128xbf16>, vector<8x128xf32> -> vector<8x128xf32>
    %88 = arith.addf %83, %87 : vector<8x128xf32>
    %c0_89 = arith.constant 0 : index
    %c0_90 = arith.constant 0 : index
    %89 = vector.load %arg8[%c0_89, %c0_90] : memref<8x128xf32, #tpu.memory_space<vmem>>, vector<8x128xf32>
    tpu.vector_store %arg8[%c0_89, %c0_90], %88 {strides = array<i32>} : memref<8x128xf32, #tpu.memory_space<vmem>>, vector<8x128xf32>,
    %c0_91 = arith.constant 0 : index
    %c0_92 = arith.constant 0 : index
    %90 = vector.load %arg8[%c0_91, %c0_92] : memref<8x128xf32, #tpu.memory_space<vmem>>, vector<8x128xf32>
    %c12 = arith.constant 12 : index
    %c0_93 = arith.constant 0 : index
    %c0_94 = arith.constant 0 : index
    %91 = vector.load %arg3[%c12, %c0_93, %c0_94] : memref<25x8x8xbf16, #tpu.memory_space<vmem>>, vector<1x8x8xbf16>
    %92 = vector.shape_cast %91 : vector<1x8x8xbf16> to vector<8x8xbf16>
    %93 = vector.extract_strided_slice %3 {offsets = [0, 26], sizes = [8, 128], strides = [1, 1]} : vector<8x256xbf16> to vector<8x128xbf16>
    %cst_95 = arith.constant dense<0.000000e+00> : vector<8x128xf32>
    %94 = tpu.matmul %92, %93, %cst_95 {dimension_numbers = #tpu.dot_dimension_numbers<[1], [0], [0], [1], [0, 0, 1, 1], [], []>} : vector<8x8xbf16>, vector<8x128xbf16>, vector<8x128xf32> -> vector<8x128xf32>
    %95 = arith.addf %90, %94 : vector<8x128xf32>
    %c0_96 = arith.constant 0 : index
    %c0_97 = arith.constant 0 : index
    %96 = vector.load %arg8[%c0_96, %c0_97] : memref<8x128xf32, #tpu.memory_space<vmem>>, vector<8x128xf32>
    tpu.vector_store %arg8[%c0_96, %c0_97], %95 {strides = array<i32>} : memref<8x128xf32, #tpu.memory_space<vmem>>, vector<8x128xf32>,
    %c0_98 = arith.constant 0 : index
    %c0_99 = arith.constant 0 : index
    %97 = vector.load %arg8[%c0_98, %c0_99] : memref<8x128xf32, #tpu.memory_space<vmem>>, vector<8x128xf32>
    %c13 = arith.constant 13 : index
    %c0_100 = arith.constant 0 : index
    %c0_101 = arith.constant 0 : index
    %98 = vector.load %arg3[%c13, %c0_100, %c0_101] : memref<25x8x8xbf16, #tpu.memory_space<vmem>>, vector<1x8x8xbf16>
    %99 = vector.shape_cast %98 : vector<1x8x8xbf16> to vector<8x8xbf16>
    %100 = vector.extract_strided_slice %3 {offsets = [0, 27], sizes = [8, 128], strides = [1, 1]} : vector<8x256xbf16> to vector<8x128xbf16>
    %cst_102 = arith.constant dense<0.000000e+00> : vector<8x128xf32>
    %101 = tpu.matmul %99, %100, %cst_102 {dimension_numbers = #tpu.dot_dimension_numbers<[1], [0], [0], [1], [0, 0, 1, 1], [], []>} : vector<8x8xbf16>, vector<8x128xbf16>, vector<8x128xf32> -> vector<8x128xf32>
    %102 = arith.addf %97, %101 : vector<8x128xf32>
    %c0_103 = arith.constant 0 : index
    %c0_104 = arith.constant 0 : index
    %103 = vector.load %arg8[%c0_103, %c0_104] : memref<8x128xf32, #tpu.memory_space<vmem>>, vector<8x128xf32>
    tpu.vector_store %arg8[%c0_103, %c0_104], %102 {strides = array<i32>} : memref<8x128xf32, #tpu.memory_space<vmem>>, vector<8x128xf32>,
    %c0_105 = arith.constant 0 : index
    %c0_106 = arith.constant 0 : index
    %104 = vector.load %arg8[%c0_105, %c0_106] : memref<8x128xf32, #tpu.memory_space<vmem>>, vector<8x128xf32>
    %c14 = arith.constant 14 : index
    %c0_107 = arith.constant 0 : index
    %c0_108 = arith.constant 0 : index
    %105 = vector.load %arg3[%c14, %c0_107, %c0_108] : memref<25x8x8xbf16, #tpu.memory_space<vmem>>, vector<1x8x8xbf16>
    %106 = vector.shape_cast %105 : vector<1x8x8xbf16> to vector<8x8xbf16>
    %107 = vector.extract_strided_slice %3 {offsets = [0, 28], sizes = [8, 128], strides = [1, 1]} : vector<8x256xbf16> to vector<8x128xbf16>
    %cst_109 = arith.constant dense<0.000000e+00> : vector<8x128xf32>
    %108 = tpu.matmul %106, %107, %cst_109 {dimension_numbers = #tpu.dot_dimension_numbers<[1], [0], [0], [1], [0, 0, 1, 1], [], []>} : vector<8x8xbf16>, vector<8x128xbf16>, vector<8x128xf32> -> vector<8x128xf32>
    %109 = arith.addf %104, %108 : vector<8x128xf32>
    %c0_110 = arith.constant 0 : index
    %c0_111 = arith.constant 0 : index
    %110 = vector.load %arg8[%c0_110, %c0_111] : memref<8x128xf32, #tpu.memory_space<vmem>>, vector<8x128xf32>
    tpu.vector_store %arg8[%c0_110, %c0_111], %109 {strides = array<i32>} : memref<8x128xf32, #tpu.memory_space<vmem>>, vector<8x128xf32>,
    %c0_112 = arith.constant 0 : index
    %c0_113 = arith.constant 0 : index
    %111 = vector.load %arg8[%c0_112, %c0_113] : memref<8x128xf32, #tpu.memory_space<vmem>>, vector<8x128xf32>
    %c15 = arith.constant 15 : index
    %c0_114 = arith.constant 0 : index
    %c0_115 = arith.constant 0 : index
    %112 = vector.load %arg3[%c15, %c0_114, %c0_115] : memref<25x8x8xbf16, #tpu.memory_space<vmem>>, vector<1x8x8xbf16>
    %113 = vector.shape_cast %112 : vector<1x8x8xbf16> to vector<8x8xbf16>
    %114 = vector.extract_strided_slice %3 {offsets = [0, 36], sizes = [8, 128], strides = [1, 1]} : vector<8x256xbf16> to vector<8x128xbf16>
    %cst_116 = arith.constant dense<0.000000e+00> : vector<8x128xf32>
    %115 = tpu.matmul %113, %114, %cst_116 {dimension_numbers = #tpu.dot_dimension_numbers<[1], [0], [0], [1], [0, 0, 1, 1], [], []>} : vector<8x8xbf16>, vector<8x128xbf16>, vector<8x128xf32> -> vector<8x128xf32>
    %116 = arith.addf %111, %115 : vector<8x128xf32>
    %c0_117 = arith.constant 0 : index
    %c0_118 = arith.constant 0 : index
    %117 = vector.load %arg8[%c0_117, %c0_118] : memref<8x128xf32, #tpu.memory_space<vmem>>, vector<8x128xf32>
    tpu.vector_store %arg8[%c0_117, %c0_118], %116 {strides = array<i32>} : memref<8x128xf32, #tpu.memory_space<vmem>>, vector<8x128xf32>,
    %c0_119 = arith.constant 0 : index
    %c0_120 = arith.constant 0 : index
    %118 = vector.load %arg8[%c0_119, %c0_120] : memref<8x128xf32, #tpu.memory_space<vmem>>, vector<8x128xf32>
    %c16 = arith.constant 16 : index
    %c0_121 = arith.constant 0 : index
    %c0_122 = arith.constant 0 : index
    %119 = vector.load %arg3[%c16, %c0_121, %c0_122] : memref<25x8x8xbf16, #tpu.memory_space<vmem>>, vector<1x8x8xbf16>
    %120 = vector.shape_cast %119 : vector<1x8x8xbf16> to vector<8x8xbf16>
    %121 = vector.extract_strided_slice %3 {offsets = [0, 37], sizes = [8, 128], strides = [1, 1]} : vector<8x256xbf16> to vector<8x128xbf16>
    %cst_123 = arith.constant dense<0.000000e+00> : vector<8x128xf32>
    %122 = tpu.matmul %120, %121, %cst_123 {dimension_numbers = #tpu.dot_dimension_numbers<[1], [0], [0], [1], [0, 0, 1, 1], [], []>} : vector<8x8xbf16>, vector<8x128xbf16>, vector<8x128xf32> -> vector<8x128xf32>
    %123 = arith.addf %118, %122 : vector<8x128xf32>
    %c0_124 = arith.constant 0 : index
    %c0_125 = arith.constant 0 : index
    %124 = vector.load %arg8[%c0_124, %c0_125] : memref<8x128xf32, #tpu.memory_space<vmem>>, vector<8x128xf32>
    tpu.vector_store %arg8[%c0_124, %c0_125], %123 {strides = array<i32>} : memref<8x128xf32, #tpu.memory_space<vmem>>, vector<8x128xf32>,
    %c0_126 = arith.constant 0 : index
    %c0_127 = arith.constant 0 : index
    %125 = vector.load %arg8[%c0_126, %c0_127] : memref<8x128xf32, #tpu.memory_space<vmem>>, vector<8x128xf32>
    %c17 = arith.constant 17 : index
    %c0_128 = arith.constant 0 : index
    %c0_129 = arith.constant 0 : index
    %126 = vector.load %arg3[%c17, %c0_128, %c0_129] : memref<25x8x8xbf16, #tpu.memory_space<vmem>>, vector<1x8x8xbf16>
    %127 = vector.shape_cast %126 : vector<1x8x8xbf16> to vector<8x8xbf16>
    %128 = vector.extract_strided_slice %3 {offsets = [0, 38], sizes = [8, 128], strides = [1, 1]} : vector<8x256xbf16> to vector<8x128xbf16>
    %cst_130 = arith.constant dense<0.000000e+00> : vector<8x128xf32>
    %129 = tpu.matmul %127, %128, %cst_130 {dimension_numbers = #tpu.dot_dimension_numbers<[1], [0], [0], [1], [0, 0, 1, 1], [], []>} : vector<8x8xbf16>, vector<8x128xbf16>, vector<8x128xf32> -> vector<8x128xf32>
    %130 = arith.addf %125, %129 : vector<8x128xf32>
    %c0_131 = arith.constant 0 : index
    %c0_132 = arith.constant 0 : index
    %131 = vector.load %arg8[%c0_131, %c0_132] : memref<8x128xf32, #tpu.memory_space<vmem>>, vector<8x128xf32>
    tpu.vector_store %arg8[%c0_131, %c0_132], %130 {strides = array<i32>} : memref<8x128xf32, #tpu.memory_space<vmem>>, vector<8x128xf32>,
    %c0_133 = arith.constant 0 : index
    %c0_134 = arith.constant 0 : index
    %132 = vector.load %arg8[%c0_133, %c0_134] : memref<8x128xf32, #tpu.memory_space<vmem>>, vector<8x128xf32>
    %c18 = arith.constant 18 : index
    %c0_135 = arith.constant 0 : index
    %c0_136 = arith.constant 0 : index
    %133 = vector.load %arg3[%c18, %c0_135, %c0_136] : memref<25x8x8xbf16, #tpu.memory_space<vmem>>, vector<1x8x8xbf16>
    %134 = vector.shape_cast %133 : vector<1x8x8xbf16> to vector<8x8xbf16>
    %135 = vector.extract_strided_slice %3 {offsets = [0, 39], sizes = [8, 128], strides = [1, 1]} : vector<8x256xbf16> to vector<8x128xbf16>
    %cst_137 = arith.constant dense<0.000000e+00> : vector<8x128xf32>
    %136 = tpu.matmul %134, %135, %cst_137 {dimension_numbers = #tpu.dot_dimension_numbers<[1], [0], [0], [1], [0, 0, 1, 1], [], []>} : vector<8x8xbf16>, vector<8x128xbf16>, vector<8x128xf32> -> vector<8x128xf32>
    %137 = arith.addf %132, %136 : vector<8x128xf32>
    %c0_138 = arith.constant 0 : index
    %c0_139 = arith.constant 0 : index
    %138 = vector.load %arg8[%c0_138, %c0_139] : memref<8x128xf32, #tpu.memory_space<vmem>>, vector<8x128xf32>
    tpu.vector_store %arg8[%c0_138, %c0_139], %137 {strides = array<i32>} : memref<8x128xf32, #tpu.memory_space<vmem>>, vector<8x128xf32>,
    %c0_140 = arith.constant 0 : index
    %c0_141 = arith.constant 0 : index
    %139 = vector.load %arg8[%c0_140, %c0_141] : memref<8x128xf32, #tpu.memory_space<vmem>>, vector<8x128xf32>
    %c19 = arith.constant 19 : index
    %c0_142 = arith.constant 0 : index
    %c0_143 = arith.constant 0 : index
    %140 = vector.load %arg3[%c19, %c0_142, %c0_143] : memref<25x8x8xbf16, #tpu.memory_space<vmem>>, vector<1x8x8xbf16>
    %141 = vector.shape_cast %140 : vector<1x8x8xbf16> to vector<8x8xbf16>
    %142 = vector.extract_strided_slice %3 {offsets = [0, 40], sizes = [8, 128], strides = [1, 1]} : vector<8x256xbf16> to vector<8x128xbf16>
    %cst_144 = arith.constant dense<0.000000e+00> : vector<8x128xf32>
    %143 = tpu.matmul %141, %142, %cst_144 {dimension_numbers = #tpu.dot_dimension_numbers<[1], [0], [0], [1], [0, 0, 1, 1], [], []>} : vector<8x8xbf16>, vector<8x128xbf16>, vector<8x128xf32> -> vector<8x128xf32>
    %144 = arith.addf %139, %143 : vector<8x128xf32>
    %c0_145 = arith.constant 0 : index
    %c0_146 = arith.constant 0 : index
    %145 = vector.load %arg8[%c0_145, %c0_146] : memref<8x128xf32, #tpu.memory_space<vmem>>, vector<8x128xf32>
    tpu.vector_store %arg8[%c0_145, %c0_146], %144 {strides = array<i32>} : memref<8x128xf32, #tpu.memory_space<vmem>>, vector<8x128xf32>,
    %c0_147 = arith.constant 0 : index
    %c0_148 = arith.constant 0 : index
    %146 = vector.load %arg8[%c0_147, %c0_148] : memref<8x128xf32, #tpu.memory_space<vmem>>, vector<8x128xf32>
    %c20 = arith.constant 20 : index
    %c0_149 = arith.constant 0 : index
    %c0_150 = arith.constant 0 : index
    %147 = vector.load %arg3[%c20, %c0_149, %c0_150] : memref<25x8x8xbf16, #tpu.memory_space<vmem>>, vector<1x8x8xbf16>
    %148 = vector.shape_cast %147 : vector<1x8x8xbf16> to vector<8x8xbf16>
    %149 = vector.extract_strided_slice %3 {offsets = [0, 48], sizes = [8, 128], strides = [1, 1]} : vector<8x256xbf16> to vector<8x128xbf16>
    %cst_151 = arith.constant dense<0.000000e+00> : vector<8x128xf32>
    %150 = tpu.matmul %148, %149, %cst_151 {dimension_numbers = #tpu.dot_dimension_numbers<[1], [0], [0], [1], [0, 0, 1, 1], [], []>} : vector<8x8xbf16>, vector<8x128xbf16>, vector<8x128xf32> -> vector<8x128xf32>
    %151 = arith.addf %146, %150 : vector<8x128xf32>
    %c0_152 = arith.constant 0 : index
    %c0_153 = arith.constant 0 : index
    %152 = vector.load %arg8[%c0_152, %c0_153] : memref<8x128xf32, #tpu.memory_space<vmem>>, vector<8x128xf32>
    tpu.vector_store %arg8[%c0_152, %c0_153], %151 {strides = array<i32>} : memref<8x128xf32, #tpu.memory_space<vmem>>, vector<8x128xf32>,
    %c0_154 = arith.constant 0 : index
    %c0_155 = arith.constant 0 : index
    %153 = vector.load %arg8[%c0_154, %c0_155] : memref<8x128xf32, #tpu.memory_space<vmem>>, vector<8x128xf32>
    %c21 = arith.constant 21 : index
    %c0_156 = arith.constant 0 : index
    %c0_157 = arith.constant 0 : index
    %154 = vector.load %arg3[%c21, %c0_156, %c0_157] : memref<25x8x8xbf16, #tpu.memory_space<vmem>>, vector<1x8x8xbf16>
    %155 = vector.shape_cast %154 : vector<1x8x8xbf16> to vector<8x8xbf16>
    %156 = vector.extract_strided_slice %3 {offsets = [0, 49], sizes = [8, 128], strides = [1, 1]} : vector<8x256xbf16> to vector<8x128xbf16>
    %cst_158 = arith.constant dense<0.000000e+00> : vector<8x128xf32>
    %157 = tpu.matmul %155, %156, %cst_158 {dimension_numbers = #tpu.dot_dimension_numbers<[1], [0], [0], [1], [0, 0, 1, 1], [], []>} : vector<8x8xbf16>, vector<8x128xbf16>, vector<8x128xf32> -> vector<8x128xf32>
    %158 = arith.addf %153, %157 : vector<8x128xf32>
    %c0_159 = arith.constant 0 : index
    %c0_160 = arith.constant 0 : index
    %159 = vector.load %arg8[%c0_159, %c0_160] : memref<8x128xf32, #tpu.memory_space<vmem>>, vector<8x128xf32>
    tpu.vector_store %arg8[%c0_159, %c0_160], %158 {strides = array<i32>} : memref<8x128xf32, #tpu.memory_space<vmem>>, vector<8x128xf32>,
    %c0_161 = arith.constant 0 : index
    %c0_162 = arith.constant 0 : index
    %160 = vector.load %arg8[%c0_161, %c0_162] : memref<8x128xf32, #tpu.memory_space<vmem>>, vector<8x128xf32>
    %c22 = arith.constant 22 : index
    %c0_163 = arith.constant 0 : index
    %c0_164 = arith.constant 0 : index
    %161 = vector.load %arg3[%c22, %c0_163, %c0_164] : memref<25x8x8xbf16, #tpu.memory_space<vmem>>, vector<1x8x8xbf16>
    %162 = vector.shape_cast %161 : vector<1x8x8xbf16> to vector<8x8xbf16>
    %163 = vector.extract_strided_slice %3 {offsets = [0, 50], sizes = [8, 128], strides = [1, 1]} : vector<8x256xbf16> to vector<8x128xbf16>
    %cst_165 = arith.constant dense<0.000000e+00> : vector<8x128xf32>
    %164 = tpu.matmul %162, %163, %cst_165 {dimension_numbers = #tpu.dot_dimension_numbers<[1], [0], [0], [1], [0, 0, 1, 1], [], []>} : vector<8x8xbf16>, vector<8x128xbf16>, vector<8x128xf32> -> vector<8x128xf32>
    %165 = arith.addf %160, %164 : vector<8x128xf32>
    %c0_166 = arith.constant 0 : index
    %c0_167 = arith.constant 0 : index
    %166 = vector.load %arg8[%c0_166, %c0_167] : memref<8x128xf32, #tpu.memory_space<vmem>>, vector<8x128xf32>
    tpu.vector_store %arg8[%c0_166, %c0_167], %165 {strides = array<i32>} : memref<8x128xf32, #tpu.memory_space<vmem>>, vector<8x128xf32>,
    %c0_168 = arith.constant 0 : index
    %c0_169 = arith.constant 0 : index
    %167 = vector.load %arg8[%c0_168, %c0_169] : memref<8x128xf32, #tpu.memory_space<vmem>>, vector<8x128xf32>
    %c23 = arith.constant 23 : index
    %c0_170 = arith.constant 0 : index
    %c0_171 = arith.constant 0 : index
    %168 = vector.load %arg3[%c23, %c0_170, %c0_171] : memref<25x8x8xbf16, #tpu.memory_space<vmem>>, vector<1x8x8xbf16>
    %169 = vector.shape_cast %168 : vector<1x8x8xbf16> to vector<8x8xbf16>
    %170 = vector.extract_strided_slice %3 {offsets = [0, 51], sizes = [8, 128], strides = [1, 1]} : vector<8x256xbf16> to vector<8x128xbf16>
    %cst_172 = arith.constant dense<0.000000e+00> : vector<8x128xf32>
    %171 = tpu.matmul %169, %170, %cst_172 {dimension_numbers = #tpu.dot_dimension_numbers<[1], [0], [0], [1], [0, 0, 1, 1], [], []>} : vector<8x8xbf16>, vector<8x128xbf16>, vector<8x128xf32> -> vector<8x128xf32>
    %172 = arith.addf %167, %171 : vector<8x128xf32>
    %c0_173 = arith.constant 0 : index
    %c0_174 = arith.constant 0 : index
    %173 = vector.load %arg8[%c0_173, %c0_174] : memref<8x128xf32, #tpu.memory_space<vmem>>, vector<8x128xf32>
    tpu.vector_store %arg8[%c0_173, %c0_174], %172 {strides = array<i32>} : memref<8x128xf32, #tpu.memory_space<vmem>>, vector<8x128xf32>,
    %c0_175 = arith.constant 0 : index
    %c0_176 = arith.constant 0 : index
    %174 = vector.load %arg8[%c0_175, %c0_176] : memref<8x128xf32, #tpu.memory_space<vmem>>, vector<8x128xf32>
    %c24 = arith.constant 24 : index
    %c0_177 = arith.constant 0 : index
    %c0_178 = arith.constant 0 : index
    %175 = vector.load %arg3[%c24, %c0_177, %c0_178] : memref<25x8x8xbf16, #tpu.memory_space<vmem>>, vector<1x8x8xbf16>
    %176 = vector.shape_cast %175 : vector<1x8x8xbf16> to vector<8x8xbf16>
    %177 = vector.extract_strided_slice %3 {offsets = [0, 52], sizes = [8, 128], strides = [1, 1]} : vector<8x256xbf16> to vector<8x128xbf16>
    %cst_179 = arith.constant dense<0.000000e+00> : vector<8x128xf32>
    %178 = tpu.matmul %176, %177, %cst_179 {dimension_numbers = #tpu.dot_dimension_numbers<[1], [0], [0], [1], [0, 0, 1, 1], [], []>} : vector<8x8xbf16>, vector<8x128xbf16>, vector<8x128xf32> -> vector<8x128xf32>
    %179 = arith.addf %174, %178 : vector<8x128xf32>
    %c0_180 = arith.constant 0 : index
    %c0_181 = arith.constant 0 : index
    %180 = vector.load %arg8[%c0_180, %c0_181] : memref<8x128xf32, #tpu.memory_space<vmem>>, vector<8x128xf32>
    tpu.vector_store %arg8[%c0_180, %c0_181], %179 {strides = array<i32>} : memref<8x128xf32, #tpu.memory_space<vmem>>, vector<8x128xf32>,
    %c0_182 = arith.constant 0 : index
    %c0_183 = arith.constant 0 : index
    %181 = vector.load %arg8[%c0_182, %c0_183] : memref<8x128xf32, #tpu.memory_space<vmem>>, vector<8x128xf32>
    %182 = arith.truncf %181 : vector<8x128xf32> to vector<8x128xbf16>
    %183 = vector.shape_cast %182 : vector<8x128xbf16> to vector<1x1x8x128xbf16>
    %c0_184 = arith.constant 0 : index
    %c0_185 = arith.constant 0 : index
    %c0_186 = arith.constant 0 : index
    %c0_187 = arith.constant 0 : index
    %184 = vector.load %arg5[%c0_184, %c0_185, %c0_186, %c0_187] : memref<1x1x8x128xbf16, #tpu.memory_space<vmem>>, vector<1x1x8x128xbf16>
    tpu.vector_store %arg5[%c0_184, %c0_185, %c0_186, %c0_187], %183 {strides = array<i32>} : memref<1x1x8x128xbf16, #tpu.memory_space<vmem>>, vector<1x1x8x128xbf16>,
    %c8_i32 = arith.constant 8 : i32
    %185 = arith.muli %arg1, %c8_i32 : i32
    %c8_i32_188 = arith.constant 8 : i32
    %186 = arith.subi %c8_i32_188, %185 : i32
    %c8_i32_189 = arith.constant 8 : i32
    %187 = arith.minsi %c8_i32_189, %186 : i32
    %188 = tpu.iota {dimensions = array<i32: 1>} : vector<1x128xi32>
    %c12_i32 = arith.constant 12 : i32
    %189 = arith.muli %187, %c12_i32 : i32
    %190 = vector.broadcast %189 : i32 to vector<1x128xi32>
    %191 = arith.cmpi slt, %188, %190 : vector<1x128xi32>
    %c0_190 = arith.constant 0 : index
    %c0_191 = arith.constant 0 : index
    %192 = vector.load %arg4[%c0_190, %c0_191] : memref<1x128xf32, #tpu.memory_space<vmem>>, vector<1x128xf32>
    %cst_192 = arith.constant 0.000000e+00 : f32
    %193 = vector.broadcast %cst_192 : f32 to vector<1x128xf32>
    %194 = arith.select %191, %192, %193 : vector<1x128xi1>, vector<1x128xf32>
    %195 = vector.broadcast %194 : vector<1x128xf32> to vector<8x128xf32>
    %196 = arith.mulf %181, %195 : vector<8x128xf32>
    %cst_193 = arith.constant dense<0.000000e+00> : vector<8xf32>
    %197 = vector.multi_reduction <add>, %196, %cst_193 [1] : vector<8x128xf32> to vector<8xf32>
    %198 = vector.shape_cast %197 : vector<8xf32> to vector<8x1xf32>
    %199 = vector.shape_cast %198 : vector<8x1xf32> to vector<1x1x8x1xf32>
    %c0_194 = arith.constant 0 : index
    %c0_195 = arith.constant 0 : index
    %c0_196 = arith.constant 0 : index
    %c0_197 = arith.constant 0 : index
    %200 = vector.load %arg6[%c0_194, %c0_195, %c0_196, %c0_197] : memref<1x1x8x1xf32, #tpu.memory_space<vmem>>, vector<1x1x8x1xf32>
    tpu.vector_store %arg6[%c0_194, %c0_195, %c0_196, %c0_197], %199 {strides = array<i32>} : memref<1x1x8x1xf32, #tpu.memory_space<vmem>>, vector<1x1x8x1xf32>,
    %201 = arith.mulf %196, %181 : vector<8x128xf32>
    %cst_198 = arith.constant dense<0.000000e+00> : vector<8xf32>
    %202 = vector.multi_reduction <add>, %201, %cst_198 [1] : vector<8x128xf32> to vector<8xf32>
    %203 = vector.shape_cast %202 : vector<8xf32> to vector<8x1xf32>
    %204 = vector.shape_cast %203 : vector<8x1xf32> to vector<1x1x8x1xf32>
    %c0_199 = arith.constant 0 : index
    %c0_200 = arith.constant 0 : index
    %c0_201 = arith.constant 0 : index
    %c0_202 = arith.constant 0 : index
    %205 = vector.load %arg7[%c0_199, %c0_200, %c0_201, %c0_202] : memref<1x1x8x1xf32, #tpu.memory_space<vmem>>, vector<1x1x8x1xf32>
    tpu.vector_store %arg7[%c0_199, %c0_200, %c0_201, %c0_202], %204 {strides = array<i32>} : memref<1x1x8x1xf32, #tpu.memory_space<vmem>>, vector<1x1x8x1xf32>,
    return
  }
  func.func @transform_0(%arg0: i32, %arg1: i32) -> (i32, i32, i32, i32) {
    %c0_i32 = arith.constant 0 : i32
    %c0_i32_0 = arith.constant 0 : i32
    %c0_i32_1 = arith.constant 0 : i32
    return %arg0, %arg1, %c0_i32, %c0_i32_0 : i32, i32, i32, i32
  }
  func.func @transform_1(%arg0: i32, %arg1: i32) -> (i32, i32, i32) {
    %c0_i32 = arith.constant 0 : i32
    %c0_i32_0 = arith.constant 0 : i32
    %c0_i32_1 = arith.constant 0 : i32
    %c0_i32_2 = arith.constant 0 : i32
    return %c0_i32, %c0_i32_0, %c0_i32_1 : i32, i32, i32
  }
  func.func @transform_2(%arg0: i32, %arg1: i32) -> (i32, i32) {
    %c0_i32 = arith.constant 0 : i32
    %c0_i32_0 = arith.constant 0 : i32
    %c0_i32_1 = arith.constant 0 : i32
    return %c0_i32, %c0_i32_0 : i32, i32
  }
  func.func @transform_3(%arg0: i32, %arg1: i32) -> (i32, i32, i32, i32) {
    %c0_i32 = arith.constant 0 : i32
    %c0_i32_0 = arith.constant 0 : i32
    %c0_i32_1 = arith.constant 0 : i32
    return %arg0, %arg1, %c0_i32, %c0_i32_0 : i32, i32, i32, i32
  }
  func.func @transform_4(%arg0: i32, %arg1: i32) -> (i32, i32, i32, i32) {
    %c0_i32 = arith.constant 0 : i32
    %c0_i32_0 = arith.constant 0 : i32
    %c0_i32_1 = arith.constant 0 : i32
    return %arg0, %arg1, %c0_i32, %c0_i32_0 : i32, i32, i32, i32
  }
  func.func @transform_5(%arg0: i32, %arg1: i32) -> (i32, i32, i32, i32) {
    %c0_i32 = arith.constant 0 : i32
    %c0_i32_0 = arith.constant 0 : i32
    %c0_i32_1 = arith.constant 0 : i32
    return %arg0, %arg1, %c0_i32, %c0_i32_0 : i32, i32, i32, i32
  }
}

module attributes {stable_mosaic.version = 11 : i64} {
  func.func @conv_stats_kernel(%arg0: i32, %arg1: i32, %arg2: memref<1x1x8x256xbf16, #tpu.memory_space<vmem>>, %arg3: memref<25x8x8xbf16, #tpu.memory_space<vmem>>, %arg4: memref<1x128xf32, #tpu.memory_space<vmem>>, %arg5: memref<1x1x8x128xbf16, #tpu.memory_space<vmem>>, %arg6: memref<1x1x8x1xf32, #tpu.memory_space<vmem>>, %arg7: memref<1x1x8x1xf32, #tpu.memory_space<vmem>>, %arg8: memref<8x128xf32, #tpu.memory_space<vmem>>) attributes {dimension_semantics = [#tpu.dimension_semantics<parallel>, #tpu.dimension_semantics<parallel>], iteration_bounds = array<i64: 2, 1>, scalar_prefetch = 0 : i64, scratch_operands = 1 : i64, tpu.core_type = #tpu.core_type<tc>, window_params = [{transform_indices = @transform_0, window_bounds = array<i64: 1, 1, 8, 256>}, {pipeline_mode = #tpu.pipeline_mode<synchronous>, transform_indices = @transform_1, window_bounds = array<i64: 25, 8, 8>}, {pipeline_mode = #tpu.pipeline_mode<synchronous>, transform_indices = @transform_2, window_bounds = array<i64: 1, 128>}, {transform_indices = @transform_3, window_bounds = array<i64: 1, 1, 8, 128>}, {transform_indices = @transform_4, window_bounds = array<i64: 1, 1, 8, 1>}, {transform_indices = @transform_5, window_bounds = array<i64: 1, 1, 8, 1>}]} {
    %c0 = arith.constant 0 : index
    %c0_0 = arith.constant 0 : index
    %c0_1 = arith.constant 0 : index
    %c0_2 = arith.constant 0 : index
    %0 = vector.load %arg2[%c0, %c0_0, %c0_1, %c0_2] : memref<1x1x8x256xbf16, #tpu.memory_space<vmem>>, vector<1x1x8x256xbf16>
    %cst = arith.constant 0.000000e+00 : bf16
    %1 = vector.broadcast %cst : bf16 to vector<1x1x8x256xbf16>
    %2 = arith.maximumf %0, %1 : vector<1x1x8x256xbf16>
    %3 = vector.shape_cast %2 : vector<1x1x8x256xbf16> to vector<8x256xbf16>
    %cst_3 = arith.constant 0.000000e+00 : f32
    %4 = vector.broadcast %cst_3 : f32 to vector<8x128xf32>
    %c0_4 = arith.constant 0 : index
    %c0_5 = arith.constant 0 : index
    %5 = vector.load %arg8[%c0_4, %c0_5] : memref<8x128xf32, #tpu.memory_space<vmem>>, vector<8x128xf32>
    tpu.vector_store %arg8[%c0_4, %c0_5], %4 {strides = array<i32>} : memref<8x128xf32, #tpu.memory_space<vmem>>, vector<8x128xf32>,
    %c0_6 = arith.constant 0 : index
    %c0_7 = arith.constant 0 : index
    %6 = vector.load %arg8[%c0_6, %c0_7] : memref<8x128xf32, #tpu.memory_space<vmem>>, vector<8x128xf32>
    %c0_8 = arith.constant 0 : index
    %c0_9 = arith.constant 0 : index
    %c0_10 = arith.constant 0 : index
    %7 = vector.load %arg3[%c0_8, %c0_9, %c0_10] : memref<25x8x8xbf16, #tpu.memory_space<vmem>>, vector<1x8x8xbf16>
    %8 = vector.shape_cast %7 : vector<1x8x8xbf16> to vector<8x8xbf16>
    %9 = vector.extract_strided_slice %3 {offsets = [0, 0], sizes = [8, 128], strides = [1, 1]} : vector<8x256xbf16> to vector<8x128xbf16>
    %cst_11 = arith.constant dense<0.000000e+00> : vector<8x128xf32>
    %10 = tpu.matmul %8, %9, %cst_11 {dimension_numbers = #tpu.dot_dimension_numbers<[1], [0], [0], [1], [0, 0, 1, 1], [], []>} : vector<8x8xbf16>, vector<8x128xbf16>, vector<8x128xf32> -> vector<8x128xf32>
    %11 = arith.addf %6, %10 : vector<8x128xf32>
    %c0_12 = arith.constant 0 : index
    %c0_13 = arith.constant 0 : index
    %12 = vector.load %arg8[%c0_12, %c0_13] : memref<8x128xf32, #tpu.memory_space<vmem>>, vector<8x128xf32>
    tpu.vector_store %arg8[%c0_12, %c0_13], %11 {strides = array<i32>} : memref<8x128xf32, #tpu.memory_space<vmem>>, vector<8x128xf32>,
    %c0_14 = arith.constant 0 : index
    %c0_15 = arith.constant 0 : index
    %13 = vector.load %arg8[%c0_14, %c0_15] : memref<8x128xf32, #tpu.memory_space<vmem>>, vector<8x128xf32>
    %c1 = arith.constant 1 : index
    %c0_16 = arith.constant 0 : index
    %c0_17 = arith.constant 0 : index
    %14 = vector.load %arg3[%c1, %c0_16, %c0_17] : memref<25x8x8xbf16, #tpu.memory_space<vmem>>, vector<1x8x8xbf16>
    %15 = vector.shape_cast %14 : vector<1x8x8xbf16> to vector<8x8xbf16>
    %16 = vector.extract_strided_slice %3 {offsets = [0, 1], sizes = [8, 128], strides = [1, 1]} : vector<8x256xbf16> to vector<8x128xbf16>
    %cst_18 = arith.constant dense<0.000000e+00> : vector<8x128xf32>
    %17 = tpu.matmul %15, %16, %cst_18 {dimension_numbers = #tpu.dot_dimension_numbers<[1], [0], [0], [1], [0, 0, 1, 1], [], []>} : vector<8x8xbf16>, vector<8x128xbf16>, vector<8x128xf32> -> vector<8x128xf32>
    %18 = arith.addf %13, %17 : vector<8x128xf32>
    %c0_19 = arith.constant 0 : index
    %c0_20 = arith.constant 0 : index
    %19 = vector.load %arg8[%c0_19, %c0_20] : memref<8x128xf32, #tpu.memory_space<vmem>>, vector<8x128xf32>
    tpu.vector_store %arg8[%c0_19, %c0_20], %18 {strides = array<i32>} : memref<8x128xf32, #tpu.memory_space<vmem>>, vector<8x128xf32>,
    %c0_21 = arith.constant 0 : index
    %c0_22 = arith.constant 0 : index
    %20 = vector.load %arg8[%c0_21, %c0_22] : memref<8x128xf32, #tpu.memory_space<vmem>>, vector<8x128xf32>
    %c2 = arith.constant 2 : index
    %c0_23 = arith.constant 0 : index
    %c0_24 = arith.constant 0 : index
    %21 = vector.load %arg3[%c2, %c0_23, %c0_24] : memref<25x8x8xbf16, #tpu.memory_space<vmem>>, vector<1x8x8xbf16>
    %22 = vector.shape_cast %21 : vector<1x8x8xbf16> to vector<8x8xbf16>
    %23 = vector.extract_strided_slice %3 {offsets = [0, 2], sizes = [8, 128], strides = [1, 1]} : vector<8x256xbf16> to vector<8x128xbf16>
    %cst_25 = arith.constant dense<0.000000e+00> : vector<8x128xf32>
    %24 = tpu.matmul %22, %23, %cst_25 {dimension_numbers = #tpu.dot_dimension_numbers<[1], [0], [0], [1], [0, 0, 1, 1], [], []>} : vector<8x8xbf16>, vector<8x128xbf16>, vector<8x128xf32> -> vector<8x128xf32>
    %25 = arith.addf %20, %24 : vector<8x128xf32>
    %c0_26 = arith.constant 0 : index
    %c0_27 = arith.constant 0 : index
    %26 = vector.load %arg8[%c0_26, %c0_27] : memref<8x128xf32, #tpu.memory_space<vmem>>, vector<8x128xf32>
    tpu.vector_store %arg8[%c0_26, %c0_27], %25 {strides = array<i32>} : memref<8x128xf32, #tpu.memory_space<vmem>>, vector<8x128xf32>,
    %c0_28 = arith.constant 0 : index
    %c0_29 = arith.constant 0 : index
    %27 = vector.load %arg8[%c0_28, %c0_29] : memref<8x128xf32, #tpu.memory_space<vmem>>, vector<8x128xf32>
    %c3 = arith.constant 3 : index
    %c0_30 = arith.constant 0 : index
    %c0_31 = arith.constant 0 : index
    %28 = vector.load %arg3[%c3, %c0_30, %c0_31] : memref<25x8x8xbf16, #tpu.memory_space<vmem>>, vector<1x8x8xbf16>
    %29 = vector.shape_cast %28 : vector<1x8x8xbf16> to vector<8x8xbf16>
    %30 = vector.extract_strided_slice %3 {offsets = [0, 3], sizes = [8, 128], strides = [1, 1]} : vector<8x256xbf16> to vector<8x128xbf16>
    %cst_32 = arith.constant dense<0.000000e+00> : vector<8x128xf32>
    %31 = tpu.matmul %29, %30, %cst_32 {dimension_numbers = #tpu.dot_dimension_numbers<[1], [0], [0], [1], [0, 0, 1, 1], [], []>} : vector<8x8xbf16>, vector<8x128xbf16>, vector<8x128xf32> -> vector<8x128xf32>
    %32 = arith.addf %27, %31 : vector<8x128xf32>
    %c0_33 = arith.constant 0 : index
    %c0_34 = arith.constant 0 : index
    %33 = vector.load %arg8[%c0_33, %c0_34] : memref<8x128xf32, #tpu.memory_space<vmem>>, vector<8x128xf32>
    tpu.vector_store %arg8[%c0_33, %c0_34], %32 {strides = array<i32>} : memref<8x128xf32, #tpu.memory_space<vmem>>, vector<8x128xf32>,
    %c0_35 = arith.constant 0 : index
    %c0_36 = arith.constant 0 : index
    %34 = vector.load %arg8[%c0_35, %c0_36] : memref<8x128xf32, #tpu.memory_space<vmem>>, vector<8x128xf32>
    %c4 = arith.constant 4 : index
    %c0_37 = arith.constant 0 : index
    %c0_38 = arith.constant 0 : index
    %35 = vector.load %arg3[%c4, %c0_37, %c0_38] : memref<25x8x8xbf16, #tpu.memory_space<vmem>>, vector<1x8x8xbf16>
    %36 = vector.shape_cast %35 : vector<1x8x8xbf16> to vector<8x8xbf16>
    %37 = vector.extract_strided_slice %3 {offsets = [0, 4], sizes = [8, 128], strides = [1, 1]} : vector<8x256xbf16> to vector<8x128xbf16>
    %cst_39 = arith.constant dense<0.000000e+00> : vector<8x128xf32>
    %38 = tpu.matmul %36, %37, %cst_39 {dimension_numbers = #tpu.dot_dimension_numbers<[1], [0], [0], [1], [0, 0, 1, 1], [], []>} : vector<8x8xbf16>, vector<8x128xbf16>, vector<8x128xf32> -> vector<8x128xf32>
    %39 = arith.addf %34, %38 : vector<8x128xf32>
    %c0_40 = arith.constant 0 : index
    %c0_41 = arith.constant 0 : index
    %40 = vector.load %arg8[%c0_40, %c0_41] : memref<8x128xf32, #tpu.memory_space<vmem>>, vector<8x128xf32>
    tpu.vector_store %arg8[%c0_40, %c0_41], %39 {strides = array<i32>} : memref<8x128xf32, #tpu.memory_space<vmem>>, vector<8x128xf32>,
    %c0_42 = arith.constant 0 : index
    %c0_43 = arith.constant 0 : index
    %41 = vector.load %arg8[%c0_42, %c0_43] : memref<8x128xf32, #tpu.memory_space<vmem>>, vector<8x128xf32>
    %c5 = arith.constant 5 : index
    %c0_44 = arith.constant 0 : index
    %c0_45 = arith.constant 0 : index
    %42 = vector.load %arg3[%c5, %c0_44, %c0_45] : memref<25x8x8xbf16, #tpu.memory_space<vmem>>, vector<1x8x8xbf16>
    %43 = vector.shape_cast %42 : vector<1x8x8xbf16> to vector<8x8xbf16>
    %44 = vector.extract_strided_slice %3 {offsets = [0, 12], sizes = [8, 128], strides = [1, 1]} : vector<8x256xbf16> to vector<8x128xbf16>
    %cst_46 = arith.constant dense<0.000000e+00> : vector<8x128xf32>
    %45 = tpu.matmul %43, %44, %cst_46 {dimension_numbers = #tpu.dot_dimension_numbers<[1], [0], [0], [1], [0, 0, 1, 1], [], []>} : vector<8x8xbf16>, vector<8x128xbf16>, vector<8x128xf32> -> vector<8x128xf32>
    %46 = arith.addf %41, %45 : vector<8x128xf32>
    %c0_47 = arith.constant 0 : index
    %c0_48 = arith.constant 0 : index
    %47 = vector.load %arg8[%c0_47, %c0_48] : memref<8x128xf32, #tpu.memory_space<vmem>>, vector<8x128xf32>
    tpu.vector_store %arg8[%c0_47, %c0_48], %46 {strides = array<i32>} : memref<8x128xf32, #tpu.memory_space<vmem>>, vector<8x128xf32>,
    %c0_49 = arith.constant 0 : index
    %c0_50 = arith.constant 0 : index
    %48 = vector.load %arg8[%c0_49, %c0_50] : memref<8x128xf32, #tpu.memory_space<vmem>>, vector<8x128xf32>
    %c6 = arith.constant 6 : index
    %c0_51 = arith.constant 0 : index
    %c0_52 = arith.constant 0 : index
    %49 = vector.load %arg3[%c6, %c0_51, %c0_52] : memref<25x8x8xbf16, #tpu.memory_space<vmem>>, vector<1x8x8xbf16>
    %50 = vector.shape_cast %49 : vector<1x8x8xbf16> to vector<8x8xbf16>
    %51 = vector.extract_strided_slice %3 {offsets = [0, 13], sizes = [8, 128], strides = [1, 1]} : vector<8x256xbf16> to vector<8x128xbf16>
    %cst_53 = arith.constant dense<0.000000e+00> : vector<8x128xf32>
    %52 = tpu.matmul %50, %51, %cst_53 {dimension_numbers = #tpu.dot_dimension_numbers<[1], [0], [0], [1], [0, 0, 1, 1], [], []>} : vector<8x8xbf16>, vector<8x128xbf16>, vector<8x128xf32> -> vector<8x128xf32>
    %53 = arith.addf %48, %52 : vector<8x128xf32>
    %c0_54 = arith.constant 0 : index
    %c0_55 = arith.constant 0 : index
    %54 = vector.load %arg8[%c0_54, %c0_55] : memref<8x128xf32, #tpu.memory_space<vmem>>, vector<8x128xf32>
    tpu.vector_store %arg8[%c0_54, %c0_55], %53 {strides = array<i32>} : memref<8x128xf32, #tpu.memory_space<vmem>>, vector<8x128xf32>,
    %c0_56 = arith.constant 0 : index
    %c0_57 = arith.constant 0 : index
    %55 = vector.load %arg8[%c0_56, %c0_57] : memref<8x128xf32, #tpu.memory_space<vmem>>, vector<8x128xf32>
    %c7 = arith.constant 7 : index
    %c0_58 = arith.constant 0 : index
    %c0_59 = arith.constant 0 : index
    %56 = vector.load %arg3[%c7, %c0_58, %c0_59] : memref<25x8x8xbf16, #tpu.memory_space<vmem>>, vector<1x8x8xbf16>
    %57 = vector.shape_cast %56 : vector<1x8x8xbf16> to vector<8x8xbf16>
    %58 = vector.extract_strided_slice %3 {offsets = [0, 14], sizes = [8, 128], strides = [1, 1]} : vector<8x256xbf16> to vector<8x128xbf16>
    %cst_60 = arith.constant dense<0.000000e+00> : vector<8x128xf32>
    %59 = tpu.matmul %57, %58, %cst_60 {dimension_numbers = #tpu.dot_dimension_numbers<[1], [0], [0], [1], [0, 0, 1, 1], [], []>} : vector<8x8xbf16>, vector<8x128xbf16>, vector<8x128xf32> -> vector<8x128xf32>
    %60 = arith.addf %55, %59 : vector<8x128xf32>
    %c0_61 = arith.constant 0 : index
    %c0_62 = arith.constant 0 : index
    %61 = vector.load %arg8[%c0_61, %c0_62] : memref<8x128xf32, #tpu.memory_space<vmem>>, vector<8x128xf32>
    tpu.vector_store %arg8[%c0_61, %c0_62], %60 {strides = array<i32>} : memref<8x128xf32, #tpu.memory_space<vmem>>, vector<8x128xf32>,
    %c0_63 = arith.constant 0 : index
    %c0_64 = arith.constant 0 : index
    %62 = vector.load %arg8[%c0_63, %c0_64] : memref<8x128xf32, #tpu.memory_space<vmem>>, vector<8x128xf32>
    %c8 = arith.constant 8 : index
    %c0_65 = arith.constant 0 : index
    %c0_66 = arith.constant 0 : index
    %63 = vector.load %arg3[%c8, %c0_65, %c0_66] : memref<25x8x8xbf16, #tpu.memory_space<vmem>>, vector<1x8x8xbf16>
    %64 = vector.shape_cast %63 : vector<1x8x8xbf16> to vector<8x8xbf16>
    %65 = vector.extract_strided_slice %3 {offsets = [0, 15], sizes = [8, 128], strides = [1, 1]} : vector<8x256xbf16> to vector<8x128xbf16>
    %cst_67 = arith.constant dense<0.000000e+00> : vector<8x128xf32>
    %66 = tpu.matmul %64, %65, %cst_67 {dimension_numbers = #tpu.dot_dimension_numbers<[1], [0], [0], [1], [0, 0, 1, 1], [], []>} : vector<8x8xbf16>, vector<8x128xbf16>, vector<8x128xf32> -> vector<8x128xf32>
    %67 = arith.addf %62, %66 : vector<8x128xf32>
    %c0_68 = arith.constant 0 : index
    %c0_69 = arith.constant 0 : index
    %68 = vector.load %arg8[%c0_68, %c0_69] : memref<8x128xf32, #tpu.memory_space<vmem>>, vector<8x128xf32>
    tpu.vector_store %arg8[%c0_68, %c0_69], %67 {strides = array<i32>} : memref<8x128xf32, #tpu.memory_space<vmem>>, vector<8x128xf32>,
    %c0_70 = arith.constant 0 : index
    %c0_71 = arith.constant 0 : index
    %69 = vector.load %arg8[%c0_70, %c0_71] : memref<8x128xf32, #tpu.memory_space<vmem>>, vector<8x128xf32>
    %c9 = arith.constant 9 : index
    %c0_72 = arith.constant 0 : index
    %c0_73 = arith.constant 0 : index
    %70 = vector.load %arg3[%c9, %c0_72, %c0_73] : memref<25x8x8xbf16, #tpu.memory_space<vmem>>, vector<1x8x8xbf16>
    %71 = vector.shape_cast %70 : vector<1x8x8xbf16> to vector<8x8xbf16>
    %72 = vector.extract_strided_slice %3 {offsets = [0, 16], sizes = [8, 128], strides = [1, 1]} : vector<8x256xbf16> to vector<8x128xbf16>
    %cst_74 = arith.constant dense<0.000000e+00> : vector<8x128xf32>
    %73 = tpu.matmul %71, %72, %cst_74 {dimension_numbers = #tpu.dot_dimension_numbers<[1], [0], [0], [1], [0, 0, 1, 1], [], []>} : vector<8x8xbf16>, vector<8x128xbf16>, vector<8x128xf32> -> vector<8x128xf32>
    %74 = arith.addf %69, %73 : vector<8x128xf32>
    %c0_75 = arith.constant 0 : index
    %c0_76 = arith.constant 0 : index
    %75 = vector.load %arg8[%c0_75, %c0_76] : memref<8x128xf32, #tpu.memory_space<vmem>>, vector<8x128xf32>
    tpu.vector_store %arg8[%c0_75, %c0_76], %74 {strides = array<i32>} : memref<8x128xf32, #tpu.memory_space<vmem>>, vector<8x128xf32>,
    %c0_77 = arith.constant 0 : index
    %c0_78 = arith.constant 0 : index
    %76 = vector.load %arg8[%c0_77, %c0_78] : memref<8x128xf32, #tpu.memory_space<vmem>>, vector<8x128xf32>
    %c10 = arith.constant 10 : index
    %c0_79 = arith.constant 0 : index
    %c0_80 = arith.constant 0 : index
    %77 = vector.load %arg3[%c10, %c0_79, %c0_80] : memref<25x8x8xbf16, #tpu.memory_space<vmem>>, vector<1x8x8xbf16>
    %78 = vector.shape_cast %77 : vector<1x8x8xbf16> to vector<8x8xbf16>
    %79 = vector.extract_strided_slice %3 {offsets = [0, 24], sizes = [8, 128], strides = [1, 1]} : vector<8x256xbf16> to vector<8x128xbf16>
    %cst_81 = arith.constant dense<0.000000e+00> : vector<8x128xf32>
    %80 = tpu.matmul %78, %79, %cst_81 {dimension_numbers = #tpu.dot_dimension_numbers<[1], [0], [0], [1], [0, 0, 1, 1], [], []>} : vector<8x8xbf16>, vector<8x128xbf16>, vector<8x128xf32> -> vector<8x128xf32>
    %81 = arith.addf %76, %80 : vector<8x128xf32>
    %c0_82 = arith.constant 0 : index
    %c0_83 = arith.constant 0 : index
    %82 = vector.load %arg8[%c0_82, %c0_83] : memref<8x128xf32, #tpu.memory_space<vmem>>, vector<8x128xf32>
    tpu.vector_store %arg8[%c0_82, %c0_83], %81 {strides = array<i32>} : memref<8x128xf32, #tpu.memory_space<vmem>>, vector<8x128xf32>,
    %c0_84 = arith.constant 0 : index
    %c0_85 = arith.constant 0 : index
    %83 = vector.load %arg8[%c0_84, %c0_85] : memref<8x128xf32, #tpu.memory_space<vmem>>, vector<8x128xf32>
    %c11 = arith.constant 11 : index
    %c0_86 = arith.constant 0 : index
    %c0_87 = arith.constant 0 : index
    %84 = vector.load %arg3[%c11, %c0_86, %c0_87] : memref<25x8x8xbf16, #tpu.memory_space<vmem>>, vector<1x8x8xbf16>
    %85 = vector.shape_cast %84 : vector<1x8x8xbf16> to vector<8x8xbf16>
    %86 = vector.extract_strided_slice %3 {offsets = [0, 25], sizes = [8, 128], strides = [1, 1]} : vector<8x256xbf16> to vector<8x128xbf16>
    %cst_88 = arith.constant dense<0.000000e+00> : vector<8x128xf32>
    %87 = tpu.matmul %85, %86, %cst_88 {dimension_numbers = #tpu.dot_dimension_numbers<[1], [0], [0], [1], [0, 0, 1, 1], [], []>} : vector<8x8xbf16>, vector<8x128xbf16>, vector<8x128xf32> -> vector<8x128xf32>
    %88 = arith.addf %83, %87 : vector<8x128xf32>
    %c0_89 = arith.constant 0 : index
    %c0_90 = arith.constant 0 : index
    %89 = vector.load %arg8[%c0_89, %c0_90] : memref<8x128xf32, #tpu.memory_space<vmem>>, vector<8x128xf32>
    tpu.vector_store %arg8[%c0_89, %c0_90], %88 {strides = array<i32>} : memref<8x128xf32, #tpu.memory_space<vmem>>, vector<8x128xf32>,
    %c0_91 = arith.constant 0 : index
    %c0_92 = arith.constant 0 : index
    %90 = vector.load %arg8[%c0_91, %c0_92] : memref<8x128xf32, #tpu.memory_space<vmem>>, vector<8x128xf32>
    %c12 = arith.constant 12 : index
    %c0_93 = arith.constant 0 : index
    %c0_94 = arith.constant 0 : index
    %91 = vector.load %arg3[%c12, %c0_93, %c0_94] : memref<25x8x8xbf16, #tpu.memory_space<vmem>>, vector<1x8x8xbf16>
    %92 = vector.shape_cast %91 : vector<1x8x8xbf16> to vector<8x8xbf16>
    %93 = vector.extract_strided_slice %3 {offsets = [0, 26], sizes = [8, 128], strides = [1, 1]} : vector<8x256xbf16> to vector<8x128xbf16>
    %cst_95 = arith.constant dense<0.000000e+00> : vector<8x128xf32>
    %94 = tpu.matmul %92, %93, %cst_95 {dimension_numbers = #tpu.dot_dimension_numbers<[1], [0], [0], [1], [0, 0, 1, 1], [], []>} : vector<8x8xbf16>, vector<8x128xbf16>, vector<8x128xf32> -> vector<8x128xf32>
    %95 = arith.addf %90, %94 : vector<8x128xf32>
    %c0_96 = arith.constant 0 : index
    %c0_97 = arith.constant 0 : index
    %96 = vector.load %arg8[%c0_96, %c0_97] : memref<8x128xf32, #tpu.memory_space<vmem>>, vector<8x128xf32>
    tpu.vector_store %arg8[%c0_96, %c0_97], %95 {strides = array<i32>} : memref<8x128xf32, #tpu.memory_space<vmem>>, vector<8x128xf32>,
    %c0_98 = arith.constant 0 : index
    %c0_99 = arith.constant 0 : index
    %97 = vector.load %arg8[%c0_98, %c0_99] : memref<8x128xf32, #tpu.memory_space<vmem>>, vector<8x128xf32>
    %c13 = arith.constant 13 : index
    %c0_100 = arith.constant 0 : index
    %c0_101 = arith.constant 0 : index
    %98 = vector.load %arg3[%c13, %c0_100, %c0_101] : memref<25x8x8xbf16, #tpu.memory_space<vmem>>, vector<1x8x8xbf16>
    %99 = vector.shape_cast %98 : vector<1x8x8xbf16> to vector<8x8xbf16>
    %100 = vector.extract_strided_slice %3 {offsets = [0, 27], sizes = [8, 128], strides = [1, 1]} : vector<8x256xbf16> to vector<8x128xbf16>
    %cst_102 = arith.constant dense<0.000000e+00> : vector<8x128xf32>
    %101 = tpu.matmul %99, %100, %cst_102 {dimension_numbers = #tpu.dot_dimension_numbers<[1], [0], [0], [1], [0, 0, 1, 1], [], []>} : vector<8x8xbf16>, vector<8x128xbf16>, vector<8x128xf32> -> vector<8x128xf32>
    %102 = arith.addf %97, %101 : vector<8x128xf32>
    %c0_103 = arith.constant 0 : index
    %c0_104 = arith.constant 0 : index
    %103 = vector.load %arg8[%c0_103, %c0_104] : memref<8x128xf32, #tpu.memory_space<vmem>>, vector<8x128xf32>
    tpu.vector_store %arg8[%c0_103, %c0_104], %102 {strides = array<i32>} : memref<8x128xf32, #tpu.memory_space<vmem>>, vector<8x128xf32>,
    %c0_105 = arith.constant 0 : index
    %c0_106 = arith.constant 0 : index
    %104 = vector.load %arg8[%c0_105, %c0_106] : memref<8x128xf32, #tpu.memory_space<vmem>>, vector<8x128xf32>
    %c14 = arith.constant 14 : index
    %c0_107 = arith.constant 0 : index
    %c0_108 = arith.constant 0 : index
    %105 = vector.load %arg3[%c14, %c0_107, %c0_108] : memref<25x8x8xbf16, #tpu.memory_space<vmem>>, vector<1x8x8xbf16>
    %106 = vector.shape_cast %105 : vector<1x8x8xbf16> to vector<8x8xbf16>
    %107 = vector.extract_strided_slice %3 {offsets = [0, 28], sizes = [8, 128], strides = [1, 1]} : vector<8x256xbf16> to vector<8x128xbf16>
    %cst_109 = arith.constant dense<0.000000e+00> : vector<8x128xf32>
    %108 = tpu.matmul %106, %107, %cst_109 {dimension_numbers = #tpu.dot_dimension_numbers<[1], [0], [0], [1], [0, 0, 1, 1], [], []>} : vector<8x8xbf16>, vector<8x128xbf16>, vector<8x128xf32> -> vector<8x128xf32>
    %109 = arith.addf %104, %108 : vector<8x128xf32>
    %c0_110 = arith.constant 0 : index
    %c0_111 = arith.constant 0 : index
    %110 = vector.load %arg8[%c0_110, %c0_111] : memref<8x128xf32, #tpu.memory_space<vmem>>, vector<8x128xf32>
    tpu.vector_store %arg8[%c0_110, %c0_111], %109 {strides = array<i32>} : memref<8x128xf32, #tpu.memory_space<vmem>>, vector<8x128xf32>,
    %c0_112 = arith.constant 0 : index
    %c0_113 = arith.constant 0 : index
    %111 = vector.load %arg8[%c0_112, %c0_113] : memref<8x128xf32, #tpu.memory_space<vmem>>, vector<8x128xf32>
    %c15 = arith.constant 15 : index
    %c0_114 = arith.constant 0 : index
    %c0_115 = arith.constant 0 : index
    %112 = vector.load %arg3[%c15, %c0_114, %c0_115] : memref<25x8x8xbf16, #tpu.memory_space<vmem>>, vector<1x8x8xbf16>
    %113 = vector.shape_cast %112 : vector<1x8x8xbf16> to vector<8x8xbf16>
    %114 = vector.extract_strided_slice %3 {offsets = [0, 36], sizes = [8, 128], strides = [1, 1]} : vector<8x256xbf16> to vector<8x128xbf16>
    %cst_116 = arith.constant dense<0.000000e+00> : vector<8x128xf32>
    %115 = tpu.matmul %113, %114, %cst_116 {dimension_numbers = #tpu.dot_dimension_numbers<[1], [0], [0], [1], [0, 0, 1, 1], [], []>} : vector<8x8xbf16>, vector<8x128xbf16>, vector<8x128xf32> -> vector<8x128xf32>
    %116 = arith.addf %111, %115 : vector<8x128xf32>
    %c0_117 = arith.constant 0 : index
    %c0_118 = arith.constant 0 : index
    %117 = vector.load %arg8[%c0_117, %c0_118] : memref<8x128xf32, #tpu.memory_space<vmem>>, vector<8x128xf32>
    tpu.vector_store %arg8[%c0_117, %c0_118], %116 {strides = array<i32>} : memref<8x128xf32, #tpu.memory_space<vmem>>, vector<8x128xf32>,
    %c0_119 = arith.constant 0 : index
    %c0_120 = arith.constant 0 : index
    %118 = vector.load %arg8[%c0_119, %c0_120] : memref<8x128xf32, #tpu.memory_space<vmem>>, vector<8x128xf32>
    %c16 = arith.constant 16 : index
    %c0_121 = arith.constant 0 : index
    %c0_122 = arith.constant 0 : index
    %119 = vector.load %arg3[%c16, %c0_121, %c0_122] : memref<25x8x8xbf16, #tpu.memory_space<vmem>>, vector<1x8x8xbf16>
    %120 = vector.shape_cast %119 : vector<1x8x8xbf16> to vector<8x8xbf16>
    %121 = vector.extract_strided_slice %3 {offsets = [0, 37], sizes = [8, 128], strides = [1, 1]} : vector<8x256xbf16> to vector<8x128xbf16>
    %cst_123 = arith.constant dense<0.000000e+00> : vector<8x128xf32>
    %122 = tpu.matmul %120, %121, %cst_123 {dimension_numbers = #tpu.dot_dimension_numbers<[1], [0], [0], [1], [0, 0, 1, 1], [], []>} : vector<8x8xbf16>, vector<8x128xbf16>, vector<8x128xf32> -> vector<8x128xf32>
    %123 = arith.addf %118, %122 : vector<8x128xf32>
    %c0_124 = arith.constant 0 : index
    %c0_125 = arith.constant 0 : index
    %124 = vector.load %arg8[%c0_124, %c0_125] : memref<8x128xf32, #tpu.memory_space<vmem>>, vector<8x128xf32>
    tpu.vector_store %arg8[%c0_124, %c0_125], %123 {strides = array<i32>} : memref<8x128xf32, #tpu.memory_space<vmem>>, vector<8x128xf32>,
    %c0_126 = arith.constant 0 : index
    %c0_127 = arith.constant 0 : index
    %125 = vector.load %arg8[%c0_126, %c0_127] : memref<8x128xf32, #tpu.memory_space<vmem>>, vector<8x128xf32>
    %c17 = arith.constant 17 : index
    %c0_128 = arith.constant 0 : index
    %c0_129 = arith.constant 0 : index
    %126 = vector.load %arg3[%c17, %c0_128, %c0_129] : memref<25x8x8xbf16, #tpu.memory_space<vmem>>, vector<1x8x8xbf16>
    %127 = vector.shape_cast %126 : vector<1x8x8xbf16> to vector<8x8xbf16>
    %128 = vector.extract_strided_slice %3 {offsets = [0, 38], sizes = [8, 128], strides = [1, 1]} : vector<8x256xbf16> to vector<8x128xbf16>
    %cst_130 = arith.constant dense<0.000000e+00> : vector<8x128xf32>
    %129 = tpu.matmul %127, %128, %cst_130 {dimension_numbers = #tpu.dot_dimension_numbers<[1], [0], [0], [1], [0, 0, 1, 1], [], []>} : vector<8x8xbf16>, vector<8x128xbf16>, vector<8x128xf32> -> vector<8x128xf32>
    %130 = arith.addf %125, %129 : vector<8x128xf32>
    %c0_131 = arith.constant 0 : index
    %c0_132 = arith.constant 0 : index
    %131 = vector.load %arg8[%c0_131, %c0_132] : memref<8x128xf32, #tpu.memory_space<vmem>>, vector<8x128xf32>
    tpu.vector_store %arg8[%c0_131, %c0_132], %130 {strides = array<i32>} : memref<8x128xf32, #tpu.memory_space<vmem>>, vector<8x128xf32>,
    %c0_133 = arith.constant 0 : index
    %c0_134 = arith.constant 0 : index
    %132 = vector.load %arg8[%c0_133, %c0_134] : memref<8x128xf32, #tpu.memory_space<vmem>>, vector<8x128xf32>
    %c18 = arith.constant 18 : index
    %c0_135 = arith.constant 0 : index
    %c0_136 = arith.constant 0 : index
    %133 = vector.load %arg3[%c18, %c0_135, %c0_136] : memref<25x8x8xbf16, #tpu.memory_space<vmem>>, vector<1x8x8xbf16>
    %134 = vector.shape_cast %133 : vector<1x8x8xbf16> to vector<8x8xbf16>
    %135 = vector.extract_strided_slice %3 {offsets = [0, 39], sizes = [8, 128], strides = [1, 1]} : vector<8x256xbf16> to vector<8x128xbf16>
    %cst_137 = arith.constant dense<0.000000e+00> : vector<8x128xf32>
    %136 = tpu.matmul %134, %135, %cst_137 {dimension_numbers = #tpu.dot_dimension_numbers<[1], [0], [0], [1], [0, 0, 1, 1], [], []>} : vector<8x8xbf16>, vector<8x128xbf16>, vector<8x128xf32> -> vector<8x128xf32>
    %137 = arith.addf %132, %136 : vector<8x128xf32>
    %c0_138 = arith.constant 0 : index
    %c0_139 = arith.constant 0 : index
    %138 = vector.load %arg8[%c0_138, %c0_139] : memref<8x128xf32, #tpu.memory_space<vmem>>, vector<8x128xf32>
    tpu.vector_store %arg8[%c0_138, %c0_139], %137 {strides = array<i32>} : memref<8x128xf32, #tpu.memory_space<vmem>>, vector<8x128xf32>,
    %c0_140 = arith.constant 0 : index
    %c0_141 = arith.constant 0 : index
    %139 = vector.load %arg8[%c0_140, %c0_141] : memref<8x128xf32, #tpu.memory_space<vmem>>, vector<8x128xf32>
    %c19 = arith.constant 19 : index
    %c0_142 = arith.constant 0 : index
    %c0_143 = arith.constant 0 : index
    %140 = vector.load %arg3[%c19, %c0_142, %c0_143] : memref<25x8x8xbf16, #tpu.memory_space<vmem>>, vector<1x8x8xbf16>
    %141 = vector.shape_cast %140 : vector<1x8x8xbf16> to vector<8x8xbf16>
    %142 = vector.extract_strided_slice %3 {offsets = [0, 40], sizes = [8, 128], strides = [1, 1]} : vector<8x256xbf16> to vector<8x128xbf16>
    %cst_144 = arith.constant dense<0.000000e+00> : vector<8x128xf32>
    %143 = tpu.matmul %141, %142, %cst_144 {dimension_numbers = #tpu.dot_dimension_numbers<[1], [0], [0], [1], [0, 0, 1, 1], [], []>} : vector<8x8xbf16>, vector<8x128xbf16>, vector<8x128xf32> -> vector<8x128xf32>
    %144 = arith.addf %139, %143 : vector<8x128xf32>
    %c0_145 = arith.constant 0 : index
    %c0_146 = arith.constant 0 : index
    %145 = vector.load %arg8[%c0_145, %c0_146] : memref<8x128xf32, #tpu.memory_space<vmem>>, vector<8x128xf32>
    tpu.vector_store %arg8[%c0_145, %c0_146], %144 {strides = array<i32>} : memref<8x128xf32, #tpu.memory_space<vmem>>, vector<8x128xf32>,
    %c0_147 = arith.constant 0 : index
    %c0_148 = arith.constant 0 : index
    %146 = vector.load %arg8[%c0_147, %c0_148] : memref<8x128xf32, #tpu.memory_space<vmem>>, vector<8x128xf32>
    %c20 = arith.constant 20 : index
    %c0_149 = arith.constant 0 : index
    %c0_150 = arith.constant 0 : index
    %147 = vector.load %arg3[%c20, %c0_149, %c0_150] : memref<25x8x8xbf16, #tpu.memory_space<vmem>>, vector<1x8x8xbf16>
    %148 = vector.shape_cast %147 : vector<1x8x8xbf16> to vector<8x8xbf16>
    %149 = vector.extract_strided_slice %3 {offsets = [0, 48], sizes = [8, 128], strides = [1, 1]} : vector<8x256xbf16> to vector<8x128xbf16>
    %cst_151 = arith.constant dense<0.000000e+00> : vector<8x128xf32>
    %150 = tpu.matmul %148, %149, %cst_151 {dimension_numbers = #tpu.dot_dimension_numbers<[1], [0], [0], [1], [0, 0, 1, 1], [], []>} : vector<8x8xbf16>, vector<8x128xbf16>, vector<8x128xf32> -> vector<8x128xf32>
    %151 = arith.addf %146, %150 : vector<8x128xf32>
    %c0_152 = arith.constant 0 : index
    %c0_153 = arith.constant 0 : index
    %152 = vector.load %arg8[%c0_152, %c0_153] : memref<8x128xf32, #tpu.memory_space<vmem>>, vector<8x128xf32>
    tpu.vector_store %arg8[%c0_152, %c0_153], %151 {strides = array<i32>} : memref<8x128xf32, #tpu.memory_space<vmem>>, vector<8x128xf32>,
    %c0_154 = arith.constant 0 : index
    %c0_155 = arith.constant 0 : index
    %153 = vector.load %arg8[%c0_154, %c0_155] : memref<8x128xf32, #tpu.memory_space<vmem>>, vector<8x128xf32>
    %c21 = arith.constant 21 : index
    %c0_156 = arith.constant 0 : index
    %c0_157 = arith.constant 0 : index
    %154 = vector.load %arg3[%c21, %c0_156, %c0_157] : memref<25x8x8xbf16, #tpu.memory_space<vmem>>, vector<1x8x8xbf16>
    %155 = vector.shape_cast %154 : vector<1x8x8xbf16> to vector<8x8xbf16>
    %156 = vector.extract_strided_slice %3 {offsets = [0, 49], sizes = [8, 128], strides = [1, 1]} : vector<8x256xbf16> to vector<8x128xbf16>
    %cst_158 = arith.constant dense<0.000000e+00> : vector<8x128xf32>
    %157 = tpu.matmul %155, %156, %cst_158 {dimension_numbers = #tpu.dot_dimension_numbers<[1], [0], [0], [1], [0, 0, 1, 1], [], []>} : vector<8x8xbf16>, vector<8x128xbf16>, vector<8x128xf32> -> vector<8x128xf32>
    %158 = arith.addf %153, %157 : vector<8x128xf32>
    %c0_159 = arith.constant 0 : index
    %c0_160 = arith.constant 0 : index
    %159 = vector.load %arg8[%c0_159, %c0_160] : memref<8x128xf32, #tpu.memory_space<vmem>>, vector<8x128xf32>
    tpu.vector_store %arg8[%c0_159, %c0_160], %158 {strides = array<i32>} : memref<8x128xf32, #tpu.memory_space<vmem>>, vector<8x128xf32>,
    %c0_161 = arith.constant 0 : index
    %c0_162 = arith.constant 0 : index
    %160 = vector.load %arg8[%c0_161, %c0_162] : memref<8x128xf32, #tpu.memory_space<vmem>>, vector<8x128xf32>
    %c22 = arith.constant 22 : index
    %c0_163 = arith.constant 0 : index
    %c0_164 = arith.constant 0 : index
    %161 = vector.load %arg3[%c22, %c0_163, %c0_164] : memref<25x8x8xbf16, #tpu.memory_space<vmem>>, vector<1x8x8xbf16>
    %162 = vector.shape_cast %161 : vector<1x8x8xbf16> to vector<8x8xbf16>
    %163 = vector.extract_strided_slice %3 {offsets = [0, 50], sizes = [8, 128], strides = [1, 1]} : vector<8x256xbf16> to vector<8x128xbf16>
    %cst_165 = arith.constant dense<0.000000e+00> : vector<8x128xf32>
    %164 = tpu.matmul %162, %163, %cst_165 {dimension_numbers = #tpu.dot_dimension_numbers<[1], [0], [0], [1], [0, 0, 1, 1], [], []>} : vector<8x8xbf16>, vector<8x128xbf16>, vector<8x128xf32> -> vector<8x128xf32>
    %165 = arith.addf %160, %164 : vector<8x128xf32>
    %c0_166 = arith.constant 0 : index
    %c0_167 = arith.constant 0 : index
    %166 = vector.load %arg8[%c0_166, %c0_167] : memref<8x128xf32, #tpu.memory_space<vmem>>, vector<8x128xf32>
    tpu.vector_store %arg8[%c0_166, %c0_167], %165 {strides = array<i32>} : memref<8x128xf32, #tpu.memory_space<vmem>>, vector<8x128xf32>,
    %c0_168 = arith.constant 0 : index
    %c0_169 = arith.constant 0 : index
    %167 = vector.load %arg8[%c0_168, %c0_169] : memref<8x128xf32, #tpu.memory_space<vmem>>, vector<8x128xf32>
    %c23 = arith.constant 23 : index
    %c0_170 = arith.constant 0 : index
    %c0_171 = arith.constant 0 : index
    %168 = vector.load %arg3[%c23, %c0_170, %c0_171] : memref<25x8x8xbf16, #tpu.memory_space<vmem>>, vector<1x8x8xbf16>
    %169 = vector.shape_cast %168 : vector<1x8x8xbf16> to vector<8x8xbf16>
    %170 = vector.extract_strided_slice %3 {offsets = [0, 51], sizes = [8, 128], strides = [1, 1]} : vector<8x256xbf16> to vector<8x128xbf16>
    %cst_172 = arith.constant dense<0.000000e+00> : vector<8x128xf32>
    %171 = tpu.matmul %169, %170, %cst_172 {dimension_numbers = #tpu.dot_dimension_numbers<[1], [0], [0], [1], [0, 0, 1, 1], [], []>} : vector<8x8xbf16>, vector<8x128xbf16>, vector<8x128xf32> -> vector<8x128xf32>
    %172 = arith.addf %167, %171 : vector<8x128xf32>
    %c0_173 = arith.constant 0 : index
    %c0_174 = arith.constant 0 : index
    %173 = vector.load %arg8[%c0_173, %c0_174] : memref<8x128xf32, #tpu.memory_space<vmem>>, vector<8x128xf32>
    tpu.vector_store %arg8[%c0_173, %c0_174], %172 {strides = array<i32>} : memref<8x128xf32, #tpu.memory_space<vmem>>, vector<8x128xf32>,
    %c0_175 = arith.constant 0 : index
    %c0_176 = arith.constant 0 : index
    %174 = vector.load %arg8[%c0_175, %c0_176] : memref<8x128xf32, #tpu.memory_space<vmem>>, vector<8x128xf32>
    %c24 = arith.constant 24 : index
    %c0_177 = arith.constant 0 : index
    %c0_178 = arith.constant 0 : index
    %175 = vector.load %arg3[%c24, %c0_177, %c0_178] : memref<25x8x8xbf16, #tpu.memory_space<vmem>>, vector<1x8x8xbf16>
    %176 = vector.shape_cast %175 : vector<1x8x8xbf16> to vector<8x8xbf16>
    %177 = vector.extract_strided_slice %3 {offsets = [0, 52], sizes = [8, 128], strides = [1, 1]} : vector<8x256xbf16> to vector<8x128xbf16>
    %cst_179 = arith.constant dense<0.000000e+00> : vector<8x128xf32>
    %178 = tpu.matmul %176, %177, %cst_179 {dimension_numbers = #tpu.dot_dimension_numbers<[1], [0], [0], [1], [0, 0, 1, 1], [], []>} : vector<8x8xbf16>, vector<8x128xbf16>, vector<8x128xf32> -> vector<8x128xf32>
    %179 = arith.addf %174, %178 : vector<8x128xf32>
    %c0_180 = arith.constant 0 : index
    %c0_181 = arith.constant 0 : index
    %180 = vector.load %arg8[%c0_180, %c0_181] : memref<8x128xf32, #tpu.memory_space<vmem>>, vector<8x128xf32>
    tpu.vector_store %arg8[%c0_180, %c0_181], %179 {strides = array<i32>} : memref<8x128xf32, #tpu.memory_space<vmem>>, vector<8x128xf32>,
    %c0_182 = arith.constant 0 : index
    %c0_183 = arith.constant 0 : index
    %181 = vector.load %arg8[%c0_182, %c0_183] : memref<8x128xf32, #tpu.memory_space<vmem>>, vector<8x128xf32>
    %182 = arith.truncf %181 : vector<8x128xf32> to vector<8x128xbf16>
    %183 = vector.shape_cast %182 : vector<8x128xbf16> to vector<1x1x8x128xbf16>
    %c0_184 = arith.constant 0 : index
    %c0_185 = arith.constant 0 : index
    %c0_186 = arith.constant 0 : index
    %c0_187 = arith.constant 0 : index
    %184 = vector.load %arg5[%c0_184, %c0_185, %c0_186, %c0_187] : memref<1x1x8x128xbf16, #tpu.memory_space<vmem>>, vector<1x1x8x128xbf16>
    tpu.vector_store %arg5[%c0_184, %c0_185, %c0_186, %c0_187], %183 {strides = array<i32>} : memref<1x1x8x128xbf16, #tpu.memory_space<vmem>>, vector<1x1x8x128xbf16>,
    %c8_i32 = arith.constant 8 : i32
    %185 = arith.muli %arg1, %c8_i32 : i32
    %c8_i32_188 = arith.constant 8 : i32
    %186 = arith.subi %c8_i32_188, %185 : i32
    %c8_i32_189 = arith.constant 8 : i32
    %187 = arith.minsi %c8_i32_189, %186 : i32
    %188 = tpu.iota {dimensions = array<i32: 1>} : vector<1x128xi32>
    %c12_i32 = arith.constant 12 : i32
    %189 = arith.muli %187, %c12_i32 : i32
    %190 = vector.broadcast %189 : i32 to vector<1x128xi32>
    %191 = arith.cmpi slt, %188, %190 : vector<1x128xi32>
    %c0_190 = arith.constant 0 : index
    %c0_191 = arith.constant 0 : index
    %192 = vector.load %arg4[%c0_190, %c0_191] : memref<1x128xf32, #tpu.memory_space<vmem>>, vector<1x128xf32>
    %cst_192 = arith.constant 0.000000e+00 : f32
    %193 = vector.broadcast %cst_192 : f32 to vector<1x128xf32>
    %194 = arith.select %191, %192, %193 : vector<1x128xi1>, vector<1x128xf32>
    %195 = vector.broadcast %194 : vector<1x128xf32> to vector<8x128xf32>
    %196 = arith.mulf %181, %195 : vector<8x128xf32>
    %cst_193 = arith.constant dense<0.000000e+00> : vector<8xf32>
    %197 = vector.multi_reduction <add>, %196, %cst_193 [1] : vector<8x128xf32> to vector<8xf32>
    %198 = vector.shape_cast %197 : vector<8xf32> to vector<8x1xf32>
    %199 = vector.shape_cast %198 : vector<8x1xf32> to vector<1x1x8x1xf32>
    %c0_194 = arith.constant 0 : index
    %c0_195 = arith.constant 0 : index
    %c0_196 = arith.constant 0 : index
    %c0_197 = arith.constant 0 : index
    %200 = vector.load %arg6[%c0_194, %c0_195, %c0_196, %c0_197] : memref<1x1x8x1xf32, #tpu.memory_space<vmem>>, vector<1x1x8x1xf32>
    tpu.vector_store %arg6[%c0_194, %c0_195, %c0_196, %c0_197], %199 {strides = array<i32>} : memref<1x1x8x1xf32, #tpu.memory_space<vmem>>, vector<1x1x8x1xf32>,
    %201 = arith.mulf %196, %181 : vector<8x128xf32>
    %cst_198 = arith.constant dense<0.000000e+00> : vector<8xf32>
    %202 = vector.multi_reduction <add>, %201, %cst_198 [1] : vector<8x128xf32> to vector<8xf32>
    %203 = vector.shape_cast %202 : vector<8xf32> to vector<8x1xf32>
    %204 = vector.shape_cast %203 : vector<8x1xf32> to vector<1x1x8x1xf32>
    %c0_199 = arith.constant 0 : index
    %c0_200 = arith.constant 0 : index
    %c0_201 = arith.constant 0 : index
    %c0_202 = arith.constant 0 : index
    %205 = vector.load %arg7[%c0_199, %c0_200, %c0_201, %c0_202] : memref<1x1x8x1xf32, #tpu.memory_space<vmem>>, vector<1x1x8x1xf32>
    tpu.vector_store %arg7[%c0_199, %c0_200, %c0_201, %c0_202], %204 {strides = array<i32>} : memref<1x1x8x1xf32, #tpu.memory_space<vmem>>, vector<1x1x8x1xf32>,
    return
  }
  func.func @transform_0(%arg0: i32, %arg1: i32) -> (i32, i32, i32, i32) {
    %c0_i32 = arith.constant 0 : i32
    %c0_i32_0 = arith.constant 0 : i32
    %c0_i32_1 = arith.constant 0 : i32
    return %arg0, %arg1, %c0_i32, %c0_i32_0 : i32, i32, i32, i32
  }
  func.func @transform_1(%arg0: i32, %arg1: i32) -> (i32, i32, i32) {
    %c0_i32 = arith.constant 0 : i32
    %c0_i32_0 = arith.constant 0 : i32
    %c0_i32_1 = arith.constant 0 : i32
    %c0_i32_2 = arith.constant 0 : i32
    return %c0_i32, %c0_i32_0, %c0_i32_1 : i32, i32, i32
  }
  func.func @transform_2(%arg0: i32, %arg1: i32) -> (i32, i32) {
    %c0_i32 = arith.constant 0 : i32
    %c0_i32_0 = arith.constant 0 : i32
    %c0_i32_1 = arith.constant 0 : i32
    return %c0_i32, %c0_i32_0 : i32, i32
  }
  func.func @transform_3(%arg0: i32, %arg1: i32) -> (i32, i32, i32, i32) {
    %c0_i32 = arith.constant 0 : i32
    %c0_i32_0 = arith.constant 0 : i32
    %c0_i32_1 = arith.constant 0 : i32
    return %arg0, %arg1, %c0_i32, %c0_i32_0 : i32, i32, i32, i32
  }
  func.func @transform_4(%arg0: i32, %arg1: i32) -> (i32, i32, i32, i32) {
    %c0_i32 = arith.constant 0 : i32
    %c0_i32_0 = arith.constant 0 : i32
    %c0_i32_1 = arith.constant 0 : i32
    return %arg0, %arg1, %c0_i32, %c0_i32_0 : i32, i32, i32, i32
  }
  func.func @transform_5(%arg0: i32, %arg1: i32) -> (i32, i32, i32, i32) {
    %c0_i32 = arith.constant 0 : i32
    %c0_i32_0 = arith.constant 0 : i32
    %c0_i32_1 = arith.constant 0 : i32
    return %arg0, %arg1, %c0_i32, %c0_i32_0 : i32, i32, i32, i32
  }
}

</mosaic_0001>

<llo_original>
// kernel: tpu_custom_call.1
$region0: #{tpu_custom_call.1}
  #allocation0 [shape = 'u32[]', space=smem, size = 0x4, offset = 0x4, fixed_abs, tag = 'smem constant byte address 0x4 - core index']
  #allocation1 [shape = 'u32[144,128]{1,0:T(1,128)}', space=vmem, size = 0x12000, scoped, tag = 'internal scratch']
  #allocation2 [shape = 'f32[8,128]{1,0:T(8,128)}', space=vmem, size = 0x1000, scoped, tag = 'scratch operand']
  %s0 = inlined_call_operand.vmem [shape: bf16[2,1,8,256], index: 0, kind: input, shape index: {}]
  %s1 = inlined_call_operand.vmem [shape: bf16[25,8,8], index: 1, kind: input, shape index: {}]
  %s2 = inlined_call_operand.vmem [shape: f32[1,128], index: 2, kind: input, shape index: {}]
  %s3 = inlined_call_operand.hbm [shape: bf16[2,1,8,128], index: 3, kind: output, shape index: {0}]
  %s4 = inlined_call_operand.vmem [shape: f32[2,1,8,1], index: 4, kind: output, shape index: {1}]
  %s5 = inlined_call_operand.vmem [shape: f32[2,1,8,1], index: 5, kind: output, shape index: {2}]
  %6 = xla_tuple %s3, %s4, %s5
  %s7 = sld [smem:[#allocation0]]
  $region61: #{tpu_custom_call.1} parent=0
    _
  %s9 = ssub.s32 1, %s7
  %s10 = scalar_select 0, %s9, %s7
  $region1: #{tpu_custom_call.1} parent=0
    #allocation3 [shape = 'u8[4096]{0}', space=vmem, size = 0x1000, scoped, tag = 'output window, operand 0']
    #allocation4 [shape = 's32[2]{0}', space=sflag, size = 0x8, scoped, tag = 'scoped memory for tpu_custom_call.1']
    %11 = vsyncpa [#allocation4], 0
    %s12 = scalar_lea.sflag [#allocation4], 1
    %13 = vsyncpa %s12, 0
    loop: start=0, step=1, limit=4
    $region2: #{tpu_custom_call.1} parent=1 // loop_pre_header
      _
    $region3: #{tpu_custom_call.1} parent=1 // loop_header
      %s15 = sphi 0, %s19
      %p16 = scmp.ge.s32.totalorder %s15, 4
      %s22 = sphi 0, %s34
      %s23 = sphi 0, %s30
      %s24 = sphi 0, %s22
      %s25 = sphi 0, %s23
      %s26 = sphi 0, %s24
      %s27 = sphi 0, %s25
      %s39 = sphi 0, %s41
      %s42 = sphi 0, %s39
      %s43 = sphi 0, %s42
      %s59 = sphi 0, %s43
      %s63 = sphi 0, %s63
      %s65 = sphi 0, %s63
      %s66 = sphi 0, %s65
      %s80 = sphi 0, %s66
      %s84 = sphi 0, %s84
      %s86 = sphi 0, %s84
      %s87 = sphi 0, %s86
      %s101 = sphi 0, %s87
      %s109 = sphi 0, %s111
      %s112 = sphi 0, %s109
      %s113 = sphi 0, %s112
      %s129 = sphi 0, %s113
      %s137 = sphi 0, %s139
      %s140 = sphi 0, %s137
      %s141 = sphi 0, %s140
      %s157 = sphi 0, %s141
      %s165 = sphi 0, %s167
      %s168 = sphi 0, %s165
      %s169 = sphi 0, %s168
      %s185 = sphi 0, %s169
    $region4: #{tpu_custom_call.1} parent=1 // loop_header_branch
      %18 = sbr.rel (%p16) target = $region8
    $region5: #{tpu_custom_call.1} parent=1 // loop_body
      %s20 = ssub.s32 %s15, 1
      %s21 = ssub.s32 %s15, 2
      %s28 = sadd.s32 1, %s23
      %p29 = scmp.ge.s32.totalorder %s28, 1
      %s30 = scalar_select %p29, 0, %s28
      %s31 = sadd.s32 1, %s22
      %s32 = scalar_select %p29, %s31, %s22
      %p33 = scmp.ge.s32.totalorder %s32, 2
      %s34 = scalar_select %p33, 0, %s32
      %s35 = ssub.s32 %s22, %s34
      %s36 = ssub.s32 %s23, %s30
      %s37 = sor.u32 %s35, %s36
      %p38 = scmp.eq.s32.totalorder %s37, 0
      %s40 = sadd.s32 %s39, 1
      %s41 = scalar_select %p38, %s39, %s40
      %p44 = pneg %p38
      %p45 = scmp.eq.s32.totalorder %s15, 1
      %p46 = por %p44, %p45
      %p47 = scmp.ne.s32.totalorder %s39, %s42
      %p48 = scmp.eq.s32.totalorder %s15, 0
      %p49 = por %p47, %p48
      %p50 = scmp.ne.s32.totalorder %s39, %s42
      %p51 = scmp.eq.s32.totalorder %s20, 1
      %p52 = por %p50, %p51
      %p53 = scmp.ne.s32.totalorder %s42, %s43
      %p54 = scmp.eq.s32.totalorder %s20, 0
      %p55 = por %p53, %p54
      %p56 = scmp.ne.s32.totalorder %s42, %s43
      %p57 = scmp.eq.s32.totalorder %s21, 1
      %p58 = por %p56, %p57
      %p60 = scmp.ne.s32.totalorder %s43, %s59
      %p61 = scmp.eq.s32.totalorder %s21, 0
      %p62 = por %p60, %p61
      %s64 = sadd.s32 %s63, 1
      %p67 = scmp.eq.s32.totalorder %s15, 1
      %p68 = scmp.ne.s32.totalorder %s63, %s65
      %p69 = scmp.eq.s32.totalorder %s15, 0
      %p70 = por %p68, %p69
      %p71 = scmp.ne.s32.totalorder %s63, %s65
      %p72 = scmp.eq.s32.totalorder %s20, 1
      %p73 = por %p71, %p72
      %p74 = scmp.ne.s32.totalorder %s65, %s66
      %p75 = scmp.eq.s32.totalorder %s20, 0
      %p76 = por %p74, %p75
      %p77 = scmp.ne.s32.totalorder %s65, %s66
      %p78 = scmp.eq.s32.totalorder %s21, 1
      %p79 = por %p77, %p78
      %p81 = scmp.ne.s32.totalorder %s66, %s80
      %p82 = scmp.eq.s32.totalorder %s21, 0
      %p83 = por %p81, %p82
      %s85 = sadd.s32 %s84, 1
      %p88 = scmp.eq.s32.totalorder %s15, 1
      %p89 = scmp.ne.s32.totalorder %s84, %s86
      %p90 = scmp.eq.s32.totalorder %s15, 0
      %p91 = por %p89, %p90
      %p92 = scmp.ne.s32.totalorder %s84, %s86
      %p93 = scmp.eq.s32.totalorder %s20, 1
      %p94 = por %p92, %p93
      %p95 = scmp.ne.s32.totalorder %s86, %s87
      %p96 = scmp.eq.s32.totalorder %s20, 0
      %p97 = por %p95, %p96
      %p98 = scmp.ne.s32.totalorder %s86, %s87
      %p99 = scmp.eq.s32.totalorder %s21, 1
      %p100 = por %p98, %p99
      %p102 = scmp.ne.s32.totalorder %s87, %s101
      %p103 = scmp.eq.s32.totalorder %s21, 0
      %p104 = por %p102, %p103
      %s105 = ssub.s32 %s22, %s34
      %s106 = ssub.s32 %s23, %s30
      %s107 = sor.u32 %s105, %s106
      %p108 = scmp.eq.s32.totalorder %s107, 0
      %s110 = sadd.s32 %s109, 1
      %s111 = scalar_select %p108, %s109, %s110
      %p114 = pneg %p108
      %p115 = scmp.eq.s32.totalorder %s15, 1
      %p116 = por %p114, %p115
      %p117 = scmp.ne.s32.totalorder %s109, %s112
      %p118 = scmp.eq.s32.totalorder %s15, 0
      %p119 = por %p117, %p118
      %p120 = scmp.ne.s32.totalorder %s109, %s112
      %p121 = scmp.eq.s32.totalorder %s20, 1
      %p122 = por %p120, %p121
      %p123 = scmp.ne.s32.totalorder %s112, %s113
      %p124 = scmp.eq.s32.totalorder %s20, 0
      %p125 = por %p123, %p124
      %p126 = scmp.ne.s32.totalorder %s112, %s113
      %p127 = scmp.eq.s32.totalorder %s21, 1
      %p128 = por %p126, %p127
      %p130 = scmp.ne.s32.totalorder %s113, %s129
      %p131 = scmp.eq.s32.totalorder %s21, 0
      %p132 = por %p130, %p131
      %s133 = ssub.s32 %s22, %s34
      %s134 = ssub.s32 %s23, %s30
      %s135 = sor.u32 %s133, %s134
      %p136 = scmp.eq.s32.totalorder %s135, 0
      %s138 = sadd.s32 %s137, 1
      %s139 = scalar_select %p136, %s137, %s138
      %p142 = pneg %p136
      %p143 = scmp.eq.s32.totalorder %s15, 1
      %p144 = por %p142, %p143
      %p145 = scmp.ne.s32.totalorder %s137, %s140
      %p146 = scmp.eq.s32.totalorder %s15, 0
      %p147 = por %p145, %p146
      %p148 = scmp.ne.s32.totalorder %s137, %s140
      %p149 = scmp.eq.s32.totalorder %s20, 1
      %p150 = por %p148, %p149
      %p151 = scmp.ne.s32.totalorder %s140, %s141
      %p152 = scmp.eq.s32.totalorder %s20, 0
      %p153 = por %p151, %p152
      %p154 = scmp.ne.s32.totalorder %s140, %s141
      %p155 = scmp.eq.s32.totalorder %s21, 1
      %p156 = por %p154, %p155
      %p158 = scmp.ne.s32.totalorder %s141, %s157
      %p159 = scmp.eq.s32.totalorder %s21, 0
      %p160 = por %p158, %p159
      %s161 = ssub.s32 %s22, %s34
      %s162 = ssub.s32 %s23, %s30
      %s163 = sor.u32 %s161, %s162
      %p164 = scmp.eq.s32.totalorder %s163, 0
      %s166 = sadd.s32 %s165, 1
      %s167 = scalar_select %p164, %s165, %s166
      %p170 = pneg %p164
      %p171 = scmp.eq.s32.totalorder %s15, 1
      %p172 = por %p170, %p171
      %p173 = scmp.ne.s32.totalorder %s165, %s168
      %p174 = scmp.eq.s32.totalorder %s15, 0
      %p175 = por %p173, %p174
      %p176 = scmp.ne.s32.totalorder %s165, %s168
      %p177 = scmp.eq.s32.totalorder %s20, 1
      %p178 = por %p176, %p177
      %p179 = scmp.ne.s32.totalorder %s168, %s169
      %p180 = scmp.eq.s32.totalorder %s20, 0
      %p181 = por %p179, %p180
      %p182 = scmp.ne.s32.totalorder %s168, %s169
      %p183 = scmp.eq.s32.totalorder %s21, 1
      %p184 = por %p182, %p183
      %p186 = scmp.ne.s32.totalorder %s169, %s185
      %p187 = scmp.eq.s32.totalorder %s21, 0
      %p188 = por %p186, %p187
      %p189 = scmp.le.s32.totalorder 1, %s15
      %p190 = scmp.lt.s32.totalorder %s15, 3
      %p191 = pnand %p189, %p190
      %p192 = pneg %p191
      // Predicated region
      $region9: #{tpu_custom_call.1} parent=5 // pred_check
        _
      $region10: #{tpu_custom_call.1} parent=5 // pred_check_branch
        %194 = sbr.rel (%p191) target = $region12
      $region11: #{tpu_custom_call.1} parent=5 // pred_region
        %s195 = ssub.s32 %s15, 1
        // Predicated region
        $region13: #{tpu_custom_call.1} parent=11 // pred_check
          %p196 = pneg %p76
        $region14: #{tpu_custom_call.1} parent=11 // pred_check_branch
          %198 = sbr.rel (%p196) target = $region16
        $region15: #{tpu_custom_call.1} parent=11 // pred_region
          _
        $region16: #{tpu_custom_call.1} parent=11 // pred_fallthru
          _
        // Predicated region
        $region17: #{tpu_custom_call.1} parent=11 // pred_check
          %p199 = pneg %p97
        $region18: #{tpu_custom_call.1} parent=11 // pred_check_branch
          %201 = sbr.rel (%p199) target = $region20
        $region19: #{tpu_custom_call.1} parent=11 // pred_region
          _
        $region20: #{tpu_custom_call.1} parent=11 // pred_fallthru
          _
      $region12: #{tpu_custom_call.1} parent=5 // pred_fallthru
        _
      %p202 = scmp.lt.s32.totalorder %s15, 2
      // Predicated region
      $region21: #{tpu_custom_call.1} parent=5 // pred_check
        %p203 = pneg %p202
      $region22: #{tpu_custom_call.1} parent=5 // pred_check_branch
        %205 = sbr.rel (%p203) target = $region24
      $region23: #{tpu_custom_call.1} parent=5 // pred_region
        // Predicated region
        $region25: #{tpu_custom_call.1} parent=23 // pred_check
          %p206 = pneg %p49
        $region26: #{tpu_custom_call.1} parent=23 // pred_check_branch
          %208 = sbr.rel (%p206) target = $region28
        $region27: #{tpu_custom_call.1} parent=23 // pred_region
          %p209 = scmp.lt.s32.totalorder %s22, 1
          %s210 = scalar_select %p209, %s22, 1
          %p211 = scmp.lt.s32.totalorder %s23, 0
          %s212 = scalar_select %p211, %s23, 0
          %s213 = smul.addr %s212, 2
          %s214 = smul.addr %s210, 2
          %s215 = sadd.s32 %s213, %s214
          %s216 = smul.addr %s215, 4
          %s217 = scalar_lea.vmem %s0, %s216
        $region28: #{tpu_custom_call.1} parent=23 // pred_fallthru
          _
      $region24: #{tpu_custom_call.1} parent=5 // pred_fallthru
        _
      %p218 = scmp.le.s32.totalorder 1, %s15
      %p219 = scmp.lt.s32.totalorder %s15, 3
      %p220 = pnand %p218, %p219
      %p221 = pneg %p220
      // Predicated region
      $region29: #{tpu_custom_call.1} parent=5 // pred_check
        _
      $region30: #{tpu_custom_call.1} parent=5 // pred_check_branch
        %223 = sbr.rel (%p220) target = $region32
      $region31: #{tpu_custom_call.1} parent=5 // pred_region
        %s224 = ssub.s32 %s15, 1
        %p225 = scmp.lt.s32.totalorder %s24, 1
        %s226 = scalar_select %p225, %s24, 1
        %p227 = scmp.lt.s32.totalorder %s25, 0
        %s228 = scalar_select %p227, %s25, 0
        %s229 = smul.addr %s228, 2
        %s230 = smul.addr %s226, 2
        %s231 = sadd.s32 %s229, %s230
        %s232 = smul.addr %s231, 4
        %s233 = scalar_lea.vmem %s0, %s232
        %p234 = pneg %p55
        %p235 = pneg %p52
        %p236 = pneg %p76
        %p237 = pneg %p73
        %p238 = pneg %p97
        %p239 = pneg %p94
        %p240 = pneg %p125
        %p241 = pneg %p122
        %s242 = sand.u32 %s112, 1
        %s243 = scalar_lea.sflag [#allocation4], %s242
        %s244 = sand.u32 %s112, 1
        %s245 = smul.addr %s244, 4
        %s246 = scalar_lea.vmem [#allocation3], %s245
        %p247 = pneg %p153
        %p248 = pneg %p150
        %p249 = scmp.lt.s32.totalorder %s24, 1
        %s250 = scalar_select %p249, %s24, 1
        %p251 = scmp.lt.s32.totalorder %s25, 0
        %s252 = scalar_select %p251, %s25, 0
        %s253 = sadd.s32 %s252, %s250
        %s254 = smul.addr %s253, 8
        %s255 = scalar_lea.vmem %s4, %s254
        %p256 = pneg %p181
        %p257 = pneg %p178
        %p258 = scmp.lt.s32.totalorder %s24, 1
        %s259 = scalar_select %p258, %s24, 1
        %p260 = scmp.lt.s32.totalorder %s25, 0
        %s261 = scalar_select %p260, %s25, 0
        %s262 = sadd.s32 %s261, %s259
        %s263 = smul.addr %s262, 8
        %s264 = scalar_lea.vmem %s5, %s263
        %p265 = scmp.lt.s32.totalorder %s24, 1
        %s266 = scalar_select %p265, %s24, 1
        %p267 = scmp.lt.s32.totalorder %s25, 0
        %s268 = scalar_select %p267, %s25, 0
        %s269 = smul.addr %s268, 2
        %s270 = smul.addr %s266, 2
        %s271 = sadd.s32 %s269, %s270
        %s272 = smul.addr %s271, 4
        %s273 = scalar_lea.vmem %s0, %s272
        %p274 = scmp.lt.s32.totalorder %s24, 1
        %s275 = scalar_select %p274, %s24, 1
        %p276 = scmp.lt.s32.totalorder %s25, 0
        %s277 = scalar_select %p276, %s25, 0
        %s278 = sadd.s32 %s277, %s275
        %s279 = smul.addr %s278, 8
        %s280 = scalar_lea.vmem %s4, %s279
        %p281 = scmp.lt.s32.totalorder %s24, 1
        %s282 = scalar_select %p281, %s24, 1
        %p283 = scmp.lt.s32.totalorder %s25, 0
        %s284 = scalar_select %p283, %s25, 0
        %s285 = sadd.s32 %s284, %s282
        %s286 = smul.addr %s285, 8
        %s287 = scalar_lea.vmem %s5, %s286
        %v289 = vld [vmem:[%s273] sm:$0xff]
        %v290 = vmax.bf16 %v289, 0
        %291 = vst [vmem:[#allocation2] sm:$0xff] 0.0
        %v292 = vld [vmem:[#allocation2] sm:$0xff]
        %v293 = vld [vmem:[%s1] sm:$0xf]
        %vm294 = vcmask 64512
        %v296 = vsel %vm294, %v293, 0
        %vm298 = vcmask 1043456
        %v300 = vsel %vm298, %v290, 0
        %302 = vmatprep.subr.bf16.mxu0 0
        %303 = vmatpush1.bf16.msra.mxu0 %v300
        %304 = vmatprep.subr.bf16.mxu0 0
        %305 = vmatpush1.bf16.msra.mxu0 0
        %306 = vmatprep.subr.bf16.mxu0 0
        %307 = vmatpush1.bf16.msra.mxu0 0
        %308 = vmatprep.subr.bf16.mxu0 0
        %309 = vmatpush1.bf16.msra.mxu0 0
        %310 = vmatprep.subr.bf16.mxu0 0
        %311 = vmatpush1.bf16.msra.mxu0 0
        %312 = vmatprep.subr.bf16.mxu0 0
        %313 = vmatpush1.bf16.msra.mxu0 0
        %314 = vmatprep.subr.bf16.mxu0 0
        %315 = vmatpush1.bf16.msra.mxu0 0
        %316 = vmatprep.subr.bf16.mxu0 0
        %317 = vmatpush1.bf16.msra.mxu0 0
        %318 = vmatprep.subr.bf16.mxu0 0
        %319 = vmatpush1.bf16.msra.mxu0 0
        %320 = vmatprep.subr.bf16.mxu0 0
        %321 = vmatpush1.bf16.msra.mxu0 0
        %322 = vmatprep.subr.bf16.mxu0 0
        %323 = vmatpush1.bf16.msra.mxu0 0
        %324 = vmatprep.subr.bf16.mxu0 0
        %325 = vmatpush1.bf16.msra.mxu0 0
        %326 = vmatprep.subr.bf16.mxu0 0
        %327 = vmatpush1.bf16.msra.mxu0 0
        %328 = vmatprep.subr.bf16.mxu0 0
        %329 = vmatpush1.bf16.msra.mxu0 0
        %330 = vmatprep.subr.bf16.mxu0 0
        %331 = vmatpush1.bf16.msra.mxu0 0
        %332 = vmatprep.subr.bf16.mxu0 0
        %333 = vmatpush1.bf16.msra.mxu0 0
        %334 = vmatprep.mubr.bf16.mxu0 0
        %335 = vmatmul.mubr.bf16.gmra.mrb[0].mxu0 %v296
        %v336 = vpop.f32.mrb[0].mxu0
        %v337 = vadd.f32 0.0, %v336
        %v338 = vpop.f32.mrb[0].mxu0
        %v339 = vpop.f32.mrb[0].mxu0
        %v340 = vpop.f32.mrb[0].mxu0
        %341 = vdwg.mxu0
        %v342 = vadd.f32 %v292, %v337
        %343 = vst [vmem:[#allocation2] sm:$0xff] %v342
        %v344 = vld [vmem:[#allocation2] sm:$0xff]
        %s345 = scalar_lea.vmem %s1, 4
        %v346 = vld [vmem:[%s345] sm:$0xf]
        %v348 = vunpack.c.l.b16 %v290
        %v349 = vunpack.c.h.b16 %v290
        %v350 = vpack.c.b16 %v348, %v348
        %v351 = vpack.c.b16 %v349, %v349
        %352 = vrot.lane.b32.xlu0 %v350, 127
        %v353 = vpop.permute.xlu0 %352
        %354 = vrot.lane.b32.xlu0 %v351, 127
        %v355 = vpop.permute.xlu0 %354
        %vm356 = vcmask 1039360
        %v357 = vsel %vm356, %v353, %v355
        %v359 = vsel %vm294, %v346, 0
        %v362 = vsel %vm298, %v357, 0
        %364 = vmatprep.subr.bf16.mxu0 0
        %365 = vmatpush1.bf16.msra.mxu0 %v362
        %366 = vmatprep.subr.bf16.mxu0 0
        %367 = vmatpush1.bf16.msra.mxu0 0
        %368 = vmatprep.subr.bf16.mxu0 0
        %369 = vmatpush1.bf16.msra.mxu0 0
        %370 = vmatprep.subr.bf16.mxu0 0
        %371 = vmatpush1.bf16.msra.mxu0 0
        %372 = vmatprep.subr.bf16.mxu0 0
        %373 = vmatpush1.bf16.msra.mxu0 0
        %374 = vmatprep.subr.bf16.mxu0 0
        %375 = vmatpush1.bf16.msra.mxu0 0
        %376 = vmatprep.subr.bf16.mxu0 0
        %377 = vmatpush1.bf16.msra.mxu0 0
        %378 = vmatprep.subr.bf16.mxu0 0
        %379 = vmatpush1.bf16.msra.mxu0 0
        %380 = vmatprep.subr.bf16.mxu0 0
        %381 = vmatpush1.bf16.msra.mxu0 0
        %382 = vmatprep.subr.bf16.mxu0 0
        %383 = vmatpush1.bf16.msra.mxu0 0
        %384 = vmatprep.subr.bf16.mxu0 0
        %385 = vmatpush1.bf16.msra.mxu0 0
        %386 = vmatprep.subr.bf16.mxu0 0
        %387 = vmatpush1.bf16.msra.mxu0 0
        %388 = vmatprep.subr.bf16.mxu0 0
        %389 = vmatpush1.bf16.msra.mxu0 0
        %390 = vmatprep.subr.bf16.mxu0 0
        %391 = vmatpush1.bf16.msra.mxu0 0
        %392 = vmatprep.subr.bf16.mxu0 0
        %393 = vmatpush1.bf16.msra.mxu0 0
        %394 = vmatprep.subr.bf16.mxu0 0
        %395 = vmatpush1.bf16.msra.mxu0 0
        %396 = vmatprep.mubr.bf16.mxu0 0
        %397 = vmatmul.mubr.bf16.gmra.mrb[0].mxu0 %v359
        %v398 = vpop.f32.mrb[0].mxu0
        %v399 = vadd.f32 0.0, %v398
        %v400 = vpop.f32.mrb[0].mxu0
        %v401 = vpop.f32.mrb[0].mxu0
        %v402 = vpop.f32.mrb[0].mxu0
        %403 = vdwg.mxu0
        %v404 = vadd.f32 %v344, %v399
        %405 = vst [vmem:[#allocation2] sm:$0xff] %v404
        %v406 = vld [vmem:[#allocation2] sm:$0xff]
        %s407 = scalar_lea.vmem %s1, 8
        %v408 = vld [vmem:[%s407] sm:$0xf]
        %409 = vrot.lane.b32.xlu0 %v350, 126
        %v410 = vpop.permute.xlu0 %409
        %411 = vrot.lane.b32.xlu0 %v351, 126
        %v412 = vpop.permute.xlu0 %411
        %vm413 = vcmask 1031168
        %v414 = vsel %vm413, %v410, %v412
        %v416 = vsel %vm294, %v408, 0
        %v419 = vsel %vm298, %v414, 0
        %421 = vmatprep.subr.bf16.mxu0 0
        %422 = vmatpush1.bf16.msra.mxu0 %v419
        %423 = vmatprep.subr.bf16.mxu0 0
        %424 = vmatpush1.bf16.msra.mxu0 0
        %425 = vmatprep.subr.bf16.mxu0 0
        %426 = vmatpush1.bf16.msra.mxu0 0
        %427 = vmatprep.subr.bf16.mxu0 0
        %428 = vmatpush1.bf16.msra.mxu0 0
        %429 = vmatprep.subr.bf16.mxu0 0
        %430 = vmatpush1.bf16.msra.mxu0 0
        %431 = vmatprep.subr.bf16.mxu0 0
        %432 = vmatpush1.bf16.msra.mxu0 0
        %433 = vmatprep.subr.bf16.mxu0 0
        %434 = vmatpush1.bf16.msra.mxu0 0
        %435 = vmatprep.subr.bf16.mxu0 0
        %436 = vmatpush1.bf16.msra.mxu0 0
        %437 = vmatprep.subr.bf16.mxu0 0
        %438 = vmatpush1.bf16.msra.mxu0 0
        %439 = vmatprep.subr.bf16.mxu0 0
        %440 = vmatpush1.bf16.msra.mxu0 0
        %441 = vmatprep.subr.bf16.mxu0 0
        %442 = vmatpush1.bf16.msra.mxu0 0
        %443 = vmatprep.subr.bf16.mxu0 0
        %444 = vmatpush1.bf16.msra.mxu0 0
        %445 = vmatprep.subr.bf16.mxu0 0
        %446 = vmatpush1.bf16.msra.mxu0 0
        %447 = vmatprep.subr.bf16.mxu0 0
        %448 = vmatpush1.bf16.msra.mxu0 0
        %449 = vmatprep.subr.bf16.mxu0 0
        %450 = vmatpush1.bf16.msra.mxu0 0
        %451 = vmatprep.subr.bf16.mxu0 0
        %452 = vmatpush1.bf16.msra.mxu0 0
        %453 = vmatprep.mubr.bf16.mxu0 0
        %454 = vmatmul.mubr.bf16.gmra.mrb[0].mxu0 %v416
        %v455 = vpop.f32.mrb[0].mxu0
        %v456 = vadd.f32 0.0, %v455
        %v457 = vpop.f32.mrb[0].mxu0
        %v458 = vpop.f32.mrb[0].mxu0
        %v459 = vpop.f32.mrb[0].mxu0
        %460 = vdwg.mxu0
        %v461 = vadd.f32 %v406, %v456
        %462 = vst [vmem:[#allocation2] sm:$0xff] %v461
        %v463 = vld [vmem:[#allocation2] sm:$0xff]
        %s464 = scalar_lea.vmem %s1, 12
        %v465 = vld [vmem:[%s464] sm:$0xf]
        %466 = vrot.lane.b32.xlu0 %v350, 125
        %v467 = vpop.permute.xlu0 %466
        %468 = vrot.lane.b32.xlu0 %v351, 125
        %v469 = vpop.permute.xlu0 %468
        %vm470 = vcmask 1022976
        %v471 = vsel %vm470, %v467, %v469
        %v473 = vsel %vm294, %v465, 0
        %v476 = vsel %vm298, %v471, 0
        %478 = vmatprep.subr.bf16.mxu0 0
        %479 = vmatpush1.bf16.msra.mxu0 %v476
        %480 = vmatprep.subr.bf16.mxu0 0
        %481 = vmatpush1.bf16.msra.mxu0 0
        %482 = vmatprep.subr.bf16.mxu0 0
        %483 = vmatpush1.bf16.msra.mxu0 0
        %484 = vmatprep.subr.bf16.mxu0 0
        %485 = vmatpush1.bf16.msra.mxu0 0
        %486 = vmatprep.subr.bf16.mxu0 0
        %487 = vmatpush1.bf16.msra.mxu0 0
        %488 = vmatprep.subr.bf16.mxu0 0
        %489 = vmatpush1.bf16.msra.mxu0 0
        %490 = vmatprep.subr.bf16.mxu0 0
        %491 = vmatpush1.bf16.msra.mxu0 0
        %492 = vmatprep.subr.bf16.mxu0 0
        %493 = vmatpush1.bf16.msra.mxu0 0
        %494 = vmatprep.subr.bf16.mxu0 0
        %495 = vmatpush1.bf16.msra.mxu0 0
        %496 = vmatprep.subr.bf16.mxu0 0
        %497 = vmatpush1.bf16.msra.mxu0 0
        %498 = vmatprep.subr.bf16.mxu0 0
        %499 = vmatpush1.bf16.msra.mxu0 0
        %500 = vmatprep.subr.bf16.mxu0 0
        %501 = vmatpush1.bf16.msra.mxu0 0
        %502 = vmatprep.subr.bf16.mxu0 0
        %503 = vmatpush1.bf16.msra.mxu0 0
        %504 = vmatprep.subr.bf16.mxu0 0
        %505 = vmatpush1.bf16.msra.mxu0 0
        %506 = vmatprep.subr.bf16.mxu0 0
        %507 = vmatpush1.bf16.msra.mxu0 0
        %508 = vmatprep.subr.bf16.mxu0 0
        %509 = vmatpush1.bf16.msra.mxu0 0
        %510 = vmatprep.mubr.bf16.mxu0 0
        %511 = vmatmul.mubr.bf16.gmra.mrb[0].mxu0 %v473
        %v512 = vpop.f32.mrb[0].mxu0
        %v513 = vadd.f32 0.0, %v512
        %v514 = vpop.f32.mrb[0].mxu0
        %v515 = vpop.f32.mrb[0].mxu0
        %v516 = vpop.f32.mrb[0].mxu0
        %517 = vdwg.mxu0
        %v518 = vadd.f32 %v463, %v513
        %519 = vst [vmem:[#allocation2] sm:$0xff] %v518
        %v520 = vld [vmem:[#allocation2] sm:$0xff]
        %s521 = scalar_lea.vmem %s1, 16
        %v522 = vld [vmem:[%s521] sm:$0xf]
        %523 = vrot.lane.b32.xlu0 %v350, 124
        %v524 = vpop.permute.xlu0 %523
        %525 = vrot.lane.b32.xlu0 %v351, 124
        %v526 = vpop.permute.xlu0 %525
        %vm527 = vcmask 1014784
        %v528 = vsel %vm527, %v524, %v526
        %v530 = vsel %vm294, %v522, 0
        %v533 = vsel %vm298, %v528, 0
        %535 = vmatprep.subr.bf16.mxu0 0
        %536 = vmatpush1.bf16.msra.mxu0 %v533
        %537 = vmatprep.subr.bf16.mxu0 0
        %538 = vmatpush1.bf16.msra.mxu0 0
        %539 = vmatprep.subr.bf16.mxu0 0
        %540 = vmatpush1.bf16.msra.mxu0 0
        %541 = vmatprep.subr.bf16.mxu0 0
        %542 = vmatpush1.bf16.msra.mxu0 0
        %543 = vmatprep.subr.bf16.mxu0 0
        %544 = vmatpush1.bf16.msra.mxu0 0
        %545 = vmatprep.subr.bf16.mxu0 0
        %546 = vmatpush1.bf16.msra.mxu0 0
        %547 = vmatprep.subr.bf16.mxu0 0
        %548 = vmatpush1.bf16.msra.mxu0 0
        %549 = vmatprep.subr.bf16.mxu0 0
        %550 = vmatpush1.bf16.msra.mxu0 0
        %551 = vmatprep.subr.bf16.mxu0 0
        %552 = vmatpush1.bf16.msra.mxu0 0
        %553 = vmatprep.subr.bf16.mxu0 0
        %554 = vmatpush1.bf16.msra.mxu0 0
        %555 = vmatprep.subr.bf16.mxu0 0
        %556 = vmatpush1.bf16.msra.mxu0 0
        %557 = vmatprep.subr.bf16.mxu0 0
        %558 = vmatpush1.bf16.msra.mxu0 0
        %559 = vmatprep.subr.bf16.mxu0 0
        %560 = vmatpush1.bf16.msra.mxu0 0
        %561 = vmatprep.subr.bf16.mxu0 0
        %562 = vmatpush1.bf16.msra.mxu0 0
        %563 = vmatprep.subr.bf16.mxu0 0
        %564 = vmatpush1.bf16.msra.mxu0 0
        %565 = vmatprep.subr.bf16.mxu0 0
        %566 = vmatpush1.bf16.msra.mxu0 0
        %567 = vmatprep.mubr.bf16.mxu0 0
        %568 = vmatmul.mubr.bf16.gmra.mrb[0].mxu0 %v530
        %v569 = vpop.f32.mrb[0].mxu0
        %v570 = vadd.f32 0.0, %v569
        %v571 = vpop.f32.mrb[0].mxu0
        %v572 = vpop.f32.mrb[0].mxu0
        %v573 = vpop.f32.mrb[0].mxu0
        %574 = vdwg.mxu0
        %v575 = vadd.f32 %v520, %v570
        %576 = vst [vmem:[#allocation2] sm:$0xff] %v575
        %v577 = vld [vmem:[#allocation2] sm:$0xff]
        %s578 = scalar_lea.vmem %s1, 20
        %v579 = vld [vmem:[%s578] sm:$0xf]
        %580 = vrot.lane.b32.xlu0 %v350, 116
        %v581 = vpop.permute.xlu0 %580
        %582 = vrot.lane.b32.xlu0 %v351, 116
        %v583 = vpop.permute.xlu0 %582
        %vm584 = vcmask 949248
        %v585 = vsel %vm584, %v581, %v583
        %v587 = vsel %vm294, %v579, 0
        %v590 = vsel %vm298, %v585, 0
        %592 = vmatprep.subr.bf16.mxu0 0
        %593 = vmatpush1.bf16.msra.mxu0 %v590
        %594 = vmatprep.subr.bf16.mxu0 0
        %595 = vmatpush1.bf16.msra.mxu0 0
        %596 = vmatprep.subr.bf16.mxu0 0
        %597 = vmatpush1.bf16.msra.mxu0 0
        %598 = vmatprep.subr.bf16.mxu0 0
        %599 = vmatpush1.bf16.msra.mxu0 0
        %600 = vmatprep.subr.bf16.mxu0 0
        %601 = vmatpush1.bf16.msra.mxu0 0
        %602 = vmatprep.subr.bf16.mxu0 0
        %603 = vmatpush1.bf16.msra.mxu0 0
        %604 = vmatprep.subr.bf16.mxu0 0
        %605 = vmatpush1.bf16.msra.mxu0 0
        %606 = vmatprep.subr.bf16.mxu0 0
        %607 = vmatpush1.bf16.msra.mxu0 0
        %608 = vmatprep.subr.bf16.mxu0 0
        %609 = vmatpush1.bf16.msra.mxu0 0
        %610 = vmatprep.subr.bf16.mxu0 0
        %611 = vmatpush1.bf16.msra.mxu0 0
        %612 = vmatprep.subr.bf16.mxu0 0
        %613 = vmatpush1.bf16.msra.mxu0 0
        %614 = vmatprep.subr.bf16.mxu0 0
        %615 = vmatpush1.bf16.msra.mxu0 0
        %616 = vmatprep.subr.bf16.mxu0 0
        %617 = vmatpush1.bf16.msra.mxu0 0
        %618 = vmatprep.subr.bf16.mxu0 0
        %619 = vmatpush1.bf16.msra.mxu0 0
        %620 = vmatprep.subr.bf16.mxu0 0
        %621 = vmatpush1.bf16.msra.mxu0 0
        %622 = vmatprep.subr.bf16.mxu0 0
        %623 = vmatpush1.bf16.msra.mxu0 0
        %624 = vmatprep.mubr.bf16.mxu0 0
        %625 = vmatmul.mubr.bf16.gmra.mrb[0].mxu0 %v587
        %v626 = vpop.f32.mrb[0].mxu0
        %v627 = vadd.f32 0.0, %v626
        %v628 = vpop.f32.mrb[0].mxu0
        %v629 = vpop.f32.mrb[0].mxu0
        %v630 = vpop.f32.mrb[0].mxu0
        %631 = vdwg.mxu0
        %v632 = vadd.f32 %v577, %v627
        %633 = vst [vmem:[#allocation2] sm:$0xff] %v632
        %v634 = vld [vmem:[#allocation2] sm:$0xff]
        %s635 = scalar_lea.vmem %s1, 24
        %v636 = vld [vmem:[%s635] sm:$0xf]
        %637 = vrot.lane.b32.xlu0 %v350, 115
        %v638 = vpop.permute.xlu0 %637
        %639 = vrot.lane.b32.xlu0 %v351, 115
        %v640 = vpop.permute.xlu0 %639
        %vm641 = vcmask 941056
        %v642 = vsel %vm641, %v638, %v640
        %v644 = vsel %vm294, %v636, 0
        %v647 = vsel %vm298, %v642, 0
        %649 = vmatprep.subr.bf16.mxu0 0
        %650 = vmatpush1.bf16.msra.mxu0 %v647
        %651 = vmatprep.subr.bf16.mxu0 0
        %652 = vmatpush1.bf16.msra.mxu0 0
        %653 = vmatprep.subr.bf16.mxu0 0
        %654 = vmatpush1.bf16.msra.mxu0 0
        %655 = vmatprep.subr.bf16.mxu0 0
        %656 = vmatpush1.bf16.msra.mxu0 0
        %657 = vmatprep.subr.bf16.mxu0 0
        %658 = vmatpush1.bf16.msra.mxu0 0
        %659 = vmatprep.subr.bf16.mxu0 0
        %660 = vmatpush1.bf16.msra.mxu0 0
        %661 = vmatprep.subr.bf16.mxu0 0
        %662 = vmatpush1.bf16.msra.mxu0 0
        %663 = vmatprep.subr.bf16.mxu0 0
        %664 = vmatpush1.bf16.msra.mxu0 0
        %665 = vmatprep.subr.bf16.mxu0 0
        %666 = vmatpush1.bf16.msra.mxu0 0
        %667 = vmatprep.subr.bf16.mxu0 0
        %668 = vmatpush1.bf16.msra.mxu0 0
        %669 = vmatprep.subr.bf16.mxu0 0
        %670 = vmatpush1.bf16.msra.mxu0 0
        %671 = vmatprep.subr.bf16.mxu0 0
        %672 = vmatpush1.bf16.msra.mxu0 0
        %673 = vmatprep.subr.bf16.mxu0 0
        %674 = vmatpush1.bf16.msra.mxu0 0
        %675 = vmatprep.subr.bf16.mxu0 0
        %676 = vmatpush1.bf16.msra.mxu0 0
        %677 = vmatprep.subr.bf16.mxu0 0
        %678 = vmatpush1.bf16.msra.mxu0 0
        %679 = vmatprep.subr.bf16.mxu0 0
        %680 = vmatpush1.bf16.msra.mxu0 0
        %681 = vmatprep.mubr.bf16.mxu0 0
        %682 = vmatmul.mubr.bf16.gmra.mrb[0].mxu0 %v644
        %v683 = vpop.f32.mrb[0].mxu0
        %v684 = vadd.f32 0.0, %v683
        %v685 = vpop.f32.mrb[0].mxu0
        %v686 = vpop.f32.mrb[0].mxu0
        %v687 = vpop.f32.mrb[0].mxu0
        %688 = vdwg.mxu0
        %v689 = vadd.f32 %v634, %v684
        %690 = vst [vmem:[#allocation2] sm:$0xff] %v689
        %v691 = vld [vmem:[#allocation2] sm:$0xff]
        %s692 = scalar_lea.vmem %s1, 28
        %v693 = vld [vmem:[%s692] sm:$0xf]
        %694 = vrot.lane.b32.xlu0 %v350, 114
        %v695 = vpop.permute.xlu0 %694
        %696 = vrot.lane.b32.xlu0 %v351, 114
        %v697 = vpop.permute.xlu0 %696
        %vm698 = vcmask 932864
        %v699 = vsel %vm698, %v695, %v697
        %v701 = vsel %vm294, %v693, 0
        %v704 = vsel %vm298, %v699, 0
        %706 = vmatprep.subr.bf16.mxu0 0
        %707 = vmatpush1.bf16.msra.mxu0 %v704
        %708 = vmatprep.subr.bf16.mxu0 0
        %709 = vmatpush1.bf16.msra.mxu0 0
        %710 = vmatprep.subr.bf16.mxu0 0
        %711 = vmatpush1.bf16.msra.mxu0 0
        %712 = vmatprep.subr.bf16.mxu0 0
        %713 = vmatpush1.bf16.msra.mxu0 0
        %714 = vmatprep.subr.bf16.mxu0 0
        %715 = vmatpush1.bf16.msra.mxu0 0
        %716 = vmatprep.subr.bf16.mxu0 0
        %717 = vmatpush1.bf16.msra.mxu0 0
        %718 = vmatprep.subr.bf16.mxu0 0
        %719 = vmatpush1.bf16.msra.mxu0 0
        %720 = vmatprep.subr.bf16.mxu0 0
        %721 = vmatpush1.bf16.msra.mxu0 0
        %722 = vmatprep.subr.bf16.mxu0 0
        %723 = vmatpush1.bf16.msra.mxu0 0
        %724 = vmatprep.subr.bf16.mxu0 0
        %725 = vmatpush1.bf16.msra.mxu0 0
        %726 = vmatprep.subr.bf16.mxu0 0
        %727 = vmatpush1.bf16.msra.mxu0 0
        %728 = vmatprep.subr.bf16.mxu0 0
        %729 = vmatpush1.bf16.msra.mxu0 0
        %730 = vmatprep.subr.bf16.mxu0 0
        %731 = vmatpush1.bf16.msra.mxu0 0
        %732 = vmatprep.subr.bf16.mxu0 0
        %733 = vmatpush1.bf16.msra.mxu0 0
        %734 = vmatprep.subr.bf16.mxu0 0
        %735 = vmatpush1.bf16.msra.mxu0 0
        %736 = vmatprep.subr.bf16.mxu0 0
        %737 = vmatpush1.bf16.msra.mxu0 0
        %738 = vmatprep.mubr.bf16.mxu0 0
        %739 = vmatmul.mubr.bf16.gmra.mrb[0].mxu0 %v701
        %v740 = vpop.f32.mrb[0].mxu0
        %v741 = vadd.f32 0.0, %v740
        %v742 = vpop.f32.mrb[0].mxu0
        %v743 = vpop.f32.mrb[0].mxu0
        %v744 = vpop.f32.mrb[0].mxu0
        %745 = vdwg.mxu0
        %v746 = vadd.f32 %v691, %v741
        %747 = vst [vmem:[#allocation2] sm:$0xff] %v746
        %v748 = vld [vmem:[#allocation2] sm:$0xff]
        %s749 = scalar_lea.vmem %s1, 32
        %v750 = vld [vmem:[%s749] sm:$0xf]
        %751 = vrot.lane.b32.xlu0 %v350, 113
        %v752 = vpop.permute.xlu0 %751
        %753 = vrot.lane.b32.xlu0 %v351, 113
        %v754 = vpop.permute.xlu0 %753
        %vm755 = vcmask 924672
        %v756 = vsel %vm755, %v752, %v754
        %v758 = vsel %vm294, %v750, 0
        %v761 = vsel %vm298, %v756, 0
        %763 = vmatprep.subr.bf16.mxu0 0
        %764 = vmatpush1.bf16.msra.mxu0 %v761
        %765 = vmatprep.subr.bf16.mxu0 0
        %766 = vmatpush1.bf16.msra.mxu0 0
        %767 = vmatprep.subr.bf16.mxu0 0
        %768 = vmatpush1.bf16.msra.mxu0 0
        %769 = vmatprep.subr.bf16.mxu0 0
        %770 = vmatpush1.bf16.msra.mxu0 0
        %771 = vmatprep.subr.bf16.mxu0 0
        %772 = vmatpush1.bf16.msra.mxu0 0
        %773 = vmatprep.subr.bf16.mxu0 0
        %774 = vmatpush1.bf16.msra.mxu0 0
        %775 = vmatprep.subr.bf16.mxu0 0
        %776 = vmatpush1.bf16.msra.mxu0 0
        %777 = vmatprep.subr.bf16.mxu0 0
        %778 = vmatpush1.bf16.msra.mxu0 0
        %779 = vmatprep.subr.bf16.mxu0 0
        %780 = vmatpush1.bf16.msra.mxu0 0
        %781 = vmatprep.subr.bf16.mxu0 0
        %782 = vmatpush1.bf16.msra.mxu0 0
        %783 = vmatprep.subr.bf16.mxu0 0
        %784 = vmatpush1.bf16.msra.mxu0 0
        %785 = vmatprep.subr.bf16.mxu0 0
        %786 = vmatpush1.bf16.msra.mxu0 0
        %787 = vmatprep.subr.bf16.mxu0 0
        %788 = vmatpush1.bf16.msra.mxu0 0
        %789 = vmatprep.subr.bf16.mxu0 0
        %790 = vmatpush1.bf16.msra.mxu0 0
        %791 = vmatprep.subr.bf16.mxu0 0
        %792 = vmatpush1.bf16.msra.mxu0 0
        %793 = vmatprep.subr.bf16.mxu0 0
        %794 = vmatpush1.bf16.msra.mxu0 0
        %795 = vmatprep.mubr.bf16.mxu0 0
        %796 = vmatmul.mubr.bf16.gmra.mrb[0].mxu0 %v758
        %v797 = vpop.f32.mrb[0].mxu0
        %v798 = vadd.f32 0.0, %v797
        %v799 = vpop.f32.mrb[0].mxu0
        %v800 = vpop.f32.mrb[0].mxu0
        %v801 = vpop.f32.mrb[0].mxu0
        %802 = vdwg.mxu0
        %v803 = vadd.f32 %v748, %v798
        %804 = vst [vmem:[#allocation2] sm:$0xff] %v803
        %v805 = vld [vmem:[#allocation2] sm:$0xff]
        %s806 = scalar_lea.vmem %s1, 36
        %v807 = vld [vmem:[%s806] sm:$0xf]
        %808 = vrot.lane.b32.xlu0 %v350, 112
        %v809 = vpop.permute.xlu0 %808
        %810 = vrot.lane.b32.xlu0 %v351, 112
        %v811 = vpop.permute.xlu0 %810
        %vm812 = vcmask 916480
        %v813 = vsel %vm812, %v809, %v811
        %v815 = vsel %vm294, %v807, 0
        %v818 = vsel %vm298, %v813, 0
        %820 = vmatprep.subr.bf16.mxu0 0
        %821 = vmatpush1.bf16.msra.mxu0 %v818
        %822 = vmatprep.subr.bf16.mxu0 0
        %823 = vmatpush1.bf16.msra.mxu0 0
        %824 = vmatprep.subr.bf16.mxu0 0
        %825 = vmatpush1.bf16.msra.mxu0 0
        %826 = vmatprep.subr.bf16.mxu0 0
        %827 = vmatpush1.bf16.msra.mxu0 0
        %828 = vmatprep.subr.bf16.mxu0 0
        %829 = vmatpush1.bf16.msra.mxu0 0
        %830 = vmatprep.subr.bf16.mxu0 0
        %831 = vmatpush1.bf16.msra.mxu0 0
        %832 = vmatprep.subr.bf16.mxu0 0
        %833 = vmatpush1.bf16.msra.mxu0 0
        %834 = vmatprep.subr.bf16.mxu0 0
        %835 = vmatpush1.bf16.msra.mxu0 0
        %836 = vmatprep.subr.bf16.mxu0 0
        %837 = vmatpush1.bf16.msra.mxu0 0
        %838 = vmatprep.subr.bf16.mxu0 0
        %839 = vmatpush1.bf16.msra.mxu0 0
        %840 = vmatprep.subr.bf16.mxu0 0
        %841 = vmatpush1.bf16.msra.mxu0 0
        %842 = vmatprep.subr.bf16.mxu0 0
        %843 = vmatpush1.bf16.msra.mxu0 0
        %844 = vmatprep.subr.bf16.mxu0 0
        %845 = vmatpush1.bf16.msra.mxu0 0
        %846 = vmatprep.subr.bf16.mxu0 0
        %847 = vmatpush1.bf16.msra.mxu0 0
        %848 = vmatprep.subr.bf16.mxu0 0
        %849 = vmatpush1.bf16.msra.mxu0 0
        %850 = vmatprep.subr.bf16.mxu0 0
        %851 = vmatpush1.bf16.msra.mxu0 0
        %852 = vmatprep.mubr.bf16.mxu0 0
        %853 = vmatmul.mubr.bf16.gmra.mrb[0].mxu0 %v815
        %v854 = vpop.f32.mrb[0].mxu0
        %v855 = vadd.f32 0.0, %v854
        %v856 = vpop.f32.mrb[0].mxu0
        %v857 = vpop.f32.mrb[0].mxu0
        %v858 = vpop.f32.mrb[0].mxu0
        %859 = vdwg.mxu0
        %v860 = vadd.f32 %v805, %v855
        %861 = vst [vmem:[#allocation2] sm:$0xff] %v860
        %v862 = vld [vmem:[#allocation2] sm:$0xff]
        %s863 = scalar_lea.vmem %s1, 40
        %v864 = vld [vmem:[%s863] sm:$0xf]
        %865 = vrot.lane.b32.xlu0 %v350, 104
        %v866 = vpop.permute.xlu0 %865
        %867 = vrot.lane.b32.xlu0 %v351, 104
        %v868 = vpop.permute.xlu0 %867
        %vm869 = vcmask 850944
        %v870 = vsel %vm869, %v866, %v868
        %v872 = vsel %vm294, %v864, 0
        %v875 = vsel %vm298, %v870, 0
        %877 = vmatprep.subr.bf16.mxu0 0
        %878 = vmatpush1.bf16.msra.mxu0 %v875
        %879 = vmatprep.subr.bf16.mxu0 0
        %880 = vmatpush1.bf16.msra.mxu0 0
        %881 = vmatprep.subr.bf16.mxu0 0
        %882 = vmatpush1.bf16.msra.mxu0 0
        %883 = vmatprep.subr.bf16.mxu0 0
        %884 = vmatpush1.bf16.msra.mxu0 0
        %885 = vmatprep.subr.bf16.mxu0 0
        %886 = vmatpush1.bf16.msra.mxu0 0
        %887 = vmatprep.subr.bf16.mxu0 0
        %888 = vmatpush1.bf16.msra.mxu0 0
        %889 = vmatprep.subr.bf16.mxu0 0
        %890 = vmatpush1.bf16.msra.mxu0 0
        %891 = vmatprep.subr.bf16.mxu0 0
        %892 = vmatpush1.bf16.msra.mxu0 0
        %893 = vmatprep.subr.bf16.mxu0 0
        %894 = vmatpush1.bf16.msra.mxu0 0
        %895 = vmatprep.subr.bf16.mxu0 0
        %896 = vmatpush1.bf16.msra.mxu0 0
        %897 = vmatprep.subr.bf16.mxu0 0
        %898 = vmatpush1.bf16.msra.mxu0 0
        %899 = vmatprep.subr.bf16.mxu0 0
        %900 = vmatpush1.bf16.msra.mxu0 0
        %901 = vmatprep.subr.bf16.mxu0 0
        %902 = vmatpush1.bf16.msra.mxu0 0
        %903 = vmatprep.subr.bf16.mxu0 0
        %904 = vmatpush1.bf16.msra.mxu0 0
        %905 = vmatprep.subr.bf16.mxu0 0
        %906 = vmatpush1.bf16.msra.mxu0 0
        %907 = vmatprep.subr.bf16.mxu0 0
        %908 = vmatpush1.bf16.msra.mxu0 0
        %909 = vmatprep.mubr.bf16.mxu0 0
        %910 = vmatmul.mubr.bf16.gmra.mrb[0].mxu0 %v872
        %v911 = vpop.f32.mrb[0].mxu0
        %v912 = vadd.f32 0.0, %v911
        %v913 = vpop.f32.mrb[0].mxu0
        %v914 = vpop.f32.mrb[0].mxu0
        %v915 = vpop.f32.mrb[0].mxu0
        %916 = vdwg.mxu0
        %v917 = vadd.f32 %v862, %v912
        %918 = vst [vmem:[#allocation2] sm:$0xff] %v917
        %v919 = vld [vmem:[#allocation2] sm:$0xff]
        %s920 = scalar_lea.vmem %s1, 44
        %v921 = vld [vmem:[%s920] sm:$0xf]
        %922 = vrot.lane.b32.xlu0 %v350, 103
        %v923 = vpop.permute.xlu0 %922
        %924 = vrot.lane.b32.xlu0 %v351, 103
        %v925 = vpop.permute.xlu0 %924
        %vm926 = vcmask 842752
        %v927 = vsel %vm926, %v923, %v925
        %v929 = vsel %vm294, %v921, 0
        %v932 = vsel %vm298, %v927, 0
        %934 = vmatprep.subr.bf16.mxu0 0
        %935 = vmatpush1.bf16.msra.mxu0 %v932
        %936 = vmatprep.subr.bf16.mxu0 0
        %937 = vmatpush1.bf16.msra.mxu0 0
        %938 = vmatprep.subr.bf16.mxu0 0
        %939 = vmatpush1.bf16.msra.mxu0 0
        %940 = vmatprep.subr.bf16.mxu0 0
        %941 = vmatpush1.bf16.msra.mxu0 0
        %942 = vmatprep.subr.bf16.mxu0 0
        %943 = vmatpush1.bf16.msra.mxu0 0
        %944 = vmatprep.subr.bf16.mxu0 0
        %945 = vmatpush1.bf16.msra.mxu0 0
        %946 = vmatprep.subr.bf16.mxu0 0
        %947 = vmatpush1.bf16.msra.mxu0 0
        %948 = vmatprep.subr.bf16.mxu0 0
        %949 = vmatpush1.bf16.msra.mxu0 0
        %950 = vmatprep.subr.bf16.mxu0 0
        %951 = vmatpush1.bf16.msra.mxu0 0
        %952 = vmatprep.subr.bf16.mxu0 0
        %953 = vmatpush1.bf16.msra.mxu0 0
        %954 = vmatprep.subr.bf16.mxu0 0
        %955 = vmatpush1.bf16.msra.mxu0 0
        %956 = vmatprep.subr.bf16.mxu0 0
        %957 = vmatpush1.bf16.msra.mxu0 0
        %958 = vmatprep.subr.bf16.mxu0 0
        %959 = vmatpush1.bf16.msra.mxu0 0
        %960 = vmatprep.subr.bf16.mxu0 0
        %961 = vmatpush1.bf16.msra.mxu0 0
        %962 = vmatprep.subr.bf16.mxu0 0
        %963 = vmatpush1.bf16.msra.mxu0 0
        %964 = vmatprep.subr.bf16.mxu0 0
        %965 = vmatpush1.bf16.msra.mxu0 0
        %966 = vmatprep.mubr.bf16.mxu0 0
        %967 = vmatmul.mubr.bf16.gmra.mrb[0].mxu0 %v929
        %v968 = vpop.f32.mrb[0].mxu0
        %v969 = vadd.f32 0.0, %v968
        %v970 = vpop.f32.mrb[0].mxu0
        %v971 = vpop.f32.mrb[0].mxu0
        %v972 = vpop.f32.mrb[0].mxu0
        %973 = vdwg.mxu0
        %v974 = vadd.f32 %v919, %v969
        %975 = vst [vmem:[#allocation2] sm:$0xff] %v974
        %v976 = vld [vmem:[#allocation2] sm:$0xff]
        %s977 = scalar_lea.vmem %s1, 48
        %v978 = vld [vmem:[%s977] sm:$0xf]
        %979 = vrot.lane.b32.xlu0 %v350, 102
        %v980 = vpop.permute.xlu0 %979
        %981 = vrot.lane.b32.xlu0 %v351, 102
        %v982 = vpop.permute.xlu0 %981
        %vm983 = vcmask 834560
        %v984 = vsel %vm983, %v980, %v982
        %v986 = vsel %vm294, %v978, 0
        %v989 = vsel %vm298, %v984, 0
        %991 = vmatprep.subr.bf16.mxu0 0
        %992 = vmatpush1.bf16.msra.mxu0 %v989
        %993 = vmatprep.subr.bf16.mxu0 0
        %994 = vmatpush1.bf16.msra.mxu0 0
        %995 = vmatprep.subr.bf16.mxu0 0
        %996 = vmatpush1.bf16.msra.mxu0 0
        %997 = vmatprep.subr.bf16.mxu0 0
        %998 = vmatpush1.bf16.msra.mxu0 0
        %999 = vmatprep.subr.bf16.mxu0 0
        %1000 = vmatpush1.bf16.msra.mxu0 0
        %1001 = vmatprep.subr.bf16.mxu0 0
        %1002 = vmatpush1.bf16.msra.mxu0 0
        %1003 = vmatprep.subr.bf16.mxu0 0
        %1004 = vmatpush1.bf16.msra.mxu0 0
        %1005 = vmatprep.subr.bf16.mxu0 0
        %1006 = vmatpush1.bf16.msra.mxu0 0
        %1007 = vmatprep.subr.bf16.mxu0 0
        %1008 = vmatpush1.bf16.msra.mxu0 0
        %1009 = vmatprep.subr.bf16.mxu0 0
        %1010 = vmatpush1.bf16.msra.mxu0 0
        %1011 = vmatprep.subr.bf16.mxu0 0
        %1012 = vmatpush1.bf16.msra.mxu0 0
        %1013 = vmatprep.subr.bf16.mxu0 0
        %1014 = vmatpush1.bf16.msra.mxu0 0
        %1015 = vmatprep.subr.bf16.mxu0 0
        %1016 = vmatpush1.bf16.msra.mxu0 0
        %1017 = vmatprep.subr.bf16.mxu0 0
        %1018 = vmatpush1.bf16.msra.mxu0 0
        %1019 = vmatprep.subr.bf16.mxu0 0
        %1020 = vmatpush1.bf16.msra.mxu0 0
        %1021 = vmatprep.subr.bf16.mxu0 0
        %1022 = vmatpush1.bf16.msra.mxu0 0
        %1023 = vmatprep.mubr.bf16.mxu0 0
        %1024 = vmatmul.mubr.bf16.gmra.mrb[0].mxu0 %v986
        %v1025 = vpop.f32.mrb[0].mxu0
        %v1026 = vadd.f32 0.0, %v1025
        %v1027 = vpop.f32.mrb[0].mxu0
        %v1028 = vpop.f32.mrb[0].mxu0
        %v1029 = vpop.f32.mrb[0].mxu0
        %1030 = vdwg.mxu0
        %v1031 = vadd.f32 %v976, %v1026
        %1032 = vst [vmem:[#allocation2] sm:$0xff] %v1031
        %v1033 = vld [vmem:[#allocation2] sm:$0xff]
        %s1034 = scalar_lea.vmem %s1, 52
        %v1035 = vld [vmem:[%s1034] sm:$0xf]
        %1036 = vrot.lane.b32.xlu0 %v350, 101
        %v1037 = vpop.permute.xlu0 %1036
        %1038 = vrot.lane.b32.xlu0 %v351, 101
        %v1039 = vpop.permute.xlu0 %1038
        %vm1040 = vcmask 826368
        %v1041 = vsel %vm1040, %v1037, %v1039
        %v1043 = vsel %vm294, %v1035, 0
        %v1046 = vsel %vm298, %v1041, 0
        %1048 = vmatprep.subr.bf16.mxu0 0
        %1049 = vmatpush1.bf16.msra.mxu0 %v1046
        %1050 = vmatprep.subr.bf16.mxu0 0
        %1051 = vmatpush1.bf16.msra.mxu0 0
        %1052 = vmatprep.subr.bf16.mxu0 0
        %1053 = vmatpush1.bf16.msra.mxu0 0
        %1054 = vmatprep.subr.bf16.mxu0 0
        %1055 = vmatpush1.bf16.msra.mxu0 0
        %1056 = vmatprep.subr.bf16.mxu0 0
        %1057 = vmatpush1.bf16.msra.mxu0 0
        %1058 = vmatprep.subr.bf16.mxu0 0
        %1059 = vmatpush1.bf16.msra.mxu0 0
        %1060 = vmatprep.subr.bf16.mxu0 0
        %1061 = vmatpush1.bf16.msra.mxu0 0
        %1062 = vmatprep.subr.bf16.mxu0 0
        %1063 = vmatpush1.bf16.msra.mxu0 0
        %1064 = vmatprep.subr.bf16.mxu0 0
        %1065 = vmatpush1.bf16.msra.mxu0 0
        %1066 = vmatprep.subr.bf16.mxu0 0
        %1067 = vmatpush1.bf16.msra.mxu0 0
        %1068 = vmatprep.subr.bf16.mxu0 0
        %1069 = vmatpush1.bf16.msra.mxu0 0
        %1070 = vmatprep.subr.bf16.mxu0 0
        %1071 = vmatpush1.bf16.msra.mxu0 0
        %1072 = vmatprep.subr.bf16.mxu0 0
        %1073 = vmatpush1.bf16.msra.mxu0 0
        %1074 = vmatprep.subr.bf16.mxu0 0
        %1075 = vmatpush1.bf16.msra.mxu0 0
        %1076 = vmatprep.subr.bf16.mxu0 0
        %1077 = vmatpush1.bf16.msra.mxu0 0
        %1078 = vmatprep.subr.bf16.mxu0 0
        %1079 = vmatpush1.bf16.msra.mxu0 0
        %1080 = vmatprep.mubr.bf16.mxu0 0
        %1081 = vmatmul.mubr.bf16.gmra.mrb[0].mxu0 %v1043
        %v1082 = vpop.f32.mrb[0].mxu0
        %v1083 = vadd.f32 0.0, %v1082
        %v1084 = vpop.f32.mrb[0].mxu0
        %v1085 = vpop.f32.mrb[0].mxu0
        %v1086 = vpop.f32.mrb[0].mxu0
        %1087 = vdwg.mxu0
        %v1088 = vadd.f32 %v1033, %v1083
        %1089 = vst [vmem:[#allocation2] sm:$0xff] %v1088
        %v1090 = vld [vmem:[#allocation2] sm:$0xff]
        %s1091 = scalar_lea.vmem %s1, 56
        %v1092 = vld [vmem:[%s1091] sm:$0xf]
        %1093 = vrot.lane.b32.xlu0 %v350, 100
        %v1094 = vpop.permute.xlu0 %1093
        %1095 = vrot.lane.b32.xlu0 %v351, 100
        %v1096 = vpop.permute.xlu0 %1095
        %vm1097 = vcmask 818176
        %v1098 = vsel %vm1097, %v1094, %v1096
        %v1100 = vsel %vm294, %v1092, 0
        %v1103 = vsel %vm298, %v1098, 0
        %1105 = vmatprep.subr.bf16.mxu0 0
        %1106 = vmatpush1.bf16.msra.mxu0 %v1103
        %1107 = vmatprep.subr.bf16.mxu0 0
        %1108 = vmatpush1.bf16.msra.mxu0 0
        %1109 = vmatprep.subr.bf16.mxu0 0
        %1110 = vmatpush1.bf16.msra.mxu0 0
        %1111 = vmatprep.subr.bf16.mxu0 0
        %1112 = vmatpush1.bf16.msra.mxu0 0
        %1113 = vmatprep.subr.bf16.mxu0 0
        %1114 = vmatpush1.bf16.msra.mxu0 0
        %1115 = vmatprep.subr.bf16.mxu0 0
        %1116 = vmatpush1.bf16.msra.mxu0 0
        %1117 = vmatprep.subr.bf16.mxu0 0
        %1118 = vmatpush1.bf16.msra.mxu0 0
        %1119 = vmatprep.subr.bf16.mxu0 0
        %1120 = vmatpush1.bf16.msra.mxu0 0
        %1121 = vmatprep.subr.bf16.mxu0 0
        %1122 = vmatpush1.bf16.msra.mxu0 0
        %1123 = vmatprep.subr.bf16.mxu0 0
        %1124 = vmatpush1.bf16.msra.mxu0 0
        %1125 = vmatprep.subr.bf16.mxu0 0
        %1126 = vmatpush1.bf16.msra.mxu0 0
        %1127 = vmatprep.subr.bf16.mxu0 0
        %1128 = vmatpush1.bf16.msra.mxu0 0
        %1129 = vmatprep.subr.bf16.mxu0 0
        %1130 = vmatpush1.bf16.msra.mxu0 0
        %1131 = vmatprep.subr.bf16.mxu0 0
        %1132 = vmatpush1.bf16.msra.mxu0 0
        %1133 = vmatprep.subr.bf16.mxu0 0
        %1134 = vmatpush1.bf16.msra.mxu0 0
        %1135 = vmatprep.subr.bf16.mxu0 0
        %1136 = vmatpush1.bf16.msra.mxu0 0
        %1137 = vmatprep.mubr.bf16.mxu0 0
        %1138 = vmatmul.mubr.bf16.gmra.mrb[0].mxu0 %v1100
        %v1139 = vpop.f32.mrb[0].mxu0
        %v1140 = vadd.f32 0.0, %v1139
        %v1141 = vpop.f32.mrb[0].mxu0
        %v1142 = vpop.f32.mrb[0].mxu0
        %v1143 = vpop.f32.mrb[0].mxu0
        %1144 = vdwg.mxu0
        %v1145 = vadd.f32 %v1090, %v1140
        %1146 = vst [vmem:[#allocation2] sm:$0xff] %v1145
        %v1147 = vld [vmem:[#allocation2] sm:$0xff]
        %s1148 = scalar_lea.vmem %s1, 60
        %v1149 = vld [vmem:[%s1148] sm:$0xf]
        %1150 = vrot.lane.b32.xlu0 %v350, 92
        %v1151 = vpop.permute.xlu0 %1150
        %1152 = vrot.lane.b32.xlu0 %v351, 92
        %v1153 = vpop.permute.xlu0 %1152
        %vm1154 = vcmask 752640
        %v1155 = vsel %vm1154, %v1151, %v1153
        %v1157 = vsel %vm294, %v1149, 0
        %v1160 = vsel %vm298, %v1155, 0
        %1162 = vmatprep.subr.bf16.mxu0 0
        %1163 = vmatpush1.bf16.msra.mxu0 %v1160
        %1164 = vmatprep.subr.bf16.mxu0 0
        %1165 = vmatpush1.bf16.msra.mxu0 0
        %1166 = vmatprep.subr.bf16.mxu0 0
        %1167 = vmatpush1.bf16.msra.mxu0 0
        %1168 = vmatprep.subr.bf16.mxu0 0
        %1169 = vmatpush1.bf16.msra.mxu0 0
        %1170 = vmatprep.subr.bf16.mxu0 0
        %1171 = vmatpush1.bf16.msra.mxu0 0
        %1172 = vmatprep.subr.bf16.mxu0 0
        %1173 = vmatpush1.bf16.msra.mxu0 0
        %1174 = vmatprep.subr.bf16.mxu0 0
        %1175 = vmatpush1.bf16.msra.mxu0 0
        %1176 = vmatprep.subr.bf16.mxu0 0
        %1177 = vmatpush1.bf16.msra.mxu0 0
        %1178 = vmatprep.subr.bf16.mxu0 0
        %1179 = vmatpush1.bf16.msra.mxu0 0
        %1180 = vmatprep.subr.bf16.mxu0 0
        %1181 = vmatpush1.bf16.msra.mxu0 0
        %1182 = vmatprep.subr.bf16.mxu0 0
        %1183 = vmatpush1.bf16.msra.mxu0 0
        %1184 = vmatprep.subr.bf16.mxu0 0
        %1185 = vmatpush1.bf16.msra.mxu0 0
        %1186 = vmatprep.subr.bf16.mxu0 0
        %1187 = vmatpush1.bf16.msra.mxu0 0
        %1188 = vmatprep.subr.bf16.mxu0 0
        %1189 = vmatpush1.bf16.msra.mxu0 0
        %1190 = vmatprep.subr.bf16.mxu0 0
        %1191 = vmatpush1.bf16.msra.mxu0 0
        %1192 = vmatprep.subr.bf16.mxu0 0
        %1193 = vmatpush1.bf16.msra.mxu0 0
        %1194 = vmatprep.mubr.bf16.mxu0 0
        %1195 = vmatmul.mubr.bf16.gmra.mrb[0].mxu0 %v1157
        %v1196 = vpop.f32.mrb[0].mxu0
        %v1197 = vadd.f32 0.0, %v1196
        %v1198 = vpop.f32.mrb[0].mxu0
        %v1199 = vpop.f32.mrb[0].mxu0
        %v1200 = vpop.f32.mrb[0].mxu0
        %1201 = vdwg.mxu0
        %v1202 = vadd.f32 %v1147, %v1197
        %1203 = vst [vmem:[#allocation2] sm:$0xff] %v1202
        %v1204 = vld [vmem:[#allocation2] sm:$0xff]
        %s1205 = scalar_lea.vmem %s1, 64
        %v1206 = vld [vmem:[%s1205] sm:$0xf]
        %1207 = vrot.lane.b32.xlu0 %v350, 91
        %v1208 = vpop.permute.xlu0 %1207
        %1209 = vrot.lane.b32.xlu0 %v351, 91
        %v1210 = vpop.permute.xlu0 %1209
        %vm1211 = vcmask 744448
        %v1212 = vsel %vm1211, %v1208, %v1210
        %v1214 = vsel %vm294, %v1206, 0
        %v1217 = vsel %vm298, %v1212, 0
        %1219 = vmatprep.subr.bf16.mxu0 0
        %1220 = vmatpush1.bf16.msra.mxu0 %v1217
        %1221 = vmatprep.subr.bf16.mxu0 0
        %1222 = vmatpush1.bf16.msra.mxu0 0
        %1223 = vmatprep.subr.bf16.mxu0 0
        %1224 = vmatpush1.bf16.msra.mxu0 0
        %1225 = vmatprep.subr.bf16.mxu0 0
        %1226 = vmatpush1.bf16.msra.mxu0 0
        %1227 = vmatprep.subr.bf16.mxu0 0
        %1228 = vmatpush1.bf16.msra.mxu0 0
        %1229 = vmatprep.subr.bf16.mxu0 0
        %1230 = vmatpush1.bf16.msra.mxu0 0
        %1231 = vmatprep.subr.bf16.mxu0 0
        %1232 = vmatpush1.bf16.msra.mxu0 0
        %1233 = vmatprep.subr.bf16.mxu0 0
        %1234 = vmatpush1.bf16.msra.mxu0 0
        %1235 = vmatprep.subr.bf16.mxu0 0
        %1236 = vmatpush1.bf16.msra.mxu0 0
        %1237 = vmatprep.subr.bf16.mxu0 0
        %1238 = vmatpush1.bf16.msra.mxu0 0
        %1239 = vmatprep.subr.bf16.mxu0 0
        %1240 = vmatpush1.bf16.msra.mxu0 0
        %1241 = vmatprep.subr.bf16.mxu0 0
        %1242 = vmatpush1.bf16.msra.mxu0 0
        %1243 = vmatprep.subr.bf16.mxu0 0
        %1244 = vmatpush1.bf16.msra.mxu0 0
        %1245 = vmatprep.subr.bf16.mxu0 0
        %1246 = vmatpush1.bf16.msra.mxu0 0
        %1247 = vmatprep.subr.bf16.mxu0 0
        %1248 = vmatpush1.bf16.msra.mxu0 0
        %1249 = vmatprep.subr.bf16.mxu0 0
        %1250 = vmatpush1.bf16.msra.mxu0 0
        %1251 = vmatprep.mubr.bf16.mxu0 0
        %1252 = vmatmul.mubr.bf16.gmra.mrb[0].mxu0 %v1214
        %v1253 = vpop.f32.mrb[0].mxu0
        %v1254 = vadd.f32 0.0, %v1253
        %v1255 = vpop.f32.mrb[0].mxu0
        %v1256 = vpop.f32.mrb[0].mxu0
        %v1257 = vpop.f32.mrb[0].mxu0
        %1258 = vdwg.mxu0
        %v1259 = vadd.f32 %v1204, %v1254
        %1260 = vst [vmem:[#allocation2] sm:$0xff] %v1259
        %v1261 = vld [vmem:[#allocation2] sm:$0xff]
        %s1262 = scalar_lea.vmem %s1, 68
        %v1263 = vld [vmem:[%s1262] sm:$0xf]
        %1264 = vrot.lane.b32.xlu0 %v350, 90
        %v1265 = vpop.permute.xlu0 %1264
        %1266 = vrot.lane.b32.xlu0 %v351, 90
        %v1267 = vpop.permute.xlu0 %1266
        %vm1268 = vcmask 736256
        %v1269 = vsel %vm1268, %v1265, %v1267
        %v1271 = vsel %vm294, %v1263, 0
        %v1274 = vsel %vm298, %v1269, 0
        %1276 = vmatprep.subr.bf16.mxu0 0
        %1277 = vmatpush1.bf16.msra.mxu0 %v1274
        %1278 = vmatprep.subr.bf16.mxu0 0
        %1279 = vmatpush1.bf16.msra.mxu0 0
        %1280 = vmatprep.subr.bf16.mxu0 0
        %1281 = vmatpush1.bf16.msra.mxu0 0
        %1282 = vmatprep.subr.bf16.mxu0 0
        %1283 = vmatpush1.bf16.msra.mxu0 0
        %1284 = vmatprep.subr.bf16.mxu0 0
        %1285 = vmatpush1.bf16.msra.mxu0 0
        %1286 = vmatprep.subr.bf16.mxu0 0
        %1287 = vmatpush1.bf16.msra.mxu0 0
        %1288 = vmatprep.subr.bf16.mxu0 0
        %1289 = vmatpush1.bf16.msra.mxu0 0
        %1290 = vmatprep.subr.bf16.mxu0 0
        %1291 = vmatpush1.bf16.msra.mxu0 0
        %1292 = vmatprep.subr.bf16.mxu0 0
        %1293 = vmatpush1.bf16.msra.mxu0 0
        %1294 = vmatprep.subr.bf16.mxu0 0
        %1295 = vmatpush1.bf16.msra.mxu0 0
        %1296 = vmatprep.subr.bf16.mxu0 0
        %1297 = vmatpush1.bf16.msra.mxu0 0
        %1298 = vmatprep.subr.bf16.mxu0 0
        %1299 = vmatpush1.bf16.msra.mxu0 0
        %1300 = vmatprep.subr.bf16.mxu0 0
        %1301 = vmatpush1.bf16.msra.mxu0 0
        %1302 = vmatprep.subr.bf16.mxu0 0
        %1303 = vmatpush1.bf16.msra.mxu0 0
        %1304 = vmatprep.subr.bf16.mxu0 0
        %1305 = vmatpush1.bf16.msra.mxu0 0
        %1306 = vmatprep.subr.bf16.mxu0 0
        %1307 = vmatpush1.bf16.msra.mxu0 0
        %1308 = vmatprep.mubr.bf16.mxu0 0
        %1309 = vmatmul.mubr.bf16.gmra.mrb[0].mxu0 %v1271
        %v1310 = vpop.f32.mrb[0].mxu0
        %v1311 = vadd.f32 0.0, %v1310
        %v1312 = vpop.f32.mrb[0].mxu0
        %v1313 = vpop.f32.mrb[0].mxu0
        %v1314 = vpop.f32.mrb[0].mxu0
        %1315 = vdwg.mxu0
        %v1316 = vadd.f32 %v1261, %v1311
        %1317 = vst [vmem:[#allocation2] sm:$0xff] %v1316
        %v1318 = vld [vmem:[#allocation2] sm:$0xff]
        %s1319 = scalar_lea.vmem %s1, 72
        %v1320 = vld [vmem:[%s1319] sm:$0xf]
        %1321 = vrot.lane.b32.xlu0 %v350, 89
        %v1322 = vpop.permute.xlu0 %1321
        %1323 = vrot.lane.b32.xlu0 %v351, 89
        %v1324 = vpop.permute.xlu0 %1323
        %vm1325 = vcmask 728064
        %v1326 = vsel %vm1325, %v1322, %v1324
        %v1328 = vsel %vm294, %v1320, 0
        %v1331 = vsel %vm298, %v1326, 0
        %1333 = vmatprep.subr.bf16.mxu0 0
        %1334 = vmatpush1.bf16.msra.mxu0 %v1331
        %1335 = vmatprep.subr.bf16.mxu0 0
        %1336 = vmatpush1.bf16.msra.mxu0 0
        %1337 = vmatprep.subr.bf16.mxu0 0
        %1338 = vmatpush1.bf16.msra.mxu0 0
        %1339 = vmatprep.subr.bf16.mxu0 0
        %1340 = vmatpush1.bf16.msra.mxu0 0
        %1341 = vmatprep.subr.bf16.mxu0 0
        %1342 = vmatpush1.bf16.msra.mxu0 0
        %1343 = vmatprep.subr.bf16.mxu0 0
        %1344 = vmatpush1.bf16.msra.mxu0 0
        %1345 = vmatprep.subr.bf16.mxu0 0
        %1346 = vmatpush1.bf16.msra.mxu0 0
        %1347 = vmatprep.subr.bf16.mxu0 0
        %1348 = vmatpush1.bf16.msra.mxu0 0
        %1349 = vmatprep.subr.bf16.mxu0 0
        %1350 = vmatpush1.bf16.msra.mxu0 0
        %1351 = vmatprep.subr.bf16.mxu0 0
        %1352 = vmatpush1.bf16.msra.mxu0 0
        %1353 = vmatprep.subr.bf16.mxu0 0
        %1354 = vmatpush1.bf16.msra.mxu0 0
        %1355 = vmatprep.subr.bf16.mxu0 0
        %1356 = vmatpush1.bf16.msra.mxu0 0
        %1357 = vmatprep.subr.bf16.mxu0 0
        %1358 = vmatpush1.bf16.msra.mxu0 0
        %1359 = vmatprep.subr.bf16.mxu0 0
        %1360 = vmatpush1.bf16.msra.mxu0 0
        %1361 = vmatprep.subr.bf16.mxu0 0
        %1362 = vmatpush1.bf16.msra.mxu0 0
        %1363 = vmatprep.subr.bf16.mxu0 0
        %1364 = vmatpush1.bf16.msra.mxu0 0
        %1365 = vmatprep.mubr.bf16.mxu0 0
        %1366 = vmatmul.mubr.bf16.gmra.mrb[0].mxu0 %v1328
        %v1367 = vpop.f32.mrb[0].mxu0
        %v1368 = vadd.f32 0.0, %v1367
        %v1369 = vpop.f32.mrb[0].mxu0
        %v1370 = vpop.f32.mrb[0].mxu0
        %v1371 = vpop.f32.mrb[0].mxu0
        %1372 = vdwg.mxu0
        %v1373 = vadd.f32 %v1318, %v1368
        %1374 = vst [vmem:[#allocation2] sm:$0xff] %v1373
        %v1375 = vld [vmem:[#allocation2] sm:$0xff]
        %s1376 = scalar_lea.vmem %s1, 76
        %v1377 = vld [vmem:[%s1376] sm:$0xf]
        %1378 = vrot.lane.b32.xlu0 %v350, 88
        %v1379 = vpop.permute.xlu0 %1378
        %1380 = vrot.lane.b32.xlu0 %v351, 88
        %v1381 = vpop.permute.xlu0 %1380
        %vm1382 = vcmask 719872
        %v1383 = vsel %vm1382, %v1379, %v1381
        %v1385 = vsel %vm294, %v1377, 0
        %v1388 = vsel %vm298, %v1383, 0
        %1390 = vmatprep.subr.bf16.mxu0 0
        %1391 = vmatpush1.bf16.msra.mxu0 %v1388
        %1392 = vmatprep.subr.bf16.mxu0 0
        %1393 = vmatpush1.bf16.msra.mxu0 0
        %1394 = vmatprep.subr.bf16.mxu0 0
        %1395 = vmatpush1.bf16.msra.mxu0 0
        %1396 = vmatprep.subr.bf16.mxu0 0
        %1397 = vmatpush1.bf16.msra.mxu0 0
        %1398 = vmatprep.subr.bf16.mxu0 0
        %1399 = vmatpush1.bf16.msra.mxu0 0
        %1400 = vmatprep.subr.bf16.mxu0 0
        %1401 = vmatpush1.bf16.msra.mxu0 0
        %1402 = vmatprep.subr.bf16.mxu0 0
        %1403 = vmatpush1.bf16.msra.mxu0 0
        %1404 = vmatprep.subr.bf16.mxu0 0
        %1405 = vmatpush1.bf16.msra.mxu0 0
        %1406 = vmatprep.subr.bf16.mxu0 0
        %1407 = vmatpush1.bf16.msra.mxu0 0
        %1408 = vmatprep.subr.bf16.mxu0 0
        %1409 = vmatpush1.bf16.msra.mxu0 0
        %1410 = vmatprep.subr.bf16.mxu0 0
        %1411 = vmatpush1.bf16.msra.mxu0 0
        %1412 = vmatprep.subr.bf16.mxu0 0
        %1413 = vmatpush1.bf16.msra.mxu0 0
        %1414 = vmatprep.subr.bf16.mxu0 0
        %1415 = vmatpush1.bf16.msra.mxu0 0
        %1416 = vmatprep.subr.bf16.mxu0 0
        %1417 = vmatpush1.bf16.msra.mxu0 0
        %1418 = vmatprep.subr.bf16.mxu0 0
        %1419 = vmatpush1.bf16.msra.mxu0 0
        %1420 = vmatprep.subr.bf16.mxu0 0
        %1421 = vmatpush1.bf16.msra.mxu0 0
        %1422 = vmatprep.mubr.bf16.mxu0 0
        %1423 = vmatmul.mubr.bf16.gmra.mrb[0].mxu0 %v1385
        %v1424 = vpop.f32.mrb[0].mxu0
        %v1425 = vadd.f32 0.0, %v1424
        %v1426 = vpop.f32.mrb[0].mxu0
        %v1427 = vpop.f32.mrb[0].mxu0
        %v1428 = vpop.f32.mrb[0].mxu0
        %1429 = vdwg.mxu0
        %v1430 = vadd.f32 %v1375, %v1425
        %1431 = vst [vmem:[#allocation2] sm:$0xff] %v1430
        %v1432 = vld [vmem:[#allocation2] sm:$0xff]
        %s1433 = scalar_lea.vmem %s1, 80
        %v1434 = vld [vmem:[%s1433] sm:$0xf]
        %1435 = vrot.lane.b32.xlu0 %v350, 80
        %v1436 = vpop.permute.xlu0 %1435
        %1437 = vrot.lane.b32.xlu0 %v351, 80
        %v1438 = vpop.permute.xlu0 %1437
        %vm1439 = vcmask 654336
        %v1440 = vsel %vm1439, %v1436, %v1438
        %v1442 = vsel %vm294, %v1434, 0
        %v1445 = vsel %vm298, %v1440, 0
        %1447 = vmatprep.subr.bf16.mxu0 0
        %1448 = vmatpush1.bf16.msra.mxu0 %v1445
        %1449 = vmatprep.subr.bf16.mxu0 0
        %1450 = vmatpush1.bf16.msra.mxu0 0
        %1451 = vmatprep.subr.bf16.mxu0 0
        %1452 = vmatpush1.bf16.msra.mxu0 0
        %1453 = vmatprep.subr.bf16.mxu0 0
        %1454 = vmatpush1.bf16.msra.mxu0 0
        %1455 = vmatprep.subr.bf16.mxu0 0
        %1456 = vmatpush1.bf16.msra.mxu0 0
        %1457 = vmatprep.subr.bf16.mxu0 0
        %1458 = vmatpush1.bf16.msra.mxu0 0
        %1459 = vmatprep.subr.bf16.mxu0 0
        %1460 = vmatpush1.bf16.msra.mxu0 0
        %1461 = vmatprep.subr.bf16.mxu0 0
        %1462 = vmatpush1.bf16.msra.mxu0 0
        %1463 = vmatprep.subr.bf16.mxu0 0
        %1464 = vmatpush1.bf16.msra.mxu0 0
        %1465 = vmatprep.subr.bf16.mxu0 0
        %1466 = vmatpush1.bf16.msra.mxu0 0
        %1467 = vmatprep.subr.bf16.mxu0 0
        %1468 = vmatpush1.bf16.msra.mxu0 0
        %1469 = vmatprep.subr.bf16.mxu0 0
        %1470 = vmatpush1.bf16.msra.mxu0 0
        %1471 = vmatprep.subr.bf16.mxu0 0
        %1472 = vmatpush1.bf16.msra.mxu0 0
        %1473 = vmatprep.subr.bf16.mxu0 0
        %1474 = vmatpush1.bf16.msra.mxu0 0
        %1475 = vmatprep.subr.bf16.mxu0 0
        %1476 = vmatpush1.bf16.msra.mxu0 0
        %1477 = vmatprep.subr.bf16.mxu0 0
        %1478 = vmatpush1.bf16.msra.mxu0 0
        %1479 = vmatprep.mubr.bf16.mxu0 0
        %1480 = vmatmul.mubr.bf16.gmra.mrb[0].mxu0 %v1442
        %v1481 = vpop.f32.mrb[0].mxu0
        %v1482 = vadd.f32 0.0, %v1481
        %v1483 = vpop.f32.mrb[0].mxu0
        %v1484 = vpop.f32.mrb[0].mxu0
        %v1485 = vpop.f32.mrb[0].mxu0
        %1486 = vdwg.mxu0
        %v1487 = vadd.f32 %v1432, %v1482
        %1488 = vst [vmem:[#allocation2] sm:$0xff] %v1487
        %v1489 = vld [vmem:[#allocation2] sm:$0xff]
        %s1490 = scalar_lea.vmem %s1, 84
        %v1491 = vld [vmem:[%s1490] sm:$0xf]
        %1492 = vrot.lane.b32.xlu0 %v350, 79
        %v1493 = vpop.permute.xlu0 %1492
        %1494 = vrot.lane.b32.xlu0 %v351, 79
        %v1495 = vpop.permute.xlu0 %1494
        %vm1496 = vcmask 646144
        %v1497 = vsel %vm1496, %v1493, %v1495
        %v1499 = vsel %vm294, %v1491, 0
        %v1502 = vsel %vm298, %v1497, 0
        %1504 = vmatprep.subr.bf16.mxu0 0
        %1505 = vmatpush1.bf16.msra.mxu0 %v1502
        %1506 = vmatprep.subr.bf16.mxu0 0
        %1507 = vmatpush1.bf16.msra.mxu0 0
        %1508 = vmatprep.subr.bf16.mxu0 0
        %1509 = vmatpush1.bf16.msra.mxu0 0
        %1510 = vmatprep.subr.bf16.mxu0 0
        %1511 = vmatpush1.bf16.msra.mxu0 0
        %1512 = vmatprep.subr.bf16.mxu0 0
        %1513 = vmatpush1.bf16.msra.mxu0 0
        %1514 = vmatprep.subr.bf16.mxu0 0
        %1515 = vmatpush1.bf16.msra.mxu0 0
        %1516 = vmatprep.subr.bf16.mxu0 0
        %1517 = vmatpush1.bf16.msra.mxu0 0
        %1518 = vmatprep.subr.bf16.mxu0 0
        %1519 = vmatpush1.bf16.msra.mxu0 0
        %1520 = vmatprep.subr.bf16.mxu0 0
        %1521 = vmatpush1.bf16.msra.mxu0 0
        %1522 = vmatprep.subr.bf16.mxu0 0
        %1523 = vmatpush1.bf16.msra.mxu0 0
        %1524 = vmatprep.subr.bf16.mxu0 0
        %1525 = vmatpush1.bf16.msra.mxu0 0
        %1526 = vmatprep.subr.bf16.mxu0 0
        %1527 = vmatpush1.bf16.msra.mxu0 0
        %1528 = vmatprep.subr.bf16.mxu0 0
        %1529 = vmatpush1.bf16.msra.mxu0 0
        %1530 = vmatprep.subr.bf16.mxu0 0
        %1531 = vmatpush1.bf16.msra.mxu0 0
        %1532 = vmatprep.subr.bf16.mxu0 0
        %1533 = vmatpush1.bf16.msra.mxu0 0
        %1534 = vmatprep.subr.bf16.mxu0 0
        %1535 = vmatpush1.bf16.msra.mxu0 0
        %1536 = vmatprep.mubr.bf16.mxu0 0
        %1537 = vmatmul.mubr.bf16.gmra.mrb[0].mxu0 %v1499
        %v1538 = vpop.f32.mrb[0].mxu0
        %v1539 = vadd.f32 0.0, %v1538
        %v1540 = vpop.f32.mrb[0].mxu0
        %v1541 = vpop.f32.mrb[0].mxu0
        %v1542 = vpop.f32.mrb[0].mxu0
        %1543 = vdwg.mxu0
        %v1544 = vadd.f32 %v1489, %v1539
        %1545 = vst [vmem:[#allocation2] sm:$0xff] %v1544
        %v1546 = vld [vmem:[#allocation2] sm:$0xff]
        %s1547 = scalar_lea.vmem %s1, 88
        %v1548 = vld [vmem:[%s1547] sm:$0xf]
        %1549 = vrot.lane.b32.xlu0 %v350, 78
        %v1550 = vpop.permute.xlu0 %1549
        %1551 = vrot.lane.b32.xlu0 %v351, 78
        %v1552 = vpop.permute.xlu0 %1551
        %vm1553 = vcmask 637952
        %v1554 = vsel %vm1553, %v1550, %v1552
        %v1556 = vsel %vm294, %v1548, 0
        %v1559 = vsel %vm298, %v1554, 0
        %1561 = vmatprep.subr.bf16.mxu0 0
        %1562 = vmatpush1.bf16.msra.mxu0 %v1559
        %1563 = vmatprep.subr.bf16.mxu0 0
        %1564 = vmatpush1.bf16.msra.mxu0 0
        %1565 = vmatprep.subr.bf16.mxu0 0
        %1566 = vmatpush1.bf16.msra.mxu0 0
        %1567 = vmatprep.subr.bf16.mxu0 0
        %1568 = vmatpush1.bf16.msra.mxu0 0
        %1569 = vmatprep.subr.bf16.mxu0 0
        %1570 = vmatpush1.bf16.msra.mxu0 0
        %1571 = vmatprep.subr.bf16.mxu0 0
        %1572 = vmatpush1.bf16.msra.mxu0 0
        %1573 = vmatprep.subr.bf16.mxu0 0
        %1574 = vmatpush1.bf16.msra.mxu0 0
        %1575 = vmatprep.subr.bf16.mxu0 0
        %1576 = vmatpush1.bf16.msra.mxu0 0
        %1577 = vmatprep.subr.bf16.mxu0 0
        %1578 = vmatpush1.bf16.msra.mxu0 0
        %1579 = vmatprep.subr.bf16.mxu0 0
        %1580 = vmatpush1.bf16.msra.mxu0 0
        %1581 = vmatprep.subr.bf16.mxu0 0
        %1582 = vmatpush1.bf16.msra.mxu0 0
        %1583 = vmatprep.subr.bf16.mxu0 0
        %1584 = vmatpush1.bf16.msra.mxu0 0
        %1585 = vmatprep.subr.bf16.mxu0 0
        %1586 = vmatpush1.bf16.msra.mxu0 0
        %1587 = vmatprep.subr.bf16.mxu0 0
        %1588 = vmatpush1.bf16.msra.mxu0 0
        %1589 = vmatprep.subr.bf16.mxu0 0
        %1590 = vmatpush1.bf16.msra.mxu0 0
        %1591 = vmatprep.subr.bf16.mxu0 0
        %1592 = vmatpush1.bf16.msra.mxu0 0
        %1593 = vmatprep.mubr.bf16.mxu0 0
        %1594 = vmatmul.mubr.bf16.gmra.mrb[0].mxu0 %v1556
        %v1595 = vpop.f32.mrb[0].mxu0
        %v1596 = vadd.f32 0.0, %v1595
        %v1597 = vpop.f32.mrb[0].mxu0
        %v1598 = vpop.f32.mrb[0].mxu0
        %v1599 = vpop.f32.mrb[0].mxu0
        %1600 = vdwg.mxu0
        %v1601 = vadd.f32 %v1546, %v1596
        %1602 = vst [vmem:[#allocation2] sm:$0xff] %v1601
        %v1603 = vld [vmem:[#allocation2] sm:$0xff]
        %s1604 = scalar_lea.vmem %s1, 92
        %v1605 = vld [vmem:[%s1604] sm:$0xf]
        %1606 = vrot.lane.b32.xlu0 %v350, 77
        %v1607 = vpop.permute.xlu0 %1606
        %1608 = vrot.lane.b32.xlu0 %v351, 77
        %v1609 = vpop.permute.xlu0 %1608
        %vm1610 = vcmask 629760
        %v1611 = vsel %vm1610, %v1607, %v1609
        %v1613 = vsel %vm294, %v1605, 0
        %v1616 = vsel %vm298, %v1611, 0
        %1618 = vmatprep.subr.bf16.mxu0 0
        %1619 = vmatpush1.bf16.msra.mxu0 %v1616
        %1620 = vmatprep.subr.bf16.mxu0 0
        %1621 = vmatpush1.bf16.msra.mxu0 0
        %1622 = vmatprep.subr.bf16.mxu0 0
        %1623 = vmatpush1.bf16.msra.mxu0 0
        %1624 = vmatprep.subr.bf16.mxu0 0
        %1625 = vmatpush1.bf16.msra.mxu0 0
        %1626 = vmatprep.subr.bf16.mxu0 0
        %1627 = vmatpush1.bf16.msra.mxu0 0
        %1628 = vmatprep.subr.bf16.mxu0 0
        %1629 = vmatpush1.bf16.msra.mxu0 0
        %1630 = vmatprep.subr.bf16.mxu0 0
        %1631 = vmatpush1.bf16.msra.mxu0 0
        %1632 = vmatprep.subr.bf16.mxu0 0
        %1633 = vmatpush1.bf16.msra.mxu0 0
        %1634 = vmatprep.subr.bf16.mxu0 0
        %1635 = vmatpush1.bf16.msra.mxu0 0
        %1636 = vmatprep.subr.bf16.mxu0 0
        %1637 = vmatpush1.bf16.msra.mxu0 0
        %1638 = vmatprep.subr.bf16.mxu0 0
        %1639 = vmatpush1.bf16.msra.mxu0 0
        %1640 = vmatprep.subr.bf16.mxu0 0
        %1641 = vmatpush1.bf16.msra.mxu0 0
        %1642 = vmatprep.subr.bf16.mxu0 0
        %1643 = vmatpush1.bf16.msra.mxu0 0
        %1644 = vmatprep.subr.bf16.mxu0 0
        %1645 = vmatpush1.bf16.msra.mxu0 0
        %1646 = vmatprep.subr.bf16.mxu0 0
        %1647 = vmatpush1.bf16.msra.mxu0 0
        %1648 = vmatprep.subr.bf16.mxu0 0
        %1649 = vmatpush1.bf16.msra.mxu0 0
        %1650 = vmatprep.mubr.bf16.mxu0 0
        %1651 = vmatmul.mubr.bf16.gmra.mrb[0].mxu0 %v1613
        %v1652 = vpop.f32.mrb[0].mxu0
        %v1653 = vadd.f32 0.0, %v1652
        %v1654 = vpop.f32.mrb[0].mxu0
        %v1655 = vpop.f32.mrb[0].mxu0
        %v1656 = vpop.f32.mrb[0].mxu0
        %1657 = vdwg.mxu0
        %v1658 = vadd.f32 %v1603, %v1653
        %1659 = vst [vmem:[#allocation2] sm:$0xff] %v1658
        %v1660 = vld [vmem:[#allocation2] sm:$0xff]
        %s1661 = scalar_lea.vmem %s1, 96
        %v1662 = vld [vmem:[%s1661] sm:$0xf]
        %1663 = vrot.lane.b32.xlu0 %v350, 76
        %v1664 = vpop.permute.xlu0 %1663
        %1665 = vrot.lane.b32.xlu0 %v351, 76
        %v1666 = vpop.permute.xlu0 %1665
        %vm1667 = vcmask 621568
        %v1668 = vsel %vm1667, %v1664, %v1666
        %v1670 = vsel %vm294, %v1662, 0
        %v1673 = vsel %vm298, %v1668, 0
        %1675 = vmatprep.subr.bf16.mxu0 0
        %1676 = vmatpush1.bf16.msra.mxu0 %v1673
        %1677 = vmatprep.subr.bf16.mxu0 0
        %1678 = vmatpush1.bf16.msra.mxu0 0
        %1679 = vmatprep.subr.bf16.mxu0 0
        %1680 = vmatpush1.bf16.msra.mxu0 0
        %1681 = vmatprep.subr.bf16.mxu0 0
        %1682 = vmatpush1.bf16.msra.mxu0 0
        %1683 = vmatprep.subr.bf16.mxu0 0
        %1684 = vmatpush1.bf16.msra.mxu0 0
        %1685 = vmatprep.subr.bf16.mxu0 0
        %1686 = vmatpush1.bf16.msra.mxu0 0
        %1687 = vmatprep.subr.bf16.mxu0 0
        %1688 = vmatpush1.bf16.msra.mxu0 0
        %1689 = vmatprep.subr.bf16.mxu0 0
        %1690 = vmatpush1.bf16.msra.mxu0 0
        %1691 = vmatprep.subr.bf16.mxu0 0
        %1692 = vmatpush1.bf16.msra.mxu0 0
        %1693 = vmatprep.subr.bf16.mxu0 0
        %1694 = vmatpush1.bf16.msra.mxu0 0
        %1695 = vmatprep.subr.bf16.mxu0 0
        %1696 = vmatpush1.bf16.msra.mxu0 0
        %1697 = vmatprep.subr.bf16.mxu0 0
        %1698 = vmatpush1.bf16.msra.mxu0 0
        %1699 = vmatprep.subr.bf16.mxu0 0
        %1700 = vmatpush1.bf16.msra.mxu0 0
        %1701 = vmatprep.subr.bf16.mxu0 0
        %1702 = vmatpush1.bf16.msra.mxu0 0
        %1703 = vmatprep.subr.bf16.mxu0 0
        %1704 = vmatpush1.bf16.msra.mxu0 0
        %1705 = vmatprep.subr.bf16.mxu0 0
        %1706 = vmatpush1.bf16.msra.mxu0 0
        %1707 = vmatprep.mubr.bf16.mxu0 0
        %1708 = vmatmul.mubr.bf16.gmra.mrb[0].mxu0 %v1670
        %v1709 = vpop.f32.mrb[0].mxu0
        %v1710 = vadd.f32 0.0, %v1709
        %v1711 = vpop.f32.mrb[0].mxu0
        %v1712 = vpop.f32.mrb[0].mxu0
        %v1713 = vpop.f32.mrb[0].mxu0
        %1714 = vdwg.mxu0
        %v1715 = vadd.f32 %v1660, %v1710
        %1716 = vst [vmem:[#allocation2] sm:$0xff] %v1715
        %v1717 = vld [vmem:[#allocation2] sm:$0xff]
        %v1718 = vpack.c.bf16 %v1717, %v1717
        %1719 = vst [vmem:[%s246] sm:$0xf] %v1718
        %s1720 = smul.u32 %s25, 8
        %s1721 = ssub.s32 8, %s1720
        %p1722 = scmp.lt.s32.totalorder %s1721, 8
        %s1723 = scalar_select %p1722, %s1721, 8
        %v1724 = vlaneseq
        %v1725 = vand.u32 %v1724, 127
        %s1726 = smul.u32 %s1723, 12
        %v1727 = vstv %s1726
        %vm1728 = vcmp.lt.s32.totalorder %v1725, %v1727
        %v1729 = vld [vmem:[%s2] sm:$0x1]
        %v1730 = vsel %vm1728, %v1729, 0.0
        %v1731 = vlaneseq
        %v1732 = vshrl.u32 %v1731, 7
        %v1733 = vsub.s32 0, %v1732
        %v1734 = vrot.slane %v1730, %v1733
        %v1735 = vmul.f32 %v1717, %v1734
        %1736 = vadd.xlane.f32.xlu0 %v1735
        %v1737 = vpop.xlane.xlu0 %1736
        %vm1738 = vcmask 7168
        %1739 = vst.msk [vmem:[%s280] sm:$0xff] %vm1738, %v1737
        %v1740 = vmul.f32 %v1735, %v1717
        %1741 = vadd.xlane.f32.xlu0 %v1740
        %v1742 = vpop.xlane.xlu0 %1741
        %1743 = vst.msk [vmem:[%s287] sm:$0xff] %vm1738, %v1742
        %s1744 = sand.u32 %s112, 1
        %s1745 = scalar_lea.sflag [#allocation4], %s1744
        %s1746 = sand.u32 %s112, 1
        %s1747 = smul.addr %s1746, 4
        %s1748 = scalar_lea.vmem [#allocation3], %s1747
        %p1749 = scmp.lt.s32.totalorder %s24, 1
        %s1750 = scalar_select %p1749, %s24, 1
        %p1751 = scmp.lt.s32.totalorder %s25, 0
        %s1752 = scalar_select %p1751, %s25, 0
        %s1753 = sadd.s32 %s1752, %s1750
        %s1754 = smul.addr %s1753, 8
        %s1755 = scalar_lea.vmem %s4, %s1754
        %p1756 = scmp.lt.s32.totalorder %s24, 1
        %s1757 = scalar_select %p1756, %s24, 1
        %p1758 = scmp.lt.s32.totalorder %s25, 0
        %s1759 = scalar_select %p1758, %s25, 0
        %s1760 = sadd.s32 %s1759, %s1757
        %s1761 = smul.addr %s1760, 8
        %s1762 = scalar_lea.vmem %s5, %s1761
        // Predicated region
        $region33: #{tpu_custom_call.1} parent=31 // pred_check
          %p1763 = pneg %p122
        $region34: #{tpu_custom_call.1} parent=31 // pred_check_branch
          %1765 = sbr.rel (%p1763) target = $region36
        $region35: #{tpu_custom_call.1} parent=31 // pred_region
          %s1767 = ssub.s32 64, 64
          %1768 = vsyncadd %s1745, %s1767
          %s1769 = sadd.s32 %s25, %s24
          %s1770 = smul.addr %s1769, 64
          %s1771 = scalar_lea.hbm %s3, %s1770
          %s1773 = sshll.u32 %s1748, 4
          %s1774 = int_to_ptr.vmem [resolvable:$true] %s1773
          %1776 = dma.vmem_to_hbm [thread:$0]  %s1774, 64, %s1771, %s1745
        $region36: #{tpu_custom_call.1} parent=31 // pred_fallthru
          _
        // Predicated region
        $region37: #{tpu_custom_call.1} parent=31 // pred_check
          %p1777 = pneg %p150
        $region38: #{tpu_custom_call.1} parent=31 // pred_check_branch
          %1779 = sbr.rel (%p1777) target = $region40
        $region39: #{tpu_custom_call.1} parent=31 // pred_region
          _
        $region40: #{tpu_custom_call.1} parent=31 // pred_fallthru
          _
        // Predicated region
        $region41: #{tpu_custom_call.1} parent=31 // pred_check
          %p1780 = pneg %p178
        $region42: #{tpu_custom_call.1} parent=31 // pred_check_branch
          %1782 = sbr.rel (%p1780) target = $region44
        $region43: #{tpu_custom_call.1} parent=31 // pred_region
          _
        $region44: #{tpu_custom_call.1} parent=31 // pred_fallthru
          _
      $region32: #{tpu_custom_call.1} parent=5 // pred_fallthru
        _
      %p1783 = scmp.le.s32.totalorder 2, %s15
      // Predicated region
      $region45: #{tpu_custom_call.1} parent=5 // pred_check
        %p1784 = pneg %p1783
      $region46: #{tpu_custom_call.1} parent=5 // pred_check_branch
        %1786 = sbr.rel (%p1784) target = $region48
      $region47: #{tpu_custom_call.1} parent=5 // pred_region
        %s1787 = ssub.s32 %s15, 2
        // Predicated region
        $region49: #{tpu_custom_call.1} parent=47 // pred_check
          %p1788 = pneg %p128
        $region50: #{tpu_custom_call.1} parent=47 // pred_check_branch
          %1790 = sbr.rel (%p1788) target = $region52
        $region51: #{tpu_custom_call.1} parent=47 // pred_region
          %s1791 = sand.u32 %s113, 1
          %s1792 = scalar_lea.sflag [#allocation4], %s1791
          %s1793 = sand.u32 %s113, 1
          %s1794 = smul.addr %s1793, 4
          %s1795 = scalar_lea.vmem [#allocation3], %s1794
          %1796 = dma.done %s1792, 64
        $region52: #{tpu_custom_call.1} parent=47 // pred_fallthru
          _
        // Predicated region
        $region53: #{tpu_custom_call.1} parent=47 // pred_check
          %p1797 = pneg %p156
        $region54: #{tpu_custom_call.1} parent=47 // pred_check_branch
          %1799 = sbr.rel (%p1797) target = $region56
        $region55: #{tpu_custom_call.1} parent=47 // pred_region
          %p1800 = scmp.lt.s32.totalorder %s26, 1
          %s1801 = scalar_select %p1800, %s26, 1
          %p1802 = scmp.lt.s32.totalorder %s27, 0
          %s1803 = scalar_select %p1802, %s27, 0
          %s1804 = sadd.s32 %s1803, %s1801
          %s1805 = smul.addr %s1804, 8
          %s1806 = scalar_lea.vmem %s4, %s1805
        $region56: #{tpu_custom_call.1} parent=47 // pred_fallthru
          _
        // Predicated region
        $region57: #{tpu_custom_call.1} parent=47 // pred_check
          %p1807 = pneg %p184
        $region58: #{tpu_custom_call.1} parent=47 // pred_check_branch
          %1809 = sbr.rel (%p1807) target = $region60
        $region59: #{tpu_custom_call.1} parent=47 // pred_region
          %p1810 = scmp.lt.s32.totalorder %s26, 1
          %s1811 = scalar_select %p1810, %s26, 1
          %p1812 = scmp.lt.s32.totalorder %s27, 0
          %s1813 = scalar_select %p1812, %s27, 0
          %s1814 = sadd.s32 %s1813, %s1811
          %s1815 = smul.addr %s1814, 8
          %s1816 = scalar_lea.vmem %s5, %s1815
        $region60: #{tpu_custom_call.1} parent=47 // pred_fallthru
          _
      $region48: #{tpu_custom_call.1} parent=5 // pred_fallthru
        _
    $region6: #{tpu_custom_call.1} parent=1 // loop_footer
      %s19 = sadd.s32 1, %s15
    $region7: #{tpu_custom_call.1} parent=1 // loop_footer_branch
      %14 = sbr.rel target = $region3
    $region8: #{tpu_custom_call.1} parent=1 // loop_exit
      _
    %1817 = vsyncpa [#allocation4], 1
    %s1818 = scalar_lea.sflag [#allocation4], 1
    %1819 = vsyncpa %s1818, 1

// kernel: tpu_custom_call.1
$region0: #{tpu_custom_call.1}
  #allocation0 [shape = 'u32[]', space=smem, size = 0x4, offset = 0x4, fixed_abs, tag = 'smem constant byte address 0x4 - core index']
  #allocation1 [shape = 'u32[144,128]{1,0:T(1,128)}', space=vmem, size = 0x12000, scoped, tag = 'internal scratch']
  #allocation2 [shape = 'f32[8,128]{1,0:T(8,128)}', space=vmem, size = 0x1000, scoped, tag = 'scratch operand']
  %s0 = inlined_call_operand.vmem [shape: bf16[2,1,8,256], index: 0, kind: input, shape index: {}]
  %s1 = inlined_call_operand.vmem [shape: bf16[25,8,8], index: 1, kind: input, shape index: {}]
  %s2 = inlined_call_operand.vmem [shape: f32[1,128], index: 2, kind: input, shape index: {}]
  %s3 = inlined_call_operand.hbm [shape: bf16[2,1,8,128], index: 3, kind: output, shape index: {0}]
  %s4 = inlined_call_operand.vmem [shape: f32[2,1,8,1], index: 4, kind: output, shape index: {1}]
  %s5 = inlined_call_operand.vmem [shape: f32[2,1,8,1], index: 5, kind: output, shape index: {2}]
  %6 = xla_tuple %s3, %s4, %s5
  %s7 = sld [smem:[#allocation0]]
  $region61: #{tpu_custom_call.1} parent=0
    _
  %s9 = ssub.s32 1, %s7
  %s10 = scalar_select 0, %s9, %s7
  $region1: #{tpu_custom_call.1} parent=0
    #allocation3 [shape = 'u8[4096]{0}', space=vmem, size = 0x1000, scoped, tag = 'output window, operand 0']
    #allocation4 [shape = 's32[2]{0}', space=sflag, size = 0x8, scoped, tag = 'scoped memory for tpu_custom_call.1']
    %11 = vsyncpa [#allocation4], 0
    %s12 = scalar_lea.sflag [#allocation4], 1
    %13 = vsyncpa %s12, 0
    loop: start=0, step=1, limit=4
    $region2: #{tpu_custom_call.1} parent=1 // loop_pre_header
      _
    $region3: #{tpu_custom_call.1} parent=1 // loop_header
      %s15 = sphi 0, %s19
      %p16 = scmp.ge.s32.totalorder %s15, 4
      %s22 = sphi 0, %s34
      %s23 = sphi 0, %s30
      %s24 = sphi 0, %s22
      %s25 = sphi 0, %s23
      %s26 = sphi 0, %s24
      %s27 = sphi 0, %s25
      %s39 = sphi 0, %s41
      %s42 = sphi 0, %s39
      %s43 = sphi 0, %s42
      %s59 = sphi 0, %s43
      %s63 = sphi 0, %s63
      %s65 = sphi 0, %s63
      %s66 = sphi 0, %s65
      %s80 = sphi 0, %s66
      %s84 = sphi 0, %s84
      %s86 = sphi 0, %s84
      %s87 = sphi 0, %s86
      %s101 = sphi 0, %s87
      %s109 = sphi 0, %s111
      %s112 = sphi 0, %s109
      %s113 = sphi 0, %s112
      %s129 = sphi 0, %s113
      %s137 = sphi 0, %s139
      %s140 = sphi 0, %s137
      %s141 = sphi 0, %s140
      %s157 = sphi 0, %s141
      %s165 = sphi 0, %s167
      %s168 = sphi 0, %s165
      %s169 = sphi 0, %s168
      %s185 = sphi 0, %s169
    $region4: #{tpu_custom_call.1} parent=1 // loop_header_branch
      %18 = sbr.rel (%p16) target = $region8
    $region5: #{tpu_custom_call.1} parent=1 // loop_body
      %s20 = ssub.s32 %s15, 1
      %s21 = ssub.s32 %s15, 2
      %s28 = sadd.s32 1, %s23
      %p29 = scmp.ge.s32.totalorder %s28, 1
      %s30 = scalar_select %p29, 0, %s28
      %s31 = sadd.s32 1, %s22
      %s32 = scalar_select %p29, %s31, %s22
      %p33 = scmp.ge.s32.totalorder %s32, 2
      %s34 = scalar_select %p33, 0, %s32
      %s35 = ssub.s32 %s22, %s34
      %s36 = ssub.s32 %s23, %s30
      %s37 = sor.u32 %s35, %s36
      %p38 = scmp.eq.s32.totalorder %s37, 0
      %s40 = sadd.s32 %s39, 1
      %s41 = scalar_select %p38, %s39, %s40
      %p44 = pneg %p38
      %p45 = scmp.eq.s32.totalorder %s15, 1
      %p46 = por %p44, %p45
      %p47 = scmp.ne.s32.totalorder %s39, %s42
      %p48 = scmp.eq.s32.totalorder %s15, 0
      %p49 = por %p47, %p48
      %p50 = scmp.ne.s32.totalorder %s39, %s42
      %p51 = scmp.eq.s32.totalorder %s20, 1
      %p52 = por %p50, %p51
      %p53 = scmp.ne.s32.totalorder %s42, %s43
      %p54 = scmp.eq.s32.totalorder %s20, 0
      %p55 = por %p53, %p54
      %p56 = scmp.ne.s32.totalorder %s42, %s43
      %p57 = scmp.eq.s32.totalorder %s21, 1
      %p58 = por %p56, %p57
      %p60 = scmp.ne.s32.totalorder %s43, %s59
      %p61 = scmp.eq.s32.totalorder %s21, 0
      %p62 = por %p60, %p61
      %s64 = sadd.s32 %s63, 1
      %p67 = scmp.eq.s32.totalorder %s15, 1
      %p68 = scmp.ne.s32.totalorder %s63, %s65
      %p69 = scmp.eq.s32.totalorder %s15, 0
      %p70 = por %p68, %p69
      %p71 = scmp.ne.s32.totalorder %s63, %s65
      %p72 = scmp.eq.s32.totalorder %s20, 1
      %p73 = por %p71, %p72
      %p74 = scmp.ne.s32.totalorder %s65, %s66
      %p75 = scmp.eq.s32.totalorder %s20, 0
      %p76 = por %p74, %p75
      %p77 = scmp.ne.s32.totalorder %s65, %s66
      %p78 = scmp.eq.s32.totalorder %s21, 1
      %p79 = por %p77, %p78
      %p81 = scmp.ne.s32.totalorder %s66, %s80
      %p82 = scmp.eq.s32.totalorder %s21, 0
      %p83 = por %p81, %p82
      %s85 = sadd.s32 %s84, 1
      %p88 = scmp.eq.s32.totalorder %s15, 1
      %p89 = scmp.ne.s32.totalorder %s84, %s86
      %p90 = scmp.eq.s32.totalorder %s15, 0
      %p91 = por %p89, %p90
      %p92 = scmp.ne.s32.totalorder %s84, %s86
      %p93 = scmp.eq.s32.totalorder %s20, 1
      %p94 = por %p92, %p93
      %p95 = scmp.ne.s32.totalorder %s86, %s87
      %p96 = scmp.eq.s32.totalorder %s20, 0
      %p97 = por %p95, %p96
      %p98 = scmp.ne.s32.totalorder %s86, %s87
      %p99 = scmp.eq.s32.totalorder %s21, 1
      %p100 = por %p98, %p99
      %p102 = scmp.ne.s32.totalorder %s87, %s101
      %p103 = scmp.eq.s32.totalorder %s21, 0
      %p104 = por %p102, %p103
      %s105 = ssub.s32 %s22, %s34
      %s106 = ssub.s32 %s23, %s30
      %s107 = sor.u32 %s105, %s106
      %p108 = scmp.eq.s32.totalorder %s107, 0
      %s110 = sadd.s32 %s109, 1
      %s111 = scalar_select %p108, %s109, %s110
      %p114 = pneg %p108
      %p115 = scmp.eq.s32.totalorder %s15, 1
      %p116 = por %p114, %p115
      %p117 = scmp.ne.s32.totalorder %s109, %s112
      %p118 = scmp.eq.s32.totalorder %s15, 0
      %p119 = por %p117, %p118
      %p120 = scmp.ne.s32.totalorder %s109, %s112
      %p121 = scmp.eq.s32.totalorder %s20, 1
      %p122 = por %p120, %p121
      %p123 = scmp.ne.s32.totalorder %s112, %s113
      %p124 = scmp.eq.s32.totalorder %s20, 0
      %p125 = por %p123, %p124
      %p126 = scmp.ne.s32.totalorder %s112, %s113
      %p127 = scmp.eq.s32.totalorder %s21, 1
      %p128 = por %p126, %p127
      %p130 = scmp.ne.s32.totalorder %s113, %s129
      %p131 = scmp.eq.s32.totalorder %s21, 0
      %p132 = por %p130, %p131
      %s133 = ssub.s32 %s22, %s34
      %s134 = ssub.s32 %s23, %s30
      %s135 = sor.u32 %s133, %s134
      %p136 = scmp.eq.s32.totalorder %s135, 0
      %s138 = sadd.s32 %s137, 1
      %s139 = scalar_select %p136, %s137, %s138
      %p142 = pneg %p136
      %p143 = scmp.eq.s32.totalorder %s15, 1
      %p144 = por %p142, %p143
      %p145 = scmp.ne.s32.totalorder %s137, %s140
      %p146 = scmp.eq.s32.totalorder %s15, 0
      %p147 = por %p145, %p146
      %p148 = scmp.ne.s32.totalorder %s137, %s140
      %p149 = scmp.eq.s32.totalorder %s20, 1
      %p150 = por %p148, %p149
      %p151 = scmp.ne.s32.totalorder %s140, %s141
      %p152 = scmp.eq.s32.totalorder %s20, 0
      %p153 = por %p151, %p152
      %p154 = scmp.ne.s32.totalorder %s140, %s141
      %p155 = scmp.eq.s32.totalorder %s21, 1
      %p156 = por %p154, %p155
      %p158 = scmp.ne.s32.totalorder %s141, %s157
      %p159 = scmp.eq.s32.totalorder %s21, 0
      %p160 = por %p158, %p159
      %s161 = ssub.s32 %s22, %s34
      %s162 = ssub.s32 %s23, %s30
      %s163 = sor.u32 %s161, %s162
      %p164 = scmp.eq.s32.totalorder %s163, 0
      %s166 = sadd.s32 %s165, 1
      %s167 = scalar_select %p164, %s165, %s166
      %p170 = pneg %p164
      %p171 = scmp.eq.s32.totalorder %s15, 1
      %p172 = por %p170, %p171
      %p173 = scmp.ne.s32.totalorder %s165, %s168
      %p174 = scmp.eq.s32.totalorder %s15, 0
      %p175 = por %p173, %p174
      %p176 = scmp.ne.s32.totalorder %s165, %s168
      %p177 = scmp.eq.s32.totalorder %s20, 1
      %p178 = por %p176, %p177
      %p179 = scmp.ne.s32.totalorder %s168, %s169
      %p180 = scmp.eq.s32.totalorder %s20, 0
      %p181 = por %p179, %p180
      %p182 = scmp.ne.s32.totalorder %s168, %s169
      %p183 = scmp.eq.s32.totalorder %s21, 1
      %p184 = por %p182, %p183
      %p186 = scmp.ne.s32.totalorder %s169, %s185
      %p187 = scmp.eq.s32.totalorder %s21, 0
      %p188 = por %p186, %p187
      %p189 = scmp.le.s32.totalorder 1, %s15
      %p190 = scmp.lt.s32.totalorder %s15, 3
      %p191 = pnand %p189, %p190
      %p192 = pneg %p191
      // Predicated region
      $region9: #{tpu_custom_call.1} parent=5 // pred_check
        _
      $region10: #{tpu_custom_call.1} parent=5 // pred_check_branch
        %194 = sbr.rel (%p191) target = $region12
      $region11: #{tpu_custom_call.1} parent=5 // pred_region
        %s195 = ssub.s32 %s15, 1
        // Predicated region
        $region13: #{tpu_custom_call.1} parent=11 // pred_check
          %p196 = pneg %p76
        $region14: #{tpu_custom_call.1} parent=11 // pred_check_branch
          %198 = sbr.rel (%p196) target = $region16
        $region15: #{tpu_custom_call.1} parent=11 // pred_region
          _
        $region16: #{tpu_custom_call.1} parent=11 // pred_fallthru
          _
        // Predicated region
        $region17: #{tpu_custom_call.1} parent=11 // pred_check
          %p199 = pneg %p97
        $region18: #{tpu_custom_call.1} parent=11 // pred_check_branch
          %201 = sbr.rel (%p199) target = $region20
        $region19: #{tpu_custom_call.1} parent=11 // pred_region
          _
        $region20: #{tpu_custom_call.1} parent=11 // pred_fallthru
          _
      $region12: #{tpu_custom_call.1} parent=5 // pred_fallthru
        _
      %p202 = scmp.lt.s32.totalorder %s15, 2
      // Predicated region
      $region21: #{tpu_custom_call.1} parent=5 // pred_check
        %p203 = pneg %p202
      $region22: #{tpu_custom_call.1} parent=5 // pred_check_branch
        %205 = sbr.rel (%p203) target = $region24
      $region23: #{tpu_custom_call.1} parent=5 // pred_region
        // Predicated region
        $region25: #{tpu_custom_call.1} parent=23 // pred_check
          %p206 = pneg %p49
        $region26: #{tpu_custom_call.1} parent=23 // pred_check_branch
          %208 = sbr.rel (%p206) target = $region28
        $region27: #{tpu_custom_call.1} parent=23 // pred_region
          %p209 = scmp.lt.s32.totalorder %s22, 1
          %s210 = scalar_select %p209, %s22, 1
          %p211 = scmp.lt.s32.totalorder %s23, 0
          %s212 = scalar_select %p211, %s23, 0
          %s213 = smul.addr %s212, 2
          %s214 = smul.addr %s210, 2
          %s215 = sadd.s32 %s213, %s214
          %s216 = smul.addr %s215, 4
          %s217 = scalar_lea.vmem %s0, %s216
        $region28: #{tpu_custom_call.1} parent=23 // pred_fallthru
          _
      $region24: #{tpu_custom_call.1} parent=5 // pred_fallthru
        _
      %p218 = scmp.le.s32.totalorder 1, %s15
      %p219 = scmp.lt.s32.totalorder %s15, 3
      %p220 = pnand %p218, %p219
      %p221 = pneg %p220
      // Predicated region
      $region29: #{tpu_custom_call.1} parent=5 // pred_check
        _
      $region30: #{tpu_custom_call.1} parent=5 // pred_check_branch
        %223 = sbr.rel (%p220) target = $region32
      $region31: #{tpu_custom_call.1} parent=5 // pred_region
        %s224 = ssub.s32 %s15, 1
        %p225 = scmp.lt.s32.totalorder %s24, 1
        %s226 = scalar_select %p225, %s24, 1
        %p227 = scmp.lt.s32.totalorder %s25, 0
        %s228 = scalar_select %p227, %s25, 0
        %s229 = smul.addr %s228, 2
        %s230 = smul.addr %s226, 2
        %s231 = sadd.s32 %s229, %s230
        %s232 = smul.addr %s231, 4
        %s233 = scalar_lea.vmem %s0, %s232
        %p234 = pneg %p55
        %p235 = pneg %p52
        %p236 = pneg %p76
        %p237 = pneg %p73
        %p238 = pneg %p97
        %p239 = pneg %p94
        %p240 = pneg %p125
        %p241 = pneg %p122
        %s242 = sand.u32 %s112, 1
        %s243 = scalar_lea.sflag [#allocation4], %s242
        %s244 = sand.u32 %s112, 1
        %s245 = smul.addr %s244, 4
        %s246 = scalar_lea.vmem [#allocation3], %s245
        %p247 = pneg %p153
        %p248 = pneg %p150
        %p249 = scmp.lt.s32.totalorder %s24, 1
        %s250 = scalar_select %p249, %s24, 1
        %p251 = scmp.lt.s32.totalorder %s25, 0
        %s252 = scalar_select %p251, %s25, 0
        %s253 = sadd.s32 %s252, %s250
        %s254 = smul.addr %s253, 8
        %s255 = scalar_lea.vmem %s4, %s254
        %p256 = pneg %p181
        %p257 = pneg %p178
        %p258 = scmp.lt.s32.totalorder %s24, 1
        %s259 = scalar_select %p258, %s24, 1
        %p260 = scmp.lt.s32.totalorder %s25, 0
        %s261 = scalar_select %p260, %s25, 0
        %s262 = sadd.s32 %s261, %s259
        %s263 = smul.addr %s262, 8
        %s264 = scalar_lea.vmem %s5, %s263
        %p265 = scmp.lt.s32.totalorder %s24, 1
        %s266 = scalar_select %p265, %s24, 1
        %p267 = scmp.lt.s32.totalorder %s25, 0
        %s268 = scalar_select %p267, %s25, 0
        %s269 = smul.addr %s268, 2
        %s270 = smul.addr %s266, 2
        %s271 = sadd.s32 %s269, %s270
        %s272 = smul.addr %s271, 4
        %s273 = scalar_lea.vmem %s0, %s272
        %p274 = scmp.lt.s32.totalorder %s24, 1
        %s275 = scalar_select %p274, %s24, 1
        %p276 = scmp.lt.s32.totalorder %s25, 0
        %s277 = scalar_select %p276, %s25, 0
        %s278 = sadd.s32 %s277, %s275
        %s279 = smul.addr %s278, 8
        %s280 = scalar_lea.vmem %s4, %s279
        %p281 = scmp.lt.s32.totalorder %s24, 1
        %s282 = scalar_select %p281, %s24, 1
        %p283 = scmp.lt.s32.totalorder %s25, 0
        %s284 = scalar_select %p283, %s25, 0
        %s285 = sadd.s32 %s284, %s282
        %s286 = smul.addr %s285, 8
        %s287 = scalar_lea.vmem %s5, %s286
        %v289 = vld [vmem:[%s273] sm:$0xff]
        %v290 = vmax.bf16 %v289, 0
        %291 = vst [vmem:[#allocation2] sm:$0xff] 0.0
        %v292 = vld [vmem:[#allocation2] sm:$0xff]
        %v293 = vld [vmem:[%s1] sm:$0xf]
        %vm294 = vcmask 64512
        %v296 = vsel %vm294, %v293, 0
        %vm298 = vcmask 1043456
        %v300 = vsel %vm298, %v290, 0
        %302 = vmatprep.subr.bf16.mxu0 0
        %303 = vmatpush1.bf16.msra.mxu0 %v300
        %304 = vmatprep.subr.bf16.mxu0 0
        %305 = vmatpush1.bf16.msra.mxu0 0
        %306 = vmatprep.subr.bf16.mxu0 0
        %307 = vmatpush1.bf16.msra.mxu0 0
        %308 = vmatprep.subr.bf16.mxu0 0
        %309 = vmatpush1.bf16.msra.mxu0 0
        %310 = vmatprep.subr.bf16.mxu0 0
        %311 = vmatpush1.bf16.msra.mxu0 0
        %312 = vmatprep.subr.bf16.mxu0 0
        %313 = vmatpush1.bf16.msra.mxu0 0
        %314 = vmatprep.subr.bf16.mxu0 0
        %315 = vmatpush1.bf16.msra.mxu0 0
        %316 = vmatprep.subr.bf16.mxu0 0
        %317 = vmatpush1.bf16.msra.mxu0 0
        %318 = vmatprep.subr.bf16.mxu0 0
        %319 = vmatpush1.bf16.msra.mxu0 0
        %320 = vmatprep.subr.bf16.mxu0 0
        %321 = vmatpush1.bf16.msra.mxu0 0
        %322 = vmatprep.subr.bf16.mxu0 0
        %323 = vmatpush1.bf16.msra.mxu0 0
        %324 = vmatprep.subr.bf16.mxu0 0
        %325 = vmatpush1.bf16.msra.mxu0 0
        %326 = vmatprep.subr.bf16.mxu0 0
        %327 = vmatpush1.bf16.msra.mxu0 0
        %328 = vmatprep.subr.bf16.mxu0 0
        %329 = vmatpush1.bf16.msra.mxu0 0
        %330 = vmatprep.subr.bf16.mxu0 0
        %331 = vmatpush1.bf16.msra.mxu0 0
        %332 = vmatprep.subr.bf16.mxu0 0
        %333 = vmatpush1.bf16.msra.mxu0 0
        %334 = vmatprep.mubr.bf16.mxu0 0
        %335 = vmatmul.mubr.bf16.gmra.mrb[0].mxu0 %v296
        %v336 = vpop.f32.mrb[0].mxu0
        %v337 = vadd.f32 0.0, %v336
        %v338 = vpop.f32.mrb[0].mxu0
        %v339 = vpop.f32.mrb[0].mxu0
        %v340 = vpop.f32.mrb[0].mxu0
        %341 = vdwg.mxu0
        %v342 = vadd.f32 %v292, %v337
        %343 = vst [vmem:[#allocation2] sm:$0xff] %v342
        %v344 = vld [vmem:[#allocation2] sm:$0xff]
        %s345 = scalar_lea.vmem %s1, 4
        %v346 = vld [vmem:[%s345] sm:$0xf]
        %v348 = vunpack.c.l.b16 %v290
        %v349 = vunpack.c.h.b16 %v290
        %v350 = vpack.c.b16 %v348, %v348
        %v351 = vpack.c.b16 %v349, %v349
        %352 = vrot.lane.b32.xlu0 %v350, 127
        %v353 = vpop.permute.xlu0 %352
        %354 = vrot.lane.b32.xlu0 %v351, 127
        %v355 = vpop.permute.xlu0 %354
        %vm356 = vcmask 1039360
        %v357 = vsel %vm356, %v353, %v355
        %v359 = vsel %vm294, %v346, 0
        %v362 = vsel %vm298, %v357, 0
        %364 = vmatprep.subr.bf16.mxu0 0
        %365 = vmatpush1.bf16.msra.mxu0 %v362
        %366 = vmatprep.subr.bf16.mxu0 0
        %367 = vmatpush1.bf16.msra.mxu0 0
        %368 = vmatprep.subr.bf16.mxu0 0
        %369 = vmatpush1.bf16.msra.mxu0 0
        %370 = vmatprep.subr.bf16.mxu0 0
        %371 = vmatpush1.bf16.msra.mxu0 0
        %372 = vmatprep.subr.bf16.mxu0 0
        %373 = vmatpush1.bf16.msra.mxu0 0
        %374 = vmatprep.subr.bf16.mxu0 0
        %375 = vmatpush1.bf16.msra.mxu0 0
        %376 = vmatprep.subr.bf16.mxu0 0
        %377 = vmatpush1.bf16.msra.mxu0 0
        %378 = vmatprep.subr.bf16.mxu0 0
        %379 = vmatpush1.bf16.msra.mxu0 0
        %380 = vmatprep.subr.bf16.mxu0 0
        %381 = vmatpush1.bf16.msra.mxu0 0
        %382 = vmatprep.subr.bf16.mxu0 0
        %383 = vmatpush1.bf16.msra.mxu0 0
        %384 = vmatprep.subr.bf16.mxu0 0
        %385 = vmatpush1.bf16.msra.mxu0 0
        %386 = vmatprep.subr.bf16.mxu0 0
        %387 = vmatpush1.bf16.msra.mxu0 0
        %388 = vmatprep.subr.bf16.mxu0 0
        %389 = vmatpush1.bf16.msra.mxu0 0
        %390 = vmatprep.subr.bf16.mxu0 0
        %391 = vmatpush1.bf16.msra.mxu0 0
        %392 = vmatprep.subr.bf16.mxu0 0
        %393 = vmatpush1.bf16.msra.mxu0 0
        %394 = vmatprep.subr.bf16.mxu0 0
        %395 = vmatpush1.bf16.msra.mxu0 0
        %396 = vmatprep.mubr.bf16.mxu0 0
        %397 = vmatmul.mubr.bf16.gmra.mrb[0].mxu0 %v359
        %v398 = vpop.f32.mrb[0].mxu0
        %v399 = vadd.f32 0.0, %v398
        %v400 = vpop.f32.mrb[0].mxu0
        %v401 = vpop.f32.mrb[0].mxu0
        %v402 = vpop.f32.mrb[0].mxu0
        %403 = vdwg.mxu0
        %v404 = vadd.f32 %v344, %v399
        %405 = vst [vmem:[#allocation2] sm:$0xff] %v404
        %v406 = vld [vmem:[#allocation2] sm:$0xff]
        %s407 = scalar_lea.vmem %s1, 8
        %v408 = vld [vmem:[%s407] sm:$0xf]
        %409 = vrot.lane.b32.xlu0 %v350, 126
        %v410 = vpop.permute.xlu0 %409
        %411 = vrot.lane.b32.xlu0 %v351, 126
        %v412 = vpop.permute.xlu0 %411
        %vm413 = vcmask 1031168
        %v414 = vsel %vm413, %v410, %v412
        %v416 = vsel %vm294, %v408, 0
        %v419 = vsel %vm298, %v414, 0
        %421 = vmatprep.subr.bf16.mxu0 0
        %422 = vmatpush1.bf16.msra.mxu0 %v419
        %423 = vmatprep.subr.bf16.mxu0 0
        %424 = vmatpush1.bf16.msra.mxu0 0
        %425 = vmatprep.subr.bf16.mxu0 0
        %426 = vmatpush1.bf16.msra.mxu0 0
        %427 = vmatprep.subr.bf16.mxu0 0
        %428 = vmatpush1.bf16.msra.mxu0 0
        %429 = vmatprep.subr.bf16.mxu0 0
        %430 = vmatpush1.bf16.msra.mxu0 0
        %431 = vmatprep.subr.bf16.mxu0 0
        %432 = vmatpush1.bf16.msra.mxu0 0
        %433 = vmatprep.subr.bf16.mxu0 0
        %434 = vmatpush1.bf16.msra.mxu0 0
        %435 = vmatprep.subr.bf16.mxu0 0
        %436 = vmatpush1.bf16.msra.mxu0 0
        %437 = vmatprep.subr.bf16.mxu0 0
        %438 = vmatpush1.bf16.msra.mxu0 0
        %439 = vmatprep.subr.bf16.mxu0 0
        %440 = vmatpush1.bf16.msra.mxu0 0
        %441 = vmatprep.subr.bf16.mxu0 0
        %442 = vmatpush1.bf16.msra.mxu0 0
        %443 = vmatprep.subr.bf16.mxu0 0
        %444 = vmatpush1.bf16.msra.mxu0 0
        %445 = vmatprep.subr.bf16.mxu0 0
        %446 = vmatpush1.bf16.msra.mxu0 0
        %447 = vmatprep.subr.bf16.mxu0 0
        %448 = vmatpush1.bf16.msra.mxu0 0
        %449 = vmatprep.subr.bf16.mxu0 0
        %450 = vmatpush1.bf16.msra.mxu0 0
        %451 = vmatprep.subr.bf16.mxu0 0
        %452 = vmatpush1.bf16.msra.mxu0 0
        %453 = vmatprep.mubr.bf16.mxu0 0
        %454 = vmatmul.mubr.bf16.gmra.mrb[0].mxu0 %v416
        %v455 = vpop.f32.mrb[0].mxu0
        %v456 = vadd.f32 0.0, %v455
        %v457 = vpop.f32.mrb[0].mxu0
        %v458 = vpop.f32.mrb[0].mxu0
        %v459 = vpop.f32.mrb[0].mxu0
        %460 = vdwg.mxu0
        %v461 = vadd.f32 %v406, %v456
        %462 = vst [vmem:[#allocation2] sm:$0xff] %v461
        %v463 = vld [vmem:[#allocation2] sm:$0xff]
        %s464 = scalar_lea.vmem %s1, 12
        %v465 = vld [vmem:[%s464] sm:$0xf]
        %466 = vrot.lane.b32.xlu0 %v350, 125
        %v467 = vpop.permute.xlu0 %466
        %468 = vrot.lane.b32.xlu0 %v351, 125
        %v469 = vpop.permute.xlu0 %468
        %vm470 = vcmask 1022976
        %v471 = vsel %vm470, %v467, %v469
        %v473 = vsel %vm294, %v465, 0
        %v476 = vsel %vm298, %v471, 0
        %478 = vmatprep.subr.bf16.mxu0 0
        %479 = vmatpush1.bf16.msra.mxu0 %v476
        %480 = vmatprep.subr.bf16.mxu0 0
        %481 = vmatpush1.bf16.msra.mxu0 0
        %482 = vmatprep.subr.bf16.mxu0 0
        %483 = vmatpush1.bf16.msra.mxu0 0
        %484 = vmatprep.subr.bf16.mxu0 0
        %485 = vmatpush1.bf16.msra.mxu0 0
        %486 = vmatprep.subr.bf16.mxu0 0
        %487 = vmatpush1.bf16.msra.mxu0 0
        %488 = vmatprep.subr.bf16.mxu0 0
        %489 = vmatpush1.bf16.msra.mxu0 0
        %490 = vmatprep.subr.bf16.mxu0 0
        %491 = vmatpush1.bf16.msra.mxu0 0
        %492 = vmatprep.subr.bf16.mxu0 0
        %493 = vmatpush1.bf16.msra.mxu0 0
        %494 = vmatprep.subr.bf16.mxu0 0
        %495 = vmatpush1.bf16.msra.mxu0 0
        %496 = vmatprep.subr.bf16.mxu0 0
        %497 = vmatpush1.bf16.msra.mxu0 0
        %498 = vmatprep.subr.bf16.mxu0 0
        %499 = vmatpush1.bf16.msra.mxu0 0
        %500 = vmatprep.subr.bf16.mxu0 0
        %501 = vmatpush1.bf16.msra.mxu0 0
        %502 = vmatprep.subr.bf16.mxu0 0
        %503 = vmatpush1.bf16.msra.mxu0 0
        %504 = vmatprep.subr.bf16.mxu0 0
        %505 = vmatpush1.bf16.msra.mxu0 0
        %506 = vmatprep.subr.bf16.mxu0 0
        %507 = vmatpush1.bf16.msra.mxu0 0
        %508 = vmatprep.subr.bf16.mxu0 0
        %509 = vmatpush1.bf16.msra.mxu0 0
        %510 = vmatprep.mubr.bf16.mxu0 0
        %511 = vmatmul.mubr.bf16.gmra.mrb[0].mxu0 %v473
        %v512 = vpop.f32.mrb[0].mxu0
        %v513 = vadd.f32 0.0, %v512
        %v514 = vpop.f32.mrb[0].mxu0
        %v515 = vpop.f32.mrb[0].mxu0
        %v516 = vpop.f32.mrb[0].mxu0
        %517 = vdwg.mxu0
        %v518 = vadd.f32 %v463, %v513
        %519 = vst [vmem:[#allocation2] sm:$0xff] %v518
        %v520 = vld [vmem:[#allocation2] sm:$0xff]
        %s521 = scalar_lea.vmem %s1, 16
        %v522 = vld [vmem:[%s521] sm:$0xf]
        %523 = vrot.lane.b32.xlu0 %v350, 124
        %v524 = vpop.permute.xlu0 %523
        %525 = vrot.lane.b32.xlu0 %v351, 124
        %v526 = vpop.permute.xlu0 %525
        %vm527 = vcmask 1014784
        %v528 = vsel %vm527, %v524, %v526
        %v530 = vsel %vm294, %v522, 0
        %v533 = vsel %vm298, %v528, 0
        %535 = vmatprep.subr.bf16.mxu0 0
        %536 = vmatpush1.bf16.msra.mxu0 %v533
        %537 = vmatprep.subr.bf16.mxu0 0
        %538 = vmatpush1.bf16.msra.mxu0 0
        %539 = vmatprep.subr.bf16.mxu0 0
        %540 = vmatpush1.bf16.msra.mxu0 0
        %541 = vmatprep.subr.bf16.mxu0 0
        %542 = vmatpush1.bf16.msra.mxu0 0
        %543 = vmatprep.subr.bf16.mxu0 0
        %544 = vmatpush1.bf16.msra.mxu0 0
        %545 = vmatprep.subr.bf16.mxu0 0
        %546 = vmatpush1.bf16.msra.mxu0 0
        %547 = vmatprep.subr.bf16.mxu0 0
        %548 = vmatpush1.bf16.msra.mxu0 0
        %549 = vmatprep.subr.bf16.mxu0 0
        %550 = vmatpush1.bf16.msra.mxu0 0
        %551 = vmatprep.subr.bf16.mxu0 0
        %552 = vmatpush1.bf16.msra.mxu0 0
        %553 = vmatprep.subr.bf16.mxu0 0
        %554 = vmatpush1.bf16.msra.mxu0 0
        %555 = vmatprep.subr.bf16.mxu0 0
        %556 = vmatpush1.bf16.msra.mxu0 0
        %557 = vmatprep.subr.bf16.mxu0 0
        %558 = vmatpush1.bf16.msra.mxu0 0
        %559 = vmatprep.subr.bf16.mxu0 0
        %560 = vmatpush1.bf16.msra.mxu0 0
        %561 = vmatprep.subr.bf16.mxu0 0
        %562 = vmatpush1.bf16.msra.mxu0 0
        %563 = vmatprep.subr.bf16.mxu0 0
        %564 = vmatpush1.bf16.msra.mxu0 0
        %565 = vmatprep.subr.bf16.mxu0 0
        %566 = vmatpush1.bf16.msra.mxu0 0
        %567 = vmatprep.mubr.bf16.mxu0 0
        %568 = vmatmul.mubr.bf16.gmra.mrb[0].mxu0 %v530
        %v569 = vpop.f32.mrb[0].mxu0
        %v570 = vadd.f32 0.0, %v569
        %v571 = vpop.f32.mrb[0].mxu0
        %v572 = vpop.f32.mrb[0].mxu0
        %v573 = vpop.f32.mrb[0].mxu0
        %574 = vdwg.mxu0
        %v575 = vadd.f32 %v520, %v570
        %576 = vst [vmem:[#allocation2] sm:$0xff] %v575
        %v577 = vld [vmem:[#allocation2] sm:$0xff]
        %s578 = scalar_lea.vmem %s1, 20
        %v579 = vld [vmem:[%s578] sm:$0xf]
        %580 = vrot.lane.b32.xlu0 %v350, 116
        %v581 = vpop.permute.xlu0 %580
        %582 = vrot.lane.b32.xlu0 %v351, 116
        %v583 = vpop.permute.xlu0 %582
        %vm584 = vcmask 949248
        %v585 = vsel %vm584, %v581, %v583
        %v587 = vsel %vm294, %v579, 0
        %v590 = vsel %vm298, %v585, 0
        %592 = vmatprep.subr.bf16.mxu0 0
        %593 = vmatpush1.bf16.msra.mxu0 %v590
        %594 = vmatprep.subr.bf16.mxu0 0
        %595 = vmatpush1.bf16.msra.mxu0 0
        %596 = vmatprep.subr.bf16.mxu0 0
        %597 = vmatpush1.bf16.msra.mxu0 0
        %598 = vmatprep.subr.bf16.mxu0 0
        %599 = vmatpush1.bf16.msra.mxu0 0
        %600 = vmatprep.subr.bf16.mxu0 0
        %601 = vmatpush1.bf16.msra.mxu0 0
        %602 = vmatprep.subr.bf16.mxu0 0
        %603 = vmatpush1.bf16.msra.mxu0 0
        %604 = vmatprep.subr.bf16.mxu0 0
        %605 = vmatpush1.bf16.msra.mxu0 0
        %606 = vmatprep.subr.bf16.mxu0 0
        %607 = vmatpush1.bf16.msra.mxu0 0
        %608 = vmatprep.subr.bf16.mxu0 0
        %609 = vmatpush1.bf16.msra.mxu0 0
        %610 = vmatprep.subr.bf16.mxu0 0
        %611 = vmatpush1.bf16.msra.mxu0 0
        %612 = vmatprep.subr.bf16.mxu0 0
        %613 = vmatpush1.bf16.msra.mxu0 0
        %614 = vmatprep.subr.bf16.mxu0 0
        %615 = vmatpush1.bf16.msra.mxu0 0
        %616 = vmatprep.subr.bf16.mxu0 0
        %617 = vmatpush1.bf16.msra.mxu0 0
        %618 = vmatprep.subr.bf16.mxu0 0
        %619 = vmatpush1.bf16.msra.mxu0 0
        %620 = vmatprep.subr.bf16.mxu0 0
        %621 = vmatpush1.bf16.msra.mxu0 0
        %622 = vmatprep.subr.bf16.mxu0 0
        %623 = vmatpush1.bf16.msra.mxu0 0
        %624 = vmatprep.mubr.bf16.mxu0 0
        %625 = vmatmul.mubr.bf16.gmra.mrb[0].mxu0 %v587
        %v626 = vpop.f32.mrb[0].mxu0
        %v627 = vadd.f32 0.0, %v626
        %v628 = vpop.f32.mrb[0].mxu0
        %v629 = vpop.f32.mrb[0].mxu0
        %v630 = vpop.f32.mrb[0].mxu0
        %631 = vdwg.mxu0
        %v632 = vadd.f32 %v577, %v627
        %633 = vst [vmem:[#allocation2] sm:$0xff] %v632
        %v634 = vld [vmem:[#allocation2] sm:$0xff]
        %s635 = scalar_lea.vmem %s1, 24
        %v636 = vld [vmem:[%s635] sm:$0xf]
        %637 = vrot.lane.b32.xlu0 %v350, 115
        %v638 = vpop.permute.xlu0 %637
        %639 = vrot.lane.b32.xlu0 %v351, 115
        %v640 = vpop.permute.xlu0 %639
        %vm641 = vcmask 941056
        %v642 = vsel %vm641, %v638, %v640
        %v644 = vsel %vm294, %v636, 0
        %v647 = vsel %vm298, %v642, 0
        %649 = vmatprep.subr.bf16.mxu0 0
        %650 = vmatpush1.bf16.msra.mxu0 %v647
        %651 = vmatprep.subr.bf16.mxu0 0
        %652 = vmatpush1.bf16.msra.mxu0 0
        %653 = vmatprep.subr.bf16.mxu0 0
        %654 = vmatpush1.bf16.msra.mxu0 0
        %655 = vmatprep.subr.bf16.mxu0 0
        %656 = vmatpush1.bf16.msra.mxu0 0
        %657 = vmatprep.subr.bf16.mxu0 0
        %658 = vmatpush1.bf16.msra.mxu0 0
        %659 = vmatprep.subr.bf16.mxu0 0
        %660 = vmatpush1.bf16.msra.mxu0 0
        %661 = vmatprep.subr.bf16.mxu0 0
        %662 = vmatpush1.bf16.msra.mxu0 0
        %663 = vmatprep.subr.bf16.mxu0 0
        %664 = vmatpush1.bf16.msra.mxu0 0
        %665 = vmatprep.subr.bf16.mxu0 0
        %666 = vmatpush1.bf16.msra.mxu0 0
        %667 = vmatprep.subr.bf16.mxu0 0
        %668 = vmatpush1.bf16.msra.mxu0 0
        %669 = vmatprep.subr.bf16.mxu0 0
        %670 = vmatpush1.bf16.msra.mxu0 0
        %671 = vmatprep.subr.bf16.mxu0 0
        %672 = vmatpush1.bf16.msra.mxu0 0
        %673 = vmatprep.subr.bf16.mxu0 0
        %674 = vmatpush1.bf16.msra.mxu0 0
        %675 = vmatprep.subr.bf16.mxu0 0
        %676 = vmatpush1.bf16.msra.mxu0 0
        %677 = vmatprep.subr.bf16.mxu0 0
        %678 = vmatpush1.bf16.msra.mxu0 0
        %679 = vmatprep.subr.bf16.mxu0 0
        %680 = vmatpush1.bf16.msra.mxu0 0
        %681 = vmatprep.mubr.bf16.mxu0 0
        %682 = vmatmul.mubr.bf16.gmra.mrb[0].mxu0 %v644
        %v683 = vpop.f32.mrb[0].mxu0
        %v684 = vadd.f32 0.0, %v683
        %v685 = vpop.f32.mrb[0].mxu0
        %v686 = vpop.f32.mrb[0].mxu0
        %v687 = vpop.f32.mrb[0].mxu0
        %688 = vdwg.mxu0
        %v689 = vadd.f32 %v634, %v684
        %690 = vst [vmem:[#allocation2] sm:$0xff] %v689
        %v691 = vld [vmem:[#allocation2] sm:$0xff]
        %s692 = scalar_lea.vmem %s1, 28
        %v693 = vld [vmem:[%s692] sm:$0xf]
        %694 = vrot.lane.b32.xlu0 %v350, 114
        %v695 = vpop.permute.xlu0 %694
        %696 = vrot.lane.b32.xlu0 %v351, 114
        %v697 = vpop.permute.xlu0 %696
        %vm698 = vcmask 932864
        %v699 = vsel %vm698, %v695, %v697
        %v701 = vsel %vm294, %v693, 0
        %v704 = vsel %vm298, %v699, 0
        %706 = vmatprep.subr.bf16.mxu0 0
        %707 = vmatpush1.bf16.msra.mxu0 %v704
        %708 = vmatprep.subr.bf16.mxu0 0
        %709 = vmatpush1.bf16.msra.mxu0 0
        %710 = vmatprep.subr.bf16.mxu0 0
        %711 = vmatpush1.bf16.msra.mxu0 0
        %712 = vmatprep.subr.bf16.mxu0 0
        %713 = vmatpush1.bf16.msra.mxu0 0
        %714 = vmatprep.subr.bf16.mxu0 0
        %715 = vmatpush1.bf16.msra.mxu0 0
        %716 = vmatprep.subr.bf16.mxu0 0
        %717 = vmatpush1.bf16.msra.mxu0 0
        %718 = vmatprep.subr.bf16.mxu0 0
        %719 = vmatpush1.bf16.msra.mxu0 0
        %720 = vmatprep.subr.bf16.mxu0 0
        %721 = vmatpush1.bf16.msra.mxu0 0
        %722 = vmatprep.subr.bf16.mxu0 0
        %723 = vmatpush1.bf16.msra.mxu0 0
        %724 = vmatprep.subr.bf16.mxu0 0
        %725 = vmatpush1.bf16.msra.mxu0 0
        %726 = vmatprep.subr.bf16.mxu0 0
        %727 = vmatpush1.bf16.msra.mxu0 0
        %728 = vmatprep.subr.bf16.mxu0 0
        %729 = vmatpush1.bf16.msra.mxu0 0
        %730 = vmatprep.subr.bf16.mxu0 0
        %731 = vmatpush1.bf16.msra.mxu0 0
        %732 = vmatprep.subr.bf16.mxu0 0
        %733 = vmatpush1.bf16.msra.mxu0 0
        %734 = vmatprep.subr.bf16.mxu0 0
        %735 = vmatpush1.bf16.msra.mxu0 0
        %736 = vmatprep.subr.bf16.mxu0 0
        %737 = vmatpush1.bf16.msra.mxu0 0
        %738 = vmatprep.mubr.bf16.mxu0 0
        %739 = vmatmul.mubr.bf16.gmra.mrb[0].mxu0 %v701
        %v740 = vpop.f32.mrb[0].mxu0
        %v741 = vadd.f32 0.0, %v740
        %v742 = vpop.f32.mrb[0].mxu0
        %v743 = vpop.f32.mrb[0].mxu0
        %v744 = vpop.f32.mrb[0].mxu0
        %745 = vdwg.mxu0
        %v746 = vadd.f32 %v691, %v741
        %747 = vst [vmem:[#allocation2] sm:$0xff] %v746
        %v748 = vld [vmem:[#allocation2] sm:$0xff]
        %s749 = scalar_lea.vmem %s1, 32
        %v750 = vld [vmem:[%s749] sm:$0xf]
        %751 = vrot.lane.b32.xlu0 %v350, 113
        %v752 = vpop.permute.xlu0 %751
        %753 = vrot.lane.b32.xlu0 %v351, 113
        %v754 = vpop.permute.xlu0 %753
        %vm755 = vcmask 924672
        %v756 = vsel %vm755, %v752, %v754
        %v758 = vsel %vm294, %v750, 0
        %v761 = vsel %vm298, %v756, 0
        %763 = vmatprep.subr.bf16.mxu0 0
        %764 = vmatpush1.bf16.msra.mxu0 %v761
        %765 = vmatprep.subr.bf16.mxu0 0
        %766 = vmatpush1.bf16.msra.mxu0 0
        %767 = vmatprep.subr.bf16.mxu0 0
        %768 = vmatpush1.bf16.msra.mxu0 0
        %769 = vmatprep.subr.bf16.mxu0 0
        %770 = vmatpush1.bf16.msra.mxu0 0
        %771 = vmatprep.subr.bf16.mxu0 0
        %772 = vmatpush1.bf16.msra.mxu0 0
        %773 = vmatprep.subr.bf16.mxu0 0
        %774 = vmatpush1.bf16.msra.mxu0 0
        %775 = vmatprep.subr.bf16.mxu0 0
        %776 = vmatpush1.bf16.msra.mxu0 0
        %777 = vmatprep.subr.bf16.mxu0 0
        %778 = vmatpush1.bf16.msra.mxu0 0
        %779 = vmatprep.subr.bf16.mxu0 0
        %780 = vmatpush1.bf16.msra.mxu0 0
        %781 = vmatprep.subr.bf16.mxu0 0
        %782 = vmatpush1.bf16.msra.mxu0 0
        %783 = vmatprep.subr.bf16.mxu0 0
        %784 = vmatpush1.bf16.msra.mxu0 0
        %785 = vmatprep.subr.bf16.mxu0 0
        %786 = vmatpush1.bf16.msra.mxu0 0
        %787 = vmatprep.subr.bf16.mxu0 0
        %788 = vmatpush1.bf16.msra.mxu0 0
        %789 = vmatprep.subr.bf16.mxu0 0
        %790 = vmatpush1.bf16.msra.mxu0 0
        %791 = vmatprep.subr.bf16.mxu0 0
        %792 = vmatpush1.bf16.msra.mxu0 0
        %793 = vmatprep.subr.bf16.mxu0 0
        %794 = vmatpush1.bf16.msra.mxu0 0
        %795 = vmatprep.mubr.bf16.mxu0 0
        %796 = vmatmul.mubr.bf16.gmra.mrb[0].mxu0 %v758
        %v797 = vpop.f32.mrb[0].mxu0
        %v798 = vadd.f32 0.0, %v797
        %v799 = vpop.f32.mrb[0].mxu0
        %v800 = vpop.f32.mrb[0].mxu0
        %v801 = vpop.f32.mrb[0].mxu0
        %802 = vdwg.mxu0
        %v803 = vadd.f32 %v748, %v798
        %804 = vst [vmem:[#allocation2] sm:$0xff] %v803
        %v805 = vld [vmem:[#allocation2] sm:$0xff]
        %s806 = scalar_lea.vmem %s1, 36
        %v807 = vld [vmem:[%s806] sm:$0xf]
        %808 = vrot.lane.b32.xlu0 %v350, 112
        %v809 = vpop.permute.xlu0 %808
        %810 = vrot.lane.b32.xlu0 %v351, 112
        %v811 = vpop.permute.xlu0 %810
        %vm812 = vcmask 916480
        %v813 = vsel %vm812, %v809, %v811
        %v815 = vsel %vm294, %v807, 0
        %v818 = vsel %vm298, %v813, 0
        %820 = vmatprep.subr.bf16.mxu0 0
        %821 = vmatpush1.bf16.msra.mxu0 %v818
        %822 = vmatprep.subr.bf16.mxu0 0
        %823 = vmatpush1.bf16.msra.mxu0 0
        %824 = vmatprep.subr.bf16.mxu0 0
        %825 = vmatpush1.bf16.msra.mxu0 0
        %826 = vmatprep.subr.bf16.mxu0 0
        %827 = vmatpush1.bf16.msra.mxu0 0
        %828 = vmatprep.subr.bf16.mxu0 0
        %829 = vmatpush1.bf16.msra.mxu0 0
        %830 = vmatprep.subr.bf16.mxu0 0
        %831 = vmatpush1.bf16.msra.mxu0 0
        %832 = vmatprep.subr.bf16.mxu0 0
        %833 = vmatpush1.bf16.msra.mxu0 0
        %834 = vmatprep.subr.bf16.mxu0 0
        %835 = vmatpush1.bf16.msra.mxu0 0
        %836 = vmatprep.subr.bf16.mxu0 0
        %837 = vmatpush1.bf16.msra.mxu0 0
        %838 = vmatprep.subr.bf16.mxu0 0
        %839 = vmatpush1.bf16.msra.mxu0 0
        %840 = vmatprep.subr.bf16.mxu0 0
        %841 = vmatpush1.bf16.msra.mxu0 0
        %842 = vmatprep.subr.bf16.mxu0 0
        %843 = vmatpush1.bf16.msra.mxu0 0
        %844 = vmatprep.subr.bf16.mxu0 0
        %845 = vmatpush1.bf16.msra.mxu0 0
        %846 = vmatprep.subr.bf16.mxu0 0
        %847 = vmatpush1.bf16.msra.mxu0 0
        %848 = vmatprep.subr.bf16.mxu0 0
        %849 = vmatpush1.bf16.msra.mxu0 0
        %850 = vmatprep.subr.bf16.mxu0 0
        %851 = vmatpush1.bf16.msra.mxu0 0
        %852 = vmatprep.mubr.bf16.mxu0 0
        %853 = vmatmul.mubr.bf16.gmra.mrb[0].mxu0 %v815
        %v854 = vpop.f32.mrb[0].mxu0
        %v855 = vadd.f32 0.0, %v854
        %v856 = vpop.f32.mrb[0].mxu0
        %v857 = vpop.f32.mrb[0].mxu0
        %v858 = vpop.f32.mrb[0].mxu0
        %859 = vdwg.mxu0
        %v860 = vadd.f32 %v805, %v855
        %861 = vst [vmem:[#allocation2] sm:$0xff] %v860
        %v862 = vld [vmem:[#allocation2] sm:$0xff]
        %s863 = scalar_lea.vmem %s1, 40
        %v864 = vld [vmem:[%s863] sm:$0xf]
        %865 = vrot.lane.b32.xlu0 %v350, 104
        %v866 = vpop.permute.xlu0 %865
        %867 = vrot.lane.b32.xlu0 %v351, 104
        %v868 = vpop.permute.xlu0 %867
        %vm869 = vcmask 850944
        %v870 = vsel %vm869, %v866, %v868
        %v872 = vsel %vm294, %v864, 0
        %v875 = vsel %vm298, %v870, 0
        %877 = vmatprep.subr.bf16.mxu0 0
        %878 = vmatpush1.bf16.msra.mxu0 %v875
        %879 = vmatprep.subr.bf16.mxu0 0
        %880 = vmatpush1.bf16.msra.mxu0 0
        %881 = vmatprep.subr.bf16.mxu0 0
        %882 = vmatpush1.bf16.msra.mxu0 0
        %883 = vmatprep.subr.bf16.mxu0 0
        %884 = vmatpush1.bf16.msra.mxu0 0
        %885 = vmatprep.subr.bf16.mxu0 0
        %886 = vmatpush1.bf16.msra.mxu0 0
        %887 = vmatprep.subr.bf16.mxu0 0
        %888 = vmatpush1.bf16.msra.mxu0 0
        %889 = vmatprep.subr.bf16.mxu0 0
        %890 = vmatpush1.bf16.msra.mxu0 0
        %891 = vmatprep.subr.bf16.mxu0 0
        %892 = vmatpush1.bf16.msra.mxu0 0
        %893 = vmatprep.subr.bf16.mxu0 0
        %894 = vmatpush1.bf16.msra.mxu0 0
        %895 = vmatprep.subr.bf16.mxu0 0
        %896 = vmatpush1.bf16.msra.mxu0 0
        %897 = vmatprep.subr.bf16.mxu0 0
        %898 = vmatpush1.bf16.msra.mxu0 0
        %899 = vmatprep.subr.bf16.mxu0 0
        %900 = vmatpush1.bf16.msra.mxu0 0
        %901 = vmatprep.subr.bf16.mxu0 0
        %902 = vmatpush1.bf16.msra.mxu0 0
        %903 = vmatprep.subr.bf16.mxu0 0
        %904 = vmatpush1.bf16.msra.mxu0 0
        %905 = vmatprep.subr.bf16.mxu0 0
        %906 = vmatpush1.bf16.msra.mxu0 0
        %907 = vmatprep.subr.bf16.mxu0 0
        %908 = vmatpush1.bf16.msra.mxu0 0
        %909 = vmatprep.mubr.bf16.mxu0 0
        %910 = vmatmul.mubr.bf16.gmra.mrb[0].mxu0 %v872
        %v911 = vpop.f32.mrb[0].mxu0
        %v912 = vadd.f32 0.0, %v911
        %v913 = vpop.f32.mrb[0].mxu0
        %v914 = vpop.f32.mrb[0].mxu0
        %v915 = vpop.f32.mrb[0].mxu0
        %916 = vdwg.mxu0
        %v917 = vadd.f32 %v862, %v912
        %918 = vst [vmem:[#allocation2] sm:$0xff] %v917
        %v919 = vld [vmem:[#allocation2] sm:$0xff]
        %s920 = scalar_lea.vmem %s1, 44
        %v921 = vld [vmem:[%s920] sm:$0xf]
        %922 = vrot.lane.b32.xlu0 %v350, 103
        %v923 = vpop.permute.xlu0 %922
        %924 = vrot.lane.b32.xlu0 %v351, 103
        %v925 = vpop.permute.xlu0 %924
        %vm926 = vcmask 842752
        %v927 = vsel %vm926, %v923, %v925
        %v929 = vsel %vm294, %v921, 0
        %v932 = vsel %vm298, %v927, 0
        %934 = vmatprep.subr.bf16.mxu0 0
        %935 = vmatpush1.bf16.msra.mxu0 %v932
        %936 = vmatprep.subr.bf16.mxu0 0
        %937 = vmatpush1.bf16.msra.mxu0 0
        %938 = vmatprep.subr.bf16.mxu0 0
        %939 = vmatpush1.bf16.msra.mxu0 0
        %940 = vmatprep.subr.bf16.mxu0 0
        %941 = vmatpush1.bf16.msra.mxu0 0
        %942 = vmatprep.subr.bf16.mxu0 0
        %943 = vmatpush1.bf16.msra.mxu0 0
        %944 = vmatprep.subr.bf16.mxu0 0
        %945 = vmatpush1.bf16.msra.mxu0 0
        %946 = vmatprep.subr.bf16.mxu0 0
        %947 = vmatpush1.bf16.msra.mxu0 0
        %948 = vmatprep.subr.bf16.mxu0 0
        %949 = vmatpush1.bf16.msra.mxu0 0
        %950 = vmatprep.subr.bf16.mxu0 0
        %951 = vmatpush1.bf16.msra.mxu0 0
        %952 = vmatprep.subr.bf16.mxu0 0
        %953 = vmatpush1.bf16.msra.mxu0 0
        %954 = vmatprep.subr.bf16.mxu0 0
        %955 = vmatpush1.bf16.msra.mxu0 0
        %956 = vmatprep.subr.bf16.mxu0 0
        %957 = vmatpush1.bf16.msra.mxu0 0
        %958 = vmatprep.subr.bf16.mxu0 0
        %959 = vmatpush1.bf16.msra.mxu0 0
        %960 = vmatprep.subr.bf16.mxu0 0
        %961 = vmatpush1.bf16.msra.mxu0 0
        %962 = vmatprep.subr.bf16.mxu0 0
        %963 = vmatpush1.bf16.msra.mxu0 0
        %964 = vmatprep.subr.bf16.mxu0 0
        %965 = vmatpush1.bf16.msra.mxu0 0
        %966 = vmatprep.mubr.bf16.mxu0 0
        %967 = vmatmul.mubr.bf16.gmra.mrb[0].mxu0 %v929
        %v968 = vpop.f32.mrb[0].mxu0
        %v969 = vadd.f32 0.0, %v968
        %v970 = vpop.f32.mrb[0].mxu0
        %v971 = vpop.f32.mrb[0].mxu0
        %v972 = vpop.f32.mrb[0].mxu0
        %973 = vdwg.mxu0
        %v974 = vadd.f32 %v919, %v969
        %975 = vst [vmem:[#allocation2] sm:$0xff] %v974
        %v976 = vld [vmem:[#allocation2] sm:$0xff]
        %s977 = scalar_lea.vmem %s1, 48
        %v978 = vld [vmem:[%s977] sm:$0xf]
        %979 = vrot.lane.b32.xlu0 %v350, 102
        %v980 = vpop.permute.xlu0 %979
        %981 = vrot.lane.b32.xlu0 %v351, 102
        %v982 = vpop.permute.xlu0 %981
        %vm983 = vcmask 834560
        %v984 = vsel %vm983, %v980, %v982
        %v986 = vsel %vm294, %v978, 0
        %v989 = vsel %vm298, %v984, 0
        %991 = vmatprep.subr.bf16.mxu0 0
        %992 = vmatpush1.bf16.msra.mxu0 %v989
        %993 = vmatprep.subr.bf16.mxu0 0
        %994 = vmatpush1.bf16.msra.mxu0 0
        %995 = vmatprep.subr.bf16.mxu0 0
        %996 = vmatpush1.bf16.msra.mxu0 0
        %997 = vmatprep.subr.bf16.mxu0 0
        %998 = vmatpush1.bf16.msra.mxu0 0
        %999 = vmatprep.subr.bf16.mxu0 0
        %1000 = vmatpush1.bf16.msra.mxu0 0
        %1001 = vmatprep.subr.bf16.mxu0 0
        %1002 = vmatpush1.bf16.msra.mxu0 0
        %1003 = vmatprep.subr.bf16.mxu0 0
        %1004 = vmatpush1.bf16.msra.mxu0 0
        %1005 = vmatprep.subr.bf16.mxu0 0
        %1006 = vmatpush1.bf16.msra.mxu0 0
        %1007 = vmatprep.subr.bf16.mxu0 0
        %1008 = vmatpush1.bf16.msra.mxu0 0
        %1009 = vmatprep.subr.bf16.mxu0 0
        %1010 = vmatpush1.bf16.msra.mxu0 0
        %1011 = vmatprep.subr.bf16.mxu0 0
        %1012 = vmatpush1.bf16.msra.mxu0 0
        %1013 = vmatprep.subr.bf16.mxu0 0
        %1014 = vmatpush1.bf16.msra.mxu0 0
        %1015 = vmatprep.subr.bf16.mxu0 0
        %1016 = vmatpush1.bf16.msra.mxu0 0
        %1017 = vmatprep.subr.bf16.mxu0 0
        %1018 = vmatpush1.bf16.msra.mxu0 0
        %1019 = vmatprep.subr.bf16.mxu0 0
        %1020 = vmatpush1.bf16.msra.mxu0 0
        %1021 = vmatprep.subr.bf16.mxu0 0
        %1022 = vmatpush1.bf16.msra.mxu0 0
        %1023 = vmatprep.mubr.bf16.mxu0 0
        %1024 = vmatmul.mubr.bf16.gmra.mrb[0].mxu0 %v986
        %v1025 = vpop.f32.mrb[0].mxu0
        %v1026 = vadd.f32 0.0, %v1025
        %v1027 = vpop.f32.mrb[0].mxu0
        %v1028 = vpop.f32.mrb[0].mxu0
        %v1029 = vpop.f32.mrb[0].mxu0
        %1030 = vdwg.mxu0
        %v1031 = vadd.f32 %v976, %v1026
        %1032 = vst [vmem:[#allocation2] sm:$0xff] %v1031
        %v1033 = vld [vmem:[#allocation2] sm:$0xff]
        %s1034 = scalar_lea.vmem %s1, 52
        %v1035 = vld [vmem:[%s1034] sm:$0xf]
        %1036 = vrot.lane.b32.xlu0 %v350, 101
        %v1037 = vpop.permute.xlu0 %1036
        %1038 = vrot.lane.b32.xlu0 %v351, 101
        %v1039 = vpop.permute.xlu0 %1038
        %vm1040 = vcmask 826368
        %v1041 = vsel %vm1040, %v1037, %v1039
        %v1043 = vsel %vm294, %v1035, 0
        %v1046 = vsel %vm298, %v1041, 0
        %1048 = vmatprep.subr.bf16.mxu0 0
        %1049 = vmatpush1.bf16.msra.mxu0 %v1046
        %1050 = vmatprep.subr.bf16.mxu0 0
        %1051 = vmatpush1.bf16.msra.mxu0 0
        %1052 = vmatprep.subr.bf16.mxu0 0
        %1053 = vmatpush1.bf16.msra.mxu0 0
        %1054 = vmatprep.subr.bf16.mxu0 0
        %1055 = vmatpush1.bf16.msra.mxu0 0
        %1056 = vmatprep.subr.bf16.mxu0 0
        %1057 = vmatpush1.bf16.msra.mxu0 0
        %1058 = vmatprep.subr.bf16.mxu0 0
        %1059 = vmatpush1.bf16.msra.mxu0 0
        %1060 = vmatprep.subr.bf16.mxu0 0
        %1061 = vmatpush1.bf16.msra.mxu0 0
        %1062 = vmatprep.subr.bf16.mxu0 0
        %1063 = vmatpush1.bf16.msra.mxu0 0
        %1064 = vmatprep.subr.bf16.mxu0 0
        %1065 = vmatpush1.bf16.msra.mxu0 0
        %1066 = vmatprep.subr.bf16.mxu0 0
        %1067 = vmatpush1.bf16.msra.mxu0 0
        %1068 = vmatprep.subr.bf16.mxu0 0
        %1069 = vmatpush1.bf16.msra.mxu0 0
        %1070 = vmatprep.subr.bf16.mxu0 0
        %1071 = vmatpush1.bf16.msra.mxu0 0
        %1072 = vmatprep.subr.bf16.mxu0 0
        %1073 = vmatpush1.bf16.msra.mxu0 0
        %1074 = vmatprep.subr.bf16.mxu0 0
        %1075 = vmatpush1.bf16.msra.mxu0 0
        %1076 = vmatprep.subr.bf16.mxu0 0
        %1077 = vmatpush1.bf16.msra.mxu0 0
        %1078 = vmatprep.subr.bf16.mxu0 0
        %1079 = vmatpush1.bf16.msra.mxu0 0
        %1080 = vmatprep.mubr.bf16.mxu0 0
        %1081 = vmatmul.mubr.bf16.gmra.mrb[0].mxu0 %v1043
        %v1082 = vpop.f32.mrb[0].mxu0
        %v1083 = vadd.f32 0.0, %v1082
        %v1084 = vpop.f32.mrb[0].mxu0
        %v1085 = vpop.f32.mrb[0].mxu0
        %v1086 = vpop.f32.mrb[0].mxu0
        %1087 = vdwg.mxu0
        %v1088 = vadd.f32 %v1033, %v1083
        %1089 = vst [vmem:[#allocation2] sm:$0xff] %v1088
        %v1090 = vld [vmem:[#allocation2] sm:$0xff]
        %s1091 = scalar_lea.vmem %s1, 56
        %v1092 = vld [vmem:[%s1091] sm:$0xf]
        %1093 = vrot.lane.b32.xlu0 %v350, 100
        %v1094 = vpop.permute.xlu0 %1093
        %1095 = vrot.lane.b32.xlu0 %v351, 100
        %v1096 = vpop.permute.xlu0 %1095
        %vm1097 = vcmask 818176
        %v1098 = vsel %vm1097, %v1094, %v1096
        %v1100 = vsel %vm294, %v1092, 0
        %v1103 = vsel %vm298, %v1098, 0
        %1105 = vmatprep.subr.bf16.mxu0 0
        %1106 = vmatpush1.bf16.msra.mxu0 %v1103
        %1107 = vmatprep.subr.bf16.mxu0 0
        %1108 = vmatpush1.bf16.msra.mxu0 0
        %1109 = vmatprep.subr.bf16.mxu0 0
        %1110 = vmatpush1.bf16.msra.mxu0 0
        %1111 = vmatprep.subr.bf16.mxu0 0
        %1112 = vmatpush1.bf16.msra.mxu0 0
        %1113 = vmatprep.subr.bf16.mxu0 0
        %1114 = vmatpush1.bf16.msra.mxu0 0
        %1115 = vmatprep.subr.bf16.mxu0 0
        %1116 = vmatpush1.bf16.msra.mxu0 0
        %1117 = vmatprep.subr.bf16.mxu0 0
        %1118 = vmatpush1.bf16.msra.mxu0 0
        %1119 = vmatprep.subr.bf16.mxu0 0
        %1120 = vmatpush1.bf16.msra.mxu0 0
        %1121 = vmatprep.subr.bf16.mxu0 0
        %1122 = vmatpush1.bf16.msra.mxu0 0
        %1123 = vmatprep.subr.bf16.mxu0 0
        %1124 = vmatpush1.bf16.msra.mxu0 0
        %1125 = vmatprep.subr.bf16.mxu0 0
        %1126 = vmatpush1.bf16.msra.mxu0 0
        %1127 = vmatprep.subr.bf16.mxu0 0
        %1128 = vmatpush1.bf16.msra.mxu0 0
        %1129 = vmatprep.subr.bf16.mxu0 0
        %1130 = vmatpush1.bf16.msra.mxu0 0
        %1131 = vmatprep.subr.bf16.mxu0 0
        %1132 = vmatpush1.bf16.msra.mxu0 0
        %1133 = vmatprep.subr.bf16.mxu0 0
        %1134 = vmatpush1.bf16.msra.mxu0 0
        %1135 = vmatprep.subr.bf16.mxu0 0
        %1136 = vmatpush1.bf16.msra.mxu0 0
        %1137 = vmatprep.mubr.bf16.mxu0 0
        %1138 = vmatmul.mubr.bf16.gmra.mrb[0].mxu0 %v1100
        %v1139 = vpop.f32.mrb[0].mxu0
        %v1140 = vadd.f32 0.0, %v1139
        %v1141 = vpop.f32.mrb[0].mxu0
        %v1142 = vpop.f32.mrb[0].mxu0
        %v1143 = vpop.f32.mrb[0].mxu0
        %1144 = vdwg.mxu0
        %v1145 = vadd.f32 %v1090, %v1140
        %1146 = vst [vmem:[#allocation2] sm:$0xff] %v1145
        %v1147 = vld [vmem:[#allocation2] sm:$0xff]
        %s1148 = scalar_lea.vmem %s1, 60
        %v1149 = vld [vmem:[%s1148] sm:$0xf]
        %1150 = vrot.lane.b32.xlu0 %v350, 92
        %v1151 = vpop.permute.xlu0 %1150
        %1152 = vrot.lane.b32.xlu0 %v351, 92
        %v1153 = vpop.permute.xlu0 %1152
        %vm1154 = vcmask 752640
        %v1155 = vsel %vm1154, %v1151, %v1153
        %v1157 = vsel %vm294, %v1149, 0
        %v1160 = vsel %vm298, %v1155, 0
        %1162 = vmatprep.subr.bf16.mxu0 0
        %1163 = vmatpush1.bf16.msra.mxu0 %v1160
        %1164 = vmatprep.subr.bf16.mxu0 0
        %1165 = vmatpush1.bf16.msra.mxu0 0
        %1166 = vmatprep.subr.bf16.mxu0 0
        %1167 = vmatpush1.bf16.msra.mxu0 0
        %1168 = vmatprep.subr.bf16.mxu0 0
        %1169 = vmatpush1.bf16.msra.mxu0 0
        %1170 = vmatprep.subr.bf16.mxu0 0
        %1171 = vmatpush1.bf16.msra.mxu0 0
        %1172 = vmatprep.subr.bf16.mxu0 0
        %1173 = vmatpush1.bf16.msra.mxu0 0
        %1174 = vmatprep.subr.bf16.mxu0 0
        %1175 = vmatpush1.bf16.msra.mxu0 0
        %1176 = vmatprep.subr.bf16.mxu0 0
        %1177 = vmatpush1.bf16.msra.mxu0 0
        %1178 = vmatprep.subr.bf16.mxu0 0
        %1179 = vmatpush1.bf16.msra.mxu0 0
        %1180 = vmatprep.subr.bf16.mxu0 0
        %1181 = vmatpush1.bf16.msra.mxu0 0
        %1182 = vmatprep.subr.bf16.mxu0 0
        %1183 = vmatpush1.bf16.msra.mxu0 0
        %1184 = vmatprep.subr.bf16.mxu0 0
        %1185 = vmatpush1.bf16.msra.mxu0 0
        %1186 = vmatprep.subr.bf16.mxu0 0
        %1187 = vmatpush1.bf16.msra.mxu0 0
        %1188 = vmatprep.subr.bf16.mxu0 0
        %1189 = vmatpush1.bf16.msra.mxu0 0
        %1190 = vmatprep.subr.bf16.mxu0 0
        %1191 = vmatpush1.bf16.msra.mxu0 0
        %1192 = vmatprep.subr.bf16.mxu0 0
        %1193 = vmatpush1.bf16.msra.mxu0 0
        %1194 = vmatprep.mubr.bf16.mxu0 0
        %1195 = vmatmul.mubr.bf16.gmra.mrb[0].mxu0 %v1157
        %v1196 = vpop.f32.mrb[0].mxu0
        %v1197 = vadd.f32 0.0, %v1196
        %v1198 = vpop.f32.mrb[0].mxu0
        %v1199 = vpop.f32.mrb[0].mxu0
        %v1200 = vpop.f32.mrb[0].mxu0
        %1201 = vdwg.mxu0
        %v1202 = vadd.f32 %v1147, %v1197
        %1203 = vst [vmem:[#allocation2] sm:$0xff] %v1202
        %v1204 = vld [vmem:[#allocation2] sm:$0xff]
        %s1205 = scalar_lea.vmem %s1, 64
        %v1206 = vld [vmem:[%s1205] sm:$0xf]
        %1207 = vrot.lane.b32.xlu0 %v350, 91
        %v1208 = vpop.permute.xlu0 %1207
        %1209 = vrot.lane.b32.xlu0 %v351, 91
        %v1210 = vpop.permute.xlu0 %1209
        %vm1211 = vcmask 744448
        %v1212 = vsel %vm1211, %v1208, %v1210
        %v1214 = vsel %vm294, %v1206, 0
        %v1217 = vsel %vm298, %v1212, 0
        %1219 = vmatprep.subr.bf16.mxu0 0
        %1220 = vmatpush1.bf16.msra.mxu0 %v1217
        %1221 = vmatprep.subr.bf16.mxu0 0
        %1222 = vmatpush1.bf16.msra.mxu0 0
        %1223 = vmatprep.subr.bf16.mxu0 0
        %1224 = vmatpush1.bf16.msra.mxu0 0
        %1225 = vmatprep.subr.bf16.mxu0 0
        %1226 = vmatpush1.bf16.msra.mxu0 0
        %1227 = vmatprep.subr.bf16.mxu0 0
        %1228 = vmatpush1.bf16.msra.mxu0 0
        %1229 = vmatprep.subr.bf16.mxu0 0
        %1230 = vmatpush1.bf16.msra.mxu0 0
        %1231 = vmatprep.subr.bf16.mxu0 0
        %1232 = vmatpush1.bf16.msra.mxu0 0
        %1233 = vmatprep.subr.bf16.mxu0 0
        %1234 = vmatpush1.bf16.msra.mxu0 0
        %1235 = vmatprep.subr.bf16.mxu0 0
        %1236 = vmatpush1.bf16.msra.mxu0 0
        %1237 = vmatprep.subr.bf16.mxu0 0
        %1238 = vmatpush1.bf16.msra.mxu0 0
        %1239 = vmatprep.subr.bf16.mxu0 0
        %1240 = vmatpush1.bf16.msra.mxu0 0
        %1241 = vmatprep.subr.bf16.mxu0 0
        %1242 = vmatpush1.bf16.msra.mxu0 0
        %1243 = vmatprep.subr.bf16.mxu0 0
        %1244 = vmatpush1.bf16.msra.mxu0 0
        %1245 = vmatprep.subr.bf16.mxu0 0
        %1246 = vmatpush1.bf16.msra.mxu0 0
        %1247 = vmatprep.subr.bf16.mxu0 0
        %1248 = vmatpush1.bf16.msra.mxu0 0
        %1249 = vmatprep.subr.bf16.mxu0 0
        %1250 = vmatpush1.bf16.msra.mxu0 0
        %1251 = vmatprep.mubr.bf16.mxu0 0
        %1252 = vmatmul.mubr.bf16.gmra.mrb[0].mxu0 %v1214
        %v1253 = vpop.f32.mrb[0].mxu0
        %v1254 = vadd.f32 0.0, %v1253
        %v1255 = vpop.f32.mrb[0].mxu0
        %v1256 = vpop.f32.mrb[0].mxu0
        %v1257 = vpop.f32.mrb[0].mxu0
        %1258 = vdwg.mxu0
        %v1259 = vadd.f32 %v1204, %v1254
        %1260 = vst [vmem:[#allocation2] sm:$0xff] %v1259
        %v1261 = vld [vmem:[#allocation2] sm:$0xff]
        %s1262 = scalar_lea.vmem %s1, 68
        %v1263 = vld [vmem:[%s1262] sm:$0xf]
        %1264 = vrot.lane.b32.xlu0 %v350, 90
        %v1265 = vpop.permute.xlu0 %1264
        %1266 = vrot.lane.b32.xlu0 %v351, 90
        %v1267 = vpop.permute.xlu0 %1266
        %vm1268 = vcmask 736256
        %v1269 = vsel %vm1268, %v1265, %v1267
        %v1271 = vsel %vm294, %v1263, 0
        %v1274 = vsel %vm298, %v1269, 0
        %1276 = vmatprep.subr.bf16.mxu0 0
        %1277 = vmatpush1.bf16.msra.mxu0 %v1274
        %1278 = vmatprep.subr.bf16.mxu0 0
        %1279 = vmatpush1.bf16.msra.mxu0 0
        %1280 = vmatprep.subr.bf16.mxu0 0
        %1281 = vmatpush1.bf16.msra.mxu0 0
        %1282 = vmatprep.subr.bf16.mxu0 0
        %1283 = vmatpush1.bf16.msra.mxu0 0
        %1284 = vmatprep.subr.bf16.mxu0 0
        %1285 = vmatpush1.bf16.msra.mxu0 0
        %1286 = vmatprep.subr.bf16.mxu0 0
        %1287 = vmatpush1.bf16.msra.mxu0 0
        %1288 = vmatprep.subr.bf16.mxu0 0
        %1289 = vmatpush1.bf16.msra.mxu0 0
        %1290 = vmatprep.subr.bf16.mxu0 0
        %1291 = vmatpush1.bf16.msra.mxu0 0
        %1292 = vmatprep.subr.bf16.mxu0 0
        %1293 = vmatpush1.bf16.msra.mxu0 0
        %1294 = vmatprep.subr.bf16.mxu0 0
        %1295 = vmatpush1.bf16.msra.mxu0 0
        %1296 = vmatprep.subr.bf16.mxu0 0
        %1297 = vmatpush1.bf16.msra.mxu0 0
        %1298 = vmatprep.subr.bf16.mxu0 0
        %1299 = vmatpush1.bf16.msra.mxu0 0
        %1300 = vmatprep.subr.bf16.mxu0 0
        %1301 = vmatpush1.bf16.msra.mxu0 0
        %1302 = vmatprep.subr.bf16.mxu0 0
        %1303 = vmatpush1.bf16.msra.mxu0 0
        %1304 = vmatprep.subr.bf16.mxu0 0
        %1305 = vmatpush1.bf16.msra.mxu0 0
        %1306 = vmatprep.subr.bf16.mxu0 0
        %1307 = vmatpush1.bf16.msra.mxu0 0
        %1308 = vmatprep.mubr.bf16.mxu0 0
        %1309 = vmatmul.mubr.bf16.gmra.mrb[0].mxu0 %v1271
        %v1310 = vpop.f32.mrb[0].mxu0
        %v1311 = vadd.f32 0.0, %v1310
        %v1312 = vpop.f32.mrb[0].mxu0
        %v1313 = vpop.f32.mrb[0].mxu0
        %v1314 = vpop.f32.mrb[0].mxu0
        %1315 = vdwg.mxu0
        %v1316 = vadd.f32 %v1261, %v1311
        %1317 = vst [vmem:[#allocation2] sm:$0xff] %v1316
        %v1318 = vld [vmem:[#allocation2] sm:$0xff]
        %s1319 = scalar_lea.vmem %s1, 72
        %v1320 = vld [vmem:[%s1319] sm:$0xf]
        %1321 = vrot.lane.b32.xlu0 %v350, 89
        %v1322 = vpop.permute.xlu0 %1321
        %1323 = vrot.lane.b32.xlu0 %v351, 89
        %v1324 = vpop.permute.xlu0 %1323
        %vm1325 = vcmask 728064
        %v1326 = vsel %vm1325, %v1322, %v1324
        %v1328 = vsel %vm294, %v1320, 0
        %v1331 = vsel %vm298, %v1326, 0
        %1333 = vmatprep.subr.bf16.mxu0 0
        %1334 = vmatpush1.bf16.msra.mxu0 %v1331
        %1335 = vmatprep.subr.bf16.mxu0 0
        %1336 = vmatpush1.bf16.msra.mxu0 0
        %1337 = vmatprep.subr.bf16.mxu0 0
        %1338 = vmatpush1.bf16.msra.mxu0 0
        %1339 = vmatprep.subr.bf16.mxu0 0
        %1340 = vmatpush1.bf16.msra.mxu0 0
        %1341 = vmatprep.subr.bf16.mxu0 0
        %1342 = vmatpush1.bf16.msra.mxu0 0
        %1343 = vmatprep.subr.bf16.mxu0 0
        %1344 = vmatpush1.bf16.msra.mxu0 0
        %1345 = vmatprep.subr.bf16.mxu0 0
        %1346 = vmatpush1.bf16.msra.mxu0 0
        %1347 = vmatprep.subr.bf16.mxu0 0
        %1348 = vmatpush1.bf16.msra.mxu0 0
        %1349 = vmatprep.subr.bf16.mxu0 0
        %1350 = vmatpush1.bf16.msra.mxu0 0
        %1351 = vmatprep.subr.bf16.mxu0 0
        %1352 = vmatpush1.bf16.msra.mxu0 0
        %1353 = vmatprep.subr.bf16.mxu0 0
        %1354 = vmatpush1.bf16.msra.mxu0 0
        %1355 = vmatprep.subr.bf16.mxu0 0
        %1356 = vmatpush1.bf16.msra.mxu0 0
        %1357 = vmatprep.subr.bf16.mxu0 0
        %1358 = vmatpush1.bf16.msra.mxu0 0
        %1359 = vmatprep.subr.bf16.mxu0 0
        %1360 = vmatpush1.bf16.msra.mxu0 0
        %1361 = vmatprep.subr.bf16.mxu0 0
        %1362 = vmatpush1.bf16.msra.mxu0 0
        %1363 = vmatprep.subr.bf16.mxu0 0
        %1364 = vmatpush1.bf16.msra.mxu0 0
        %1365 = vmatprep.mubr.bf16.mxu0 0
        %1366 = vmatmul.mubr.bf16.gmra.mrb[0].mxu0 %v1328
        %v1367 = vpop.f32.mrb[0].mxu0
        %v1368 = vadd.f32 0.0, %v1367
        %v1369 = vpop.f32.mrb[0].mxu0
        %v1370 = vpop.f32.mrb[0].mxu0
        %v1371 = vpop.f32.mrb[0].mxu0
        %1372 = vdwg.mxu0
        %v1373 = vadd.f32 %v1318, %v1368
        %1374 = vst [vmem:[#allocation2] sm:$0xff] %v1373
        %v1375 = vld [vmem:[#allocation2] sm:$0xff]
        %s1376 = scalar_lea.vmem %s1, 76
        %v1377 = vld [vmem:[%s1376] sm:$0xf]
        %1378 = vrot.lane.b32.xlu0 %v350, 88
        %v1379 = vpop.permute.xlu0 %1378
        %1380 = vrot.lane.b32.xlu0 %v351, 88
        %v1381 = vpop.permute.xlu0 %1380
        %vm1382 = vcmask 719872
        %v1383 = vsel %vm1382, %v1379, %v1381
        %v1385 = vsel %vm294, %v1377, 0
        %v1388 = vsel %vm298, %v1383, 0
        %1390 = vmatprep.subr.bf16.mxu0 0
        %1391 = vmatpush1.bf16.msra.mxu0 %v1388
        %1392 = vmatprep.subr.bf16.mxu0 0
        %1393 = vmatpush1.bf16.msra.mxu0 0
        %1394 = vmatprep.subr.bf16.mxu0 0
        %1395 = vmatpush1.bf16.msra.mxu0 0
        %1396 = vmatprep.subr.bf16.mxu0 0
        %1397 = vmatpush1.bf16.msra.mxu0 0
        %1398 = vmatprep.subr.bf16.mxu0 0
        %1399 = vmatpush1.bf16.msra.mxu0 0
        %1400 = vmatprep.subr.bf16.mxu0 0
        %1401 = vmatpush1.bf16.msra.mxu0 0
        %1402 = vmatprep.subr.bf16.mxu0 0
        %1403 = vmatpush1.bf16.msra.mxu0 0
        %1404 = vmatprep.subr.bf16.mxu0 0
        %1405 = vmatpush1.bf16.msra.mxu0 0
        %1406 = vmatprep.subr.bf16.mxu0 0
        %1407 = vmatpush1.bf16.msra.mxu0 0
        %1408 = vmatprep.subr.bf16.mxu0 0
        %1409 = vmatpush1.bf16.msra.mxu0 0
        %1410 = vmatprep.subr.bf16.mxu0 0
        %1411 = vmatpush1.bf16.msra.mxu0 0
        %1412 = vmatprep.subr.bf16.mxu0 0
        %1413 = vmatpush1.bf16.msra.mxu0 0
        %1414 = vmatprep.subr.bf16.mxu0 0
        %1415 = vmatpush1.bf16.msra.mxu0 0
        %1416 = vmatprep.subr.bf16.mxu0 0
        %1417 = vmatpush1.bf16.msra.mxu0 0
        %1418 = vmatprep.subr.bf16.mxu0 0
        %1419 = vmatpush1.bf16.msra.mxu0 0
        %1420 = vmatprep.subr.bf16.mxu0 0
        %1421 = vmatpush1.bf16.msra.mxu0 0
        %1422 = vmatprep.mubr.bf16.mxu0 0
        %1423 = vmatmul.mubr.bf16.gmra.mrb[0].mxu0 %v1385
        %v1424 = vpop.f32.mrb[0].mxu0
        %v1425 = vadd.f32 0.0, %v1424
        %v1426 = vpop.f32.mrb[0].mxu0
        %v1427 = vpop.f32.mrb[0].mxu0
        %v1428 = vpop.f32.mrb[0].mxu0
        %1429 = vdwg.mxu0
        %v1430 = vadd.f32 %v1375, %v1425
        %1431 = vst [vmem:[#allocation2] sm:$0xff] %v1430
        %v1432 = vld [vmem:[#allocation2] sm:$0xff]
        %s1433 = scalar_lea.vmem %s1, 80
        %v1434 = vld [vmem:[%s1433] sm:$0xf]
        %1435 = vrot.lane.b32.xlu0 %v350, 80
        %v1436 = vpop.permute.xlu0 %1435
        %1437 = vrot.lane.b32.xlu0 %v351, 80
        %v1438 = vpop.permute.xlu0 %1437
        %vm1439 = vcmask 654336
        %v1440 = vsel %vm1439, %v1436, %v1438
        %v1442 = vsel %vm294, %v1434, 0
        %v1445 = vsel %vm298, %v1440, 0
        %1447 = vmatprep.subr.bf16.mxu0 0
        %1448 = vmatpush1.bf16.msra.mxu0 %v1445
        %1449 = vmatprep.subr.bf16.mxu0 0
        %1450 = vmatpush1.bf16.msra.mxu0 0
        %1451 = vmatprep.subr.bf16.mxu0 0
        %1452 = vmatpush1.bf16.msra.mxu0 0
        %1453 = vmatprep.subr.bf16.mxu0 0
        %1454 = vmatpush1.bf16.msra.mxu0 0
        %1455 = vmatprep.subr.bf16.mxu0 0
        %1456 = vmatpush1.bf16.msra.mxu0 0
        %1457 = vmatprep.subr.bf16.mxu0 0
        %1458 = vmatpush1.bf16.msra.mxu0 0
        %1459 = vmatprep.subr.bf16.mxu0 0
        %1460 = vmatpush1.bf16.msra.mxu0 0
        %1461 = vmatprep.subr.bf16.mxu0 0
        %1462 = vmatpush1.bf16.msra.mxu0 0
        %1463 = vmatprep.subr.bf16.mxu0 0
        %1464 = vmatpush1.bf16.msra.mxu0 0
        %1465 = vmatprep.subr.bf16.mxu0 0
        %1466 = vmatpush1.bf16.msra.mxu0 0
        %1467 = vmatprep.subr.bf16.mxu0 0
        %1468 = vmatpush1.bf16.msra.mxu0 0
        %1469 = vmatprep.subr.bf16.mxu0 0
        %1470 = vmatpush1.bf16.msra.mxu0 0
        %1471 = vmatprep.subr.bf16.mxu0 0
        %1472 = vmatpush1.bf16.msra.mxu0 0
        %1473 = vmatprep.subr.bf16.mxu0 0
        %1474 = vmatpush1.bf16.msra.mxu0 0
        %1475 = vmatprep.subr.bf16.mxu0 0
        %1476 = vmatpush1.bf16.msra.mxu0 0
        %1477 = vmatprep.subr.bf16.mxu0 0
        %1478 = vmatpush1.bf16.msra.mxu0 0
        %1479 = vmatprep.mubr.bf16.mxu0 0
        %1480 = vmatmul.mubr.bf16.gmra.mrb[0].mxu0 %v1442
        %v1481 = vpop.f32.mrb[0].mxu0
        %v1482 = vadd.f32 0.0, %v1481
        %v1483 = vpop.f32.mrb[0].mxu0
        %v1484 = vpop.f32.mrb[0].mxu0
        %v1485 = vpop.f32.mrb[0].mxu0
        %1486 = vdwg.mxu0
        %v1487 = vadd.f32 %v1432, %v1482
        %1488 = vst [vmem:[#allocation2] sm:$0xff] %v1487
        %v1489 = vld [vmem:[#allocation2] sm:$0xff]
        %s1490 = scalar_lea.vmem %s1, 84
        %v1491 = vld [vmem:[%s1490] sm:$0xf]
        %1492 = vrot.lane.b32.xlu0 %v350, 79
        %v1493 = vpop.permute.xlu0 %1492
        %1494 = vrot.lane.b32.xlu0 %v351, 79
        %v1495 = vpop.permute.xlu0 %1494
        %vm1496 = vcmask 646144
        %v1497 = vsel %vm1496, %v1493, %v1495
        %v1499 = vsel %vm294, %v1491, 0
        %v1502 = vsel %vm298, %v1497, 0
        %1504 = vmatprep.subr.bf16.mxu0 0
        %1505 = vmatpush1.bf16.msra.mxu0 %v1502
        %1506 = vmatprep.subr.bf16.mxu0 0
        %1507 = vmatpush1.bf16.msra.mxu0 0
        %1508 = vmatprep.subr.bf16.mxu0 0
        %1509 = vmatpush1.bf16.msra.mxu0 0
        %1510 = vmatprep.subr.bf16.mxu0 0
        %1511 = vmatpush1.bf16.msra.mxu0 0
        %1512 = vmatprep.subr.bf16.mxu0 0
        %1513 = vmatpush1.bf16.msra.mxu0 0
        %1514 = vmatprep.subr.bf16.mxu0 0
        %1515 = vmatpush1.bf16.msra.mxu0 0
        %1516 = vmatprep.subr.bf16.mxu0 0
        %1517 = vmatpush1.bf16.msra.mxu0 0
        %1518 = vmatprep.subr.bf16.mxu0 0
        %1519 = vmatpush1.bf16.msra.mxu0 0
        %1520 = vmatprep.subr.bf16.mxu0 0
        %1521 = vmatpush1.bf16.msra.mxu0 0
        %1522 = vmatprep.subr.bf16.mxu0 0
        %1523 = vmatpush1.bf16.msra.mxu0 0
        %1524 = vmatprep.subr.bf16.mxu0 0
        %1525 = vmatpush1.bf16.msra.mxu0 0
        %1526 = vmatprep.subr.bf16.mxu0 0
        %1527 = vmatpush1.bf16.msra.mxu0 0
        %1528 = vmatprep.subr.bf16.mxu0 0
        %1529 = vmatpush1.bf16.msra.mxu0 0
        %1530 = vmatprep.subr.bf16.mxu0 0
        %1531 = vmatpush1.bf16.msra.mxu0 0
        %1532 = vmatprep.subr.bf16.mxu0 0
        %1533 = vmatpush1.bf16.msra.mxu0 0
        %1534 = vmatprep.subr.bf16.mxu0 0
        %1535 = vmatpush1.bf16.msra.mxu0 0
        %1536 = vmatprep.mubr.bf16.mxu0 0
        %1537 = vmatmul.mubr.bf16.gmra.mrb[0].mxu0 %v1499
        %v1538 = vpop.f32.mrb[0].mxu0
        %v1539 = vadd.f32 0.0, %v1538
        %v1540 = vpop.f32.mrb[0].mxu0
        %v1541 = vpop.f32.mrb[0].mxu0
        %v1542 = vpop.f32.mrb[0].mxu0
        %1543 = vdwg.mxu0
        %v1544 = vadd.f32 %v1489, %v1539
        %1545 = vst [vmem:[#allocation2] sm:$0xff] %v1544
        %v1546 = vld [vmem:[#allocation2] sm:$0xff]
        %s1547 = scalar_lea.vmem %s1, 88
        %v1548 = vld [vmem:[%s1547] sm:$0xf]
        %1549 = vrot.lane.b32.xlu0 %v350, 78
        %v1550 = vpop.permute.xlu0 %1549
        %1551 = vrot.lane.b32.xlu0 %v351, 78
        %v1552 = vpop.permute.xlu0 %1551
        %vm1553 = vcmask 637952
        %v1554 = vsel %vm1553, %v1550, %v1552
        %v1556 = vsel %vm294, %v1548, 0
        %v1559 = vsel %vm298, %v1554, 0
        %1561 = vmatprep.subr.bf16.mxu0 0
        %1562 = vmatpush1.bf16.msra.mxu0 %v1559
        %1563 = vmatprep.subr.bf16.mxu0 0
        %1564 = vmatpush1.bf16.msra.mxu0 0
        %1565 = vmatprep.subr.bf16.mxu0 0
        %1566 = vmatpush1.bf16.msra.mxu0 0
        %1567 = vmatprep.subr.bf16.mxu0 0
        %1568 = vmatpush1.bf16.msra.mxu0 0
        %1569 = vmatprep.subr.bf16.mxu0 0
        %1570 = vmatpush1.bf16.msra.mxu0 0
        %1571 = vmatprep.subr.bf16.mxu0 0
        %1572 = vmatpush1.bf16.msra.mxu0 0
        %1573 = vmatprep.subr.bf16.mxu0 0
        %1574 = vmatpush1.bf16.msra.mxu0 0
        %1575 = vmatprep.subr.bf16.mxu0 0
        %1576 = vmatpush1.bf16.msra.mxu0 0
        %1577 = vmatprep.subr.bf16.mxu0 0
        %1578 = vmatpush1.bf16.msra.mxu0 0
        %1579 = vmatprep.subr.bf16.mxu0 0
        %1580 = vmatpush1.bf16.msra.mxu0 0
        %1581 = vmatprep.subr.bf16.mxu0 0
        %1582 = vmatpush1.bf16.msra.mxu0 0
        %1583 = vmatprep.subr.bf16.mxu0 0
        %1584 = vmatpush1.bf16.msra.mxu0 0
        %1585 = vmatprep.subr.bf16.mxu0 0
        %1586 = vmatpush1.bf16.msra.mxu0 0
        %1587 = vmatprep.subr.bf16.mxu0 0
        %1588 = vmatpush1.bf16.msra.mxu0 0
        %1589 = vmatprep.subr.bf16.mxu0 0
        %1590 = vmatpush1.bf16.msra.mxu0 0
        %1591 = vmatprep.subr.bf16.mxu0 0
        %1592 = vmatpush1.bf16.msra.mxu0 0
        %1593 = vmatprep.mubr.bf16.mxu0 0
        %1594 = vmatmul.mubr.bf16.gmra.mrb[0].mxu0 %v1556
        %v1595 = vpop.f32.mrb[0].mxu0
        %v1596 = vadd.f32 0.0, %v1595
        %v1597 = vpop.f32.mrb[0].mxu0
        %v1598 = vpop.f32.mrb[0].mxu0
        %v1599 = vpop.f32.mrb[0].mxu0
        %1600 = vdwg.mxu0
        %v1601 = vadd.f32 %v1546, %v1596
        %1602 = vst [vmem:[#allocation2] sm:$0xff] %v1601
        %v1603 = vld [vmem:[#allocation2] sm:$0xff]
        %s1604 = scalar_lea.vmem %s1, 92
        %v1605 = vld [vmem:[%s1604] sm:$0xf]
        %1606 = vrot.lane.b32.xlu0 %v350, 77
        %v1607 = vpop.permute.xlu0 %1606
        %1608 = vrot.lane.b32.xlu0 %v351, 77
        %v1609 = vpop.permute.xlu0 %1608
        %vm1610 = vcmask 629760
        %v1611 = vsel %vm1610, %v1607, %v1609
        %v1613 = vsel %vm294, %v1605, 0
        %v1616 = vsel %vm298, %v1611, 0
        %1618 = vmatprep.subr.bf16.mxu0 0
        %1619 = vmatpush1.bf16.msra.mxu0 %v1616
        %1620 = vmatprep.subr.bf16.mxu0 0
        %1621 = vmatpush1.bf16.msra.mxu0 0
        %1622 = vmatprep.subr.bf16.mxu0 0
        %1623 = vmatpush1.bf16.msra.mxu0 0
        %1624 = vmatprep.subr.bf16.mxu0 0
        %1625 = vmatpush1.bf16.msra.mxu0 0
        %1626 = vmatprep.subr.bf16.mxu0 0
        %1627 = vmatpush1.bf16.msra.mxu0 0
        %1628 = vmatprep.subr.bf16.mxu0 0
        %1629 = vmatpush1.bf16.msra.mxu0 0
        %1630 = vmatprep.subr.bf16.mxu0 0
        %1631 = vmatpush1.bf16.msra.mxu0 0
        %1632 = vmatprep.subr.bf16.mxu0 0
        %1633 = vmatpush1.bf16.msra.mxu0 0
        %1634 = vmatprep.subr.bf16.mxu0 0
        %1635 = vmatpush1.bf16.msra.mxu0 0
        %1636 = vmatprep.subr.bf16.mxu0 0
        %1637 = vmatpush1.bf16.msra.mxu0 0
        %1638 = vmatprep.subr.bf16.mxu0 0
        %1639 = vmatpush1.bf16.msra.mxu0 0
        %1640 = vmatprep.subr.bf16.mxu0 0
        %1641 = vmatpush1.bf16.msra.mxu0 0
        %1642 = vmatprep.subr.bf16.mxu0 0
        %1643 = vmatpush1.bf16.msra.mxu0 0
        %1644 = vmatprep.subr.bf16.mxu0 0
        %1645 = vmatpush1.bf16.msra.mxu0 0
        %1646 = vmatprep.subr.bf16.mxu0 0
        %1647 = vmatpush1.bf16.msra.mxu0 0
        %1648 = vmatprep.subr.bf16.mxu0 0
        %1649 = vmatpush1.bf16.msra.mxu0 0
        %1650 = vmatprep.mubr.bf16.mxu0 0
        %1651 = vmatmul.mubr.bf16.gmra.mrb[0].mxu0 %v1613
        %v1652 = vpop.f32.mrb[0].mxu0
        %v1653 = vadd.f32 0.0, %v1652
        %v1654 = vpop.f32.mrb[0].mxu0
        %v1655 = vpop.f32.mrb[0].mxu0
        %v1656 = vpop.f32.mrb[0].mxu0
        %1657 = vdwg.mxu0
        %v1658 = vadd.f32 %v1603, %v1653
        %1659 = vst [vmem:[#allocation2] sm:$0xff] %v1658
        %v1660 = vld [vmem:[#allocation2] sm:$0xff]
        %s1661 = scalar_lea.vmem %s1, 96
        %v1662 = vld [vmem:[%s1661] sm:$0xf]
        %1663 = vrot.lane.b32.xlu0 %v350, 76
        %v1664 = vpop.permute.xlu0 %1663
        %1665 = vrot.lane.b32.xlu0 %v351, 76
        %v1666 = vpop.permute.xlu0 %1665
        %vm1667 = vcmask 621568
        %v1668 = vsel %vm1667, %v1664, %v1666
        %v1670 = vsel %vm294, %v1662, 0
        %v1673 = vsel %vm298, %v1668, 0
        %1675 = vmatprep.subr.bf16.mxu0 0
        %1676 = vmatpush1.bf16.msra.mxu0 %v1673
        %1677 = vmatprep.subr.bf16.mxu0 0
        %1678 = vmatpush1.bf16.msra.mxu0 0
        %1679 = vmatprep.subr.bf16.mxu0 0
        %1680 = vmatpush1.bf16.msra.mxu0 0
        %1681 = vmatprep.subr.bf16.mxu0 0
        %1682 = vmatpush1.bf16.msra.mxu0 0
        %1683 = vmatprep.subr.bf16.mxu0 0
        %1684 = vmatpush1.bf16.msra.mxu0 0
        %1685 = vmatprep.subr.bf16.mxu0 0
        %1686 = vmatpush1.bf16.msra.mxu0 0
        %1687 = vmatprep.subr.bf16.mxu0 0
        %1688 = vmatpush1.bf16.msra.mxu0 0
        %1689 = vmatprep.subr.bf16.mxu0 0
        %1690 = vmatpush1.bf16.msra.mxu0 0
        %1691 = vmatprep.subr.bf16.mxu0 0
        %1692 = vmatpush1.bf16.msra.mxu0 0
        %1693 = vmatprep.subr.bf16.mxu0 0
        %1694 = vmatpush1.bf16.msra.mxu0 0
        %1695 = vmatprep.subr.bf16.mxu0 0
        %1696 = vmatpush1.bf16.msra.mxu0 0
        %1697 = vmatprep.subr.bf16.mxu0 0
        %1698 = vmatpush1.bf16.msra.mxu0 0
        %1699 = vmatprep.subr.bf16.mxu0 0
        %1700 = vmatpush1.bf16.msra.mxu0 0
        %1701 = vmatprep.subr.bf16.mxu0 0
        %1702 = vmatpush1.bf16.msra.mxu0 0
        %1703 = vmatprep.subr.bf16.mxu0 0
        %1704 = vmatpush1.bf16.msra.mxu0 0
        %1705 = vmatprep.subr.bf16.mxu0 0
        %1706 = vmatpush1.bf16.msra.mxu0 0
        %1707 = vmatprep.mubr.bf16.mxu0 0
        %1708 = vmatmul.mubr.bf16.gmra.mrb[0].mxu0 %v1670
        %v1709 = vpop.f32.mrb[0].mxu0
        %v1710 = vadd.f32 0.0, %v1709
        %v1711 = vpop.f32.mrb[0].mxu0
        %v1712 = vpop.f32.mrb[0].mxu0
        %v1713 = vpop.f32.mrb[0].mxu0
        %1714 = vdwg.mxu0
        %v1715 = vadd.f32 %v1660, %v1710
        %1716 = vst [vmem:[#allocation2] sm:$0xff] %v1715
        %v1717 = vld [vmem:[#allocation2] sm:$0xff]
        %v1718 = vpack.c.bf16 %v1717, %v1717
        %1719 = vst [vmem:[%s246] sm:$0xf] %v1718
        %s1720 = smul.u32 %s25, 8
        %s1721 = ssub.s32 8, %s1720
        %p1722 = scmp.lt.s32.totalorder %s1721, 8
        %s1723 = scalar_select %p1722, %s1721, 8
        %v1724 = vlaneseq
        %v1725 = vand.u32 %v1724, 127
        %s1726 = smul.u32 %s1723, 12
        %v1727 = vstv %s1726
        %vm1728 = vcmp.lt.s32.totalorder %v1725, %v1727
        %v1729 = vld [vmem:[%s2] sm:$0x1]
        %v1730 = vsel %vm1728, %v1729, 0.0
        %v1731 = vlaneseq
        %v1732 = vshrl.u32 %v1731, 7
        %v1733 = vsub.s32 0, %v1732
        %v1734 = vrot.slane %v1730, %v1733
        %v1735 = vmul.f32 %v1717, %v1734
        %1736 = vadd.xlane.f32.xlu0 %v1735
        %v1737 = vpop.xlane.xlu0 %1736
        %vm1738 = vcmask 7168
        %1739 = vst.msk [vmem:[%s280] sm:$0xff] %vm1738, %v1737
        %v1740 = vmul.f32 %v1735, %v1717
        %1741 = vadd.xlane.f32.xlu0 %v1740
        %v1742 = vpop.xlane.xlu0 %1741
        %1743 = vst.msk [vmem:[%s287] sm:$0xff] %vm1738, %v1742
        %s1744 = sand.u32 %s112, 1
        %s1745 = scalar_lea.sflag [#allocation4], %s1744
        %s1746 = sand.u32 %s112, 1
        %s1747 = smul.addr %s1746, 4
        %s1748 = scalar_lea.vmem [#allocation3], %s1747
        %p1749 = scmp.lt.s32.totalorder %s24, 1
        %s1750 = scalar_select %p1749, %s24, 1
        %p1751 = scmp.lt.s32.totalorder %s25, 0
        %s1752 = scalar_select %p1751, %s25, 0
        %s1753 = sadd.s32 %s1752, %s1750
        %s1754 = smul.addr %s1753, 8
        %s1755 = scalar_lea.vmem %s4, %s1754
        %p1756 = scmp.lt.s32.totalorder %s24, 1
        %s1757 = scalar_select %p1756, %s24, 1
        %p1758 = scmp.lt.s32.totalorder %s25, 0
        %s1759 = scalar_select %p1758, %s25, 0
        %s1760 = sadd.s32 %s1759, %s1757
        %s1761 = smul.addr %s1760, 8
        %s1762 = scalar_lea.vmem %s5, %s1761
        // Predicated region
        $region33: #{tpu_custom_call.1} parent=31 // pred_check
          %p1763 = pneg %p122
        $region34: #{tpu_custom_call.1} parent=31 // pred_check_branch
          %1765 = sbr.rel (%p1763) target = $region36
        $region35: #{tpu_custom_call.1} parent=31 // pred_region
          %s1767 = ssub.s32 64, 64
          %1768 = vsyncadd %s1745, %s1767
          %s1769 = sadd.s32 %s25, %s24
          %s1770 = smul.addr %s1769, 64
          %s1771 = scalar_lea.hbm %s3, %s1770
          %s1773 = sshll.u32 %s1748, 4
          %s1774 = int_to_ptr.vmem [resolvable:$true] %s1773
          %1776 = dma.vmem_to_hbm [thread:$0]  %s1774, 64, %s1771, %s1745
        $region36: #{tpu_custom_call.1} parent=31 // pred_fallthru
          _
        // Predicated region
        $region37: #{tpu_custom_call.1} parent=31 // pred_check
          %p1777 = pneg %p150
        $region38: #{tpu_custom_call.1} parent=31 // pred_check_branch
          %1779 = sbr.rel (%p1777) target = $region40
        $region39: #{tpu_custom_call.1} parent=31 // pred_region
          _
        $region40: #{tpu_custom_call.1} parent=31 // pred_fallthru
          _
        // Predicated region
        $region41: #{tpu_custom_call.1} parent=31 // pred_check
          %p1780 = pneg %p178
        $region42: #{tpu_custom_call.1} parent=31 // pred_check_branch
          %1782 = sbr.rel (%p1780) target = $region44
        $region43: #{tpu_custom_call.1} parent=31 // pred_region
          _
        $region44: #{tpu_custom_call.1} parent=31 // pred_fallthru
          _
      $region32: #{tpu_custom_call.1} parent=5 // pred_fallthru
        _
      %p1783 = scmp.le.s32.totalorder 2, %s15
      // Predicated region
      $region45: #{tpu_custom_call.1} parent=5 // pred_check
        %p1784 = pneg %p1783
      $region46: #{tpu_custom_call.1} parent=5 // pred_check_branch
        %1786 = sbr.rel (%p1784) target = $region48
      $region47: #{tpu_custom_call.1} parent=5 // pred_region
        %s1787 = ssub.s32 %s15, 2
        // Predicated region
        $region49: #{tpu_custom_call.1} parent=47 // pred_check
          %p1788 = pneg %p128
        $region50: #{tpu_custom_call.1} parent=47 // pred_check_branch
          %1790 = sbr.rel (%p1788) target = $region52
        $region51: #{tpu_custom_call.1} parent=47 // pred_region
          %s1791 = sand.u32 %s113, 1
          %s1792 = scalar_lea.sflag [#allocation4], %s1791
          %s1793 = sand.u32 %s113, 1
          %s1794 = smul.addr %s1793, 4
          %s1795 = scalar_lea.vmem [#allocation3], %s1794
          %1796 = dma.done %s1792, 64
        $region52: #{tpu_custom_call.1} parent=47 // pred_fallthru
          _
        // Predicated region
        $region53: #{tpu_custom_call.1} parent=47 // pred_check
          %p1797 = pneg %p156
        $region54: #{tpu_custom_call.1} parent=47 // pred_check_branch
          %1799 = sbr.rel (%p1797) target = $region56
        $region55: #{tpu_custom_call.1} parent=47 // pred_region
          %p1800 = scmp.lt.s32.totalorder %s26, 1
          %s1801 = scalar_select %p1800, %s26, 1
          %p1802 = scmp.lt.s32.totalorder %s27, 0
          %s1803 = scalar_select %p1802, %s27, 0
          %s1804 = sadd.s32 %s1803, %s1801
          %s1805 = smul.addr %s1804, 8
          %s1806 = scalar_lea.vmem %s4, %s1805
        $region56: #{tpu_custom_call.1} parent=47 // pred_fallthru
          _
        // Predicated region
        $region57: #{tpu_custom_call.1} parent=47 // pred_check
          %p1807 = pneg %p184
        $region58: #{tpu_custom_call.1} parent=47 // pred_check_branch
          %1809 = sbr.rel (%p1807) target = $region60
        $region59: #{tpu_custom_call.1} parent=47 // pred_region
          %p1810 = scmp.lt.s32.totalorder %s26, 1
          %s1811 = scalar_select %p1810, %s26, 1
          %p1812 = scmp.lt.s32.totalorder %s27, 0
          %s1813 = scalar_select %p1812, %s27, 0
          %s1814 = sadd.s32 %s1813, %s1811
          %s1815 = smul.addr %s1814, 8
          %s1816 = scalar_lea.vmem %s5, %s1815
        $region60: #{tpu_custom_call.1} parent=47 // pred_fallthru
          _
      $region48: #{tpu_custom_call.1} parent=5 // pred_fallthru
        _
    $region6: #{tpu_custom_call.1} parent=1 // loop_footer
      %s19 = sadd.s32 1, %s15
    $region7: #{tpu_custom_call.1} parent=1 // loop_footer_branch
      %14 = sbr.rel target = $region3
    $region8: #{tpu_custom_call.1} parent=1 // loop_exit
      _
    %1817 = vsyncpa [#allocation4], 1
    %s1818 = scalar_lea.sflag [#allocation4], 1
    %1819 = vsyncpa %s1818, 1

</llo_original>
